<compile_context>
chip_gen: v7x
topology: tpu7x:2x2x1
jax: 0.10.0
libtpu: 0.0.40
codegen_flags: <defaults>
</compile_context>

<pallas_src>
import functools

import jax
import jax.numpy as jnp
from jax.experimental import pallas as pl
from jax.experimental.pallas import tpu as pltpu

# ----- model config (matches TransformerHead defaults at small scale) -----
SEQ = 8          # sequence length (max_length)
BATCH = 2        # batch size
D_MODEL = 32     # in_features
NHEAD = 8        # default nhead
HEAD_DIM = D_MODEL // NHEAD
D_FF = 2048      # nn.TransformerEncoderLayer default dim_feedforward
EPS = 1e-5       # LayerNorm default eps


def _layernorm(x, w, b):
    mu = jnp.mean(x, axis=-1, keepdims=True)
    var = jnp.mean((x - mu) ** 2, axis=-1, keepdims=True)
    return (x - mu) * jax.lax.rsqrt(var + EPS) * w + b


def transformer_head_kernel(
    x_ref,                       # (S, nb, E) f32  (native seq-first layout)
    wqkv_ref, bqkv_ref,          # (E, 3E) bf16, (1, 3E) f32  (scale folded into q)
    mh_ref, mht_ref,             # (E, H) f32 head indicator, (H, E) f32 transpose
    wo_ref, bo_ref,              # (E, E) bf16, (1, E) f32
    n1w_ref, n1b_ref,            # (1, E) f32
    wf1_ref, bf1_ref,            # (E, F) bf16, (1, F) f32
    wf2_ref, bf2_ref,            # (F, E) bf16, (1, E) f32
    n2w_ref, n2b_ref,            # (1, E) f32
    roww_ref, rowb_ref,          # (1, E) f32, (1, 1) f32
    o_ref,                       # (1, S, nb) f32
    *, nb, seq, d_model, nhead,
):
    rows = seq * nb
    bf16 = jnp.bfloat16

    x = x_ref[...].reshape(rows, d_model)        # seq-major flattened rows
    xb = x.astype(bf16)

    # ---- fused q/k/v projection (1/sqrt(head_dim) already folded into q) ----
    qkv = (jnp.dot(xb, wqkv_ref[...], preferred_element_type=jnp.float32)
           + bqkv_ref[...])                      # (rows, 3E) f32
    q = qkv[:, :d_model].reshape(seq, nb, d_model)
    k = qkv[:, d_model:2 * d_model].reshape(seq, nb, d_model)
    v = qkv[:, 2 * d_model:].reshape(seq, nb, d_model)

    # ---- all-head attention: no per-head loop / slices / concat ----
    # prod[i, j, b, :] = q[i, b, :] * k[j, b, :]; per-head scores are the segment
    # sum of prod over each head's E-slice, i.e. prod @ head_indicator (E, H).
    prod = q[:, None, :, :] * k[None, :, :, :]                       # (Sq, Sk, nb, E)
    s = jnp.dot(prod.reshape(seq * seq * nb, d_model), mh_ref[...],
                preferred_element_type=jnp.float32)
    s = s.reshape(seq, seq, nb, nhead)                               # (Sq, Sk, nb, H)
    s = s - jnp.max(s, axis=1, keepdims=True)
    p = jnp.exp(s)
    p = p * pl.reciprocal(jnp.sum(p, axis=1, keepdims=True), approx=True)
    # expand per-head probabilities back onto the E lanes of their head
    p_e = jnp.dot(p.reshape(seq * seq * nb, nhead), mht_ref[...],
                  preferred_element_type=jnp.float32)
    p_e = p_e.reshape(seq, seq, nb, d_model)                         # (Sq, Sk, nb, E)
    ctx = jnp.sum(p_e * v[None, :, :, :], axis=1)                    # (Sq, nb, E)
    ctx = ctx.reshape(rows, d_model)

    attn = (jnp.dot(ctx.astype(bf16), wo_ref[...],
                    preferred_element_type=jnp.float32) + bo_ref[...])

    # ---- add & norm 1 (dropout = identity in eval) ----
    src = _layernorm(x + attn, n1w_ref[...], n1b_ref[...])

    # ---- feed-forward ----
    h1 = (jnp.dot(src.astype(bf16), wf1_ref[...],
                  preferred_element_type=jnp.float32) + bf1_ref[...])
    h1 = jnp.maximum(h1, 0.0)
    h2 = (jnp.dot(h1.astype(bf16), wf2_ref[...],
                  preferred_element_type=jnp.float32) + bf2_ref[...])

    # ---- add & norm 2 ----
    src = _layernorm(src + h2, n2w_ref[...], n2b_ref[...])

    # ---- row_fc: per-row dot with (E,) vector, (S, nb) block output ----
    src3 = src.reshape(seq, nb, d_model)
    out = jnp.sum(src3 * roww_ref[...], axis=-1) + rowb_ref[...]     # (S, nb)
    o_ref[...] = out[None]


def _pick_batch_block(n, s, target_rows=512, max_rows=512):
    """Largest batch tile nb dividing n with nb*s <= max_rows, preferring nb that
    is a multiple of 8 (legal (S, nb, E) input blocks) and >=2 grid steps (v7x)."""
    cands = [d for d in range(1, n + 1) if n % d == 0 and (d % 8 == 0 or d == n)]
    ok = [d for d in cands if d * s <= max_rows] or [min(cands)]
    nb = max(ok)
    if n // nb < 2:   # try to give the "parallel" axis >=2 steps (v7x 2 TCs)
        par = [d for d in ok if n // d >= 2 and d * s * 2 >= target_rows]
        if par:
            nb = max(par)
    return nb


@jax.jit
def transformer_head(x, params):
    """x: (S, N, E) seq-first, like PyTorch. Returns (S, N)."""
    S, N, E = x.shape
    nb = _pick_batch_block(N, S)
    G = N // nb

    def const_spec(a):
        nd = a.ndim
        return pl.BlockSpec(a.shape, lambda n, _nd=nd: (0,) * _nd)

    in_specs = [pl.BlockSpec((S, nb, E), lambda n: (0, n, 0))]
    in_specs += [const_spec(p) for p in params]

    kernel = functools.partial(transformer_head_kernel,
                               nb=nb, seq=S, d_model=E, nhead=NHEAD)

    out = pl.pallas_call(
        kernel,
        out_shape=jax.ShapeDtypeStruct((G, S, nb), jnp.float32),
        grid_spec=pltpu.PrefetchScalarGridSpec(
            num_scalar_prefetch=0,
            grid=(G,),
            in_specs=in_specs,
            out_specs=pl.BlockSpec((1, S, nb), lambda n: (n, 0, 0)),
        ),
        compiler_params=pltpu.CompilerParams(
            dimension_semantics=("parallel",),
            vmem_limit_bytes=32 * 1024 * 1024,
        ),
    )(x, *params)
    # (G, S, nb) -> (S, N); tiny host-side rearrangement (output only).
    return jnp.transpose(out, (1, 0, 2)).reshape(S, N)


# ------------------------- parameter construction -------------------------

def init_torch_params(key):
    """Parameters in PyTorch layout (as nn.TransformerEncoderLayer / nn.Linear store them)."""
    ks = jax.random.split(key, 12)
    n = lambda k, shape: jax.random.normal(k, shape, jnp.float32) * 0.05
    E, F = D_MODEL, D_FF
    return dict(
        in_w=n(ks[0], (3 * E, E)), in_b=n(ks[1], (3 * E,)),     # attn in_proj
        out_w=n(ks[2], (E, E)),    out_b=n(ks[3], (E,)),        # attn out_proj
        n1_w=jnp.ones((E,), jnp.float32), n1_b=n(ks[4], (E,)),  # norm1
        f1_w=n(ks[5], (F, E)), f1_b=n(ks[6], (F,)),             # linear1
        f2_w=n(ks[7], (E, F)), f2_b=n(ks[8], (E,)),             # linear2
        n2_w=jnp.ones((E,), jnp.float32), n2_b=n(ks[9], (E,)),  # norm2
        row_w=n(ks[10], (1, E)), row_b=n(ks[11], (1,)),         # row_fc
    )


def prepare_params(tp):
    """Host-side prep: fuse QKV (scale folded into q), pre-transpose, bf16 matmul weights,
    and build the per-head indicator matrices used by the fused attention."""
    bf = jnp.bfloat16
    E, F, H = D_MODEL, D_FF, NHEAD
    hd = E // H
    scale = 1.0 / (hd ** 0.5)

    in_w, in_b = tp["in_w"], tp["in_b"]
    wq = (in_w[:E] * scale).T                 # fold softmax scale into q proj
    wk = in_w[E:2 * E].T
    wv = in_w[2 * E:].T
    wqkv = jnp.concatenate([wq, wk, wv], axis=1).astype(bf)          # (E, 3E)
    bqkv = jnp.concatenate([in_b[:E] * scale, in_b[E:2 * E],
                            in_b[2 * E:]]).reshape(1, 3 * E)          # (1, 3E)

    mh = jnp.repeat(jnp.eye(H, dtype=jnp.float32), hd, axis=0)        # (E, H)
    mht = mh.T                                                         # (H, E)

    wo = tp["out_w"].T.astype(bf)
    bo = tp["out_b"].reshape(1, E)
    n1w = tp["n1_w"].reshape(1, E)
    n1b = tp["n1_b"].reshape(1, E)
    wf1 = tp["f1_w"].T.astype(bf)             # (E, F)
    bf1 = tp["f1_b"].reshape(1, F)
    wf2 = tp["f2_w"].T.astype(bf)             # (F, E)
    bf2 = tp["f2_b"].reshape(1, E)
    n2w = tp["n2_w"].reshape(1, E)
    n2b = tp["n2_b"].reshape(1, E)
    roww = tp["row_w"].reshape(1, E)
    rowb = tp["row_b"].reshape(1, 1)
    return (wqkv, bqkv, mh, mht, wo, bo, n1w, n1b,
            wf1, bf1, wf2, bf2, n2w, n2b, roww, rowb)


# ------------------------------ reference ---------------------------------

def transformer_head_ref(x, params):
    """Pure-JAX reference with the same precision policy (bf16 dot inputs, f32 accum)."""
    (wqkv, bqkv, mh, mht, wo, bo, n1w, n1b,
     wf1, bf1, wf2, bf2, n2w, n2b, roww, rowb) = params
    S, N, E = x.shape
    bf = jnp.bfloat16
    hd = E // NHEAD

    def dot(a, w):
        return jnp.dot(a.astype(bf), w, preferred_element_type=jnp.float32)

    outs = []
    for b in range(N):
        xb = x[:, b, :]                                        # (S, E) f32
        qkv = dot(xb, wqkv) + bqkv
        q, k, v = qkv[:, :E], qkv[:, E:2 * E], qkv[:, 2 * E:]
        heads = []
        for h in range(NHEAD):
            sl = slice(h * hd, (h + 1) * hd)
            s = q[:, sl] @ k[:, sl].T                          # scale folded into q
            p = jax.nn.softmax(s, axis=-1)
            heads.append(p @ v[:, sl])
        attn = dot(jnp.concatenate(heads, axis=-1), wo) + bo
        src = _layernorm(xb + attn, n1w, n1b)
        h1 = jnp.maximum(dot(src, wf1) + bf1, 0.0)
        h2 = dot(h1, wf2) + bf2
        src = _layernorm(src + h2, n2w, n2b)
        outs.append(jnp.sum(src * roww, axis=-1) + rowb[0, 0])
    return jnp.stack(outs, axis=1)                             # (S, N)


if __name__ == "__main__":
    key = jax.random.PRNGKey(0)
    k_params, k_x = jax.random.split(key)
    params = prepare_params(init_torch_params(k_params))
    x = jax.random.normal(k_x, (SEQ, BATCH, D_MODEL), jnp.float32)

    out = jax.block_until_ready(transformer_head(x, params))
    assert out.shape == (SEQ, BATCH), out.shape

    ref = transformer_head_ref(x, params)
    err = float(jnp.max(jnp.abs(out - ref)))
    # tolerance covers approx-reciprocal softmax + bf16 matmul inputs vs XLA ordering
    assert jnp.allclose(out, ref, atol=1e-2, rtol=1e-2), err

    print("KERNEL_OK")
</pallas_src>

<mosaic_0001>
module attributes {stable_mosaic.version = 11 : i64} {
  func.func @transformer_head_kernel(%arg0: i32, %arg1: memref<8x2x32xf32, #tpu.memory_space<vmem>>, %arg2: memref<32x96xbf16, #tpu.memory_space<vmem>>, %arg3: memref<1x96xf32, #tpu.memory_space<vmem>>, %arg4: memref<32x8xf32, #tpu.memory_space<vmem>>, %arg5: memref<8x32xf32, #tpu.memory_space<vmem>>, %arg6: memref<32x32xbf16, #tpu.memory_space<vmem>>, %arg7: memref<1x32xf32, #tpu.memory_space<vmem>>, %arg8: memref<1x32xf32, #tpu.memory_space<vmem>>, %arg9: memref<1x32xf32, #tpu.memory_space<vmem>>, %arg10: memref<32x2048xbf16, #tpu.memory_space<vmem>>, %arg11: memref<1x2048xf32, #tpu.memory_space<vmem>>, %arg12: memref<2048x32xbf16, #tpu.memory_space<vmem>>, %arg13: memref<1x32xf32, #tpu.memory_space<vmem>>, %arg14: memref<1x32xf32, #tpu.memory_space<vmem>>, %arg15: memref<1x32xf32, #tpu.memory_space<vmem>>, %arg16: memref<1x32xf32, #tpu.memory_space<vmem>>, %arg17: memref<1x1xf32, #tpu.memory_space<vmem>>, %arg18: memref<1x8x2xf32, #tpu.memory_space<vmem>>) attributes {dimension_semantics = [#tpu.dimension_semantics<parallel>], iteration_bounds = array<i64: 1>, scalar_prefetch = 0 : i64, scratch_operands = 0 : i64, tpu.core_type = #tpu.core_type<tc>, window_params = [{transform_indices = @transform_0, window_bounds = array<i64: 8, 2, 32>}, {pipeline_mode = #tpu.pipeline_mode<synchronous>, transform_indices = @transform_1, window_bounds = array<i64: 32, 96>}, {pipeline_mode = #tpu.pipeline_mode<synchronous>, transform_indices = @transform_2, window_bounds = array<i64: 1, 96>}, {pipeline_mode = #tpu.pipeline_mode<synchronous>, transform_indices = @transform_3, window_bounds = array<i64: 32, 8>}, {pipeline_mode = #tpu.pipeline_mode<synchronous>, transform_indices = @transform_4, window_bounds = array<i64: 8, 32>}, {pipeline_mode = #tpu.pipeline_mode<synchronous>, transform_indices = @transform_5, window_bounds = array<i64: 32, 32>}, {pipeline_mode = #tpu.pipeline_mode<synchronous>, transform_indices = @transform_6, window_bounds = array<i64: 1, 32>}, {pipeline_mode = #tpu.pipeline_mode<synchronous>, transform_indices = @transform_7, window_bounds = array<i64: 1, 32>}, {pipeline_mode = #tpu.pipeline_mode<synchronous>, transform_indices = @transform_8, window_bounds = array<i64: 1, 32>}, {pipeline_mode = #tpu.pipeline_mode<synchronous>, transform_indices = @transform_9, window_bounds = array<i64: 32, 2048>}, {pipeline_mode = #tpu.pipeline_mode<synchronous>, transform_indices = @transform_10, window_bounds = array<i64: 1, 2048>}, {pipeline_mode = #tpu.pipeline_mode<synchronous>, transform_indices = @transform_11, window_bounds = array<i64: 2048, 32>}, {pipeline_mode = #tpu.pipeline_mode<synchronous>, transform_indices = @transform_12, window_bounds = array<i64: 1, 32>}, {pipeline_mode = #tpu.pipeline_mode<synchronous>, transform_indices = @transform_13, window_bounds = array<i64: 1, 32>}, {pipeline_mode = #tpu.pipeline_mode<synchronous>, transform_indices = @transform_14, window_bounds = array<i64: 1, 32>}, {pipeline_mode = #tpu.pipeline_mode<synchronous>, transform_indices = @transform_15, window_bounds = array<i64: 1, 32>}, {pipeline_mode = #tpu.pipeline_mode<synchronous>, transform_indices = @transform_16, window_bounds = array<i64: 1, 1>}, {transform_indices = @transform_17, window_bounds = array<i64: 1, 8, 2>}]} {
    %c0 = arith.constant 0 : index
    %c0_0 = arith.constant 0 : index
    %c0_1 = arith.constant 0 : index
    %0 = vector.load %arg1[%c0, %c0_0, %c0_1] : memref<8x2x32xf32, #tpu.memory_space<vmem>>, vector<8x2x32xf32>
    %1 = vector.shape_cast %0 : vector<8x2x32xf32> to vector<16x32xf32>
    %2 = arith.truncf %1 : vector<16x32xf32> to vector<16x32xbf16>
    %c0_2 = arith.constant 0 : index
    %c0_3 = arith.constant 0 : index
    %3 = vector.load %arg2[%c0_2, %c0_3] : memref<32x96xbf16, #tpu.memory_space<vmem>>, vector<32x96xbf16>
    %cst = arith.constant dense<0.000000e+00> : vector<16x96xf32>
    %4 = tpu.matmul %2, %3, %cst {dimension_numbers = #tpu.dot_dimension_numbers<[1], [0], [0], [1], [0, 0, 1, 1], [], []>} : vector<16x32xbf16>, vector<32x96xbf16>, vector<16x96xf32> -> vector<16x96xf32>
    %c0_4 = arith.constant 0 : index
    %c0_5 = arith.constant 0 : index
    %5 = vector.load %arg3[%c0_4, %c0_5] : memref<1x96xf32, #tpu.memory_space<vmem>>, vector<1x96xf32>
    %6 = vector.broadcast %5 : vector<1x96xf32> to vector<16x96xf32>
    %7 = arith.addf %4, %6 : vector<16x96xf32>
    %8 = vector.extract_strided_slice %7 {offsets = [0, 0], sizes = [16, 32], strides = [1, 1]} : vector<16x96xf32> to vector<16x32xf32>
    %9 = vector.shape_cast %8 : vector<16x32xf32> to vector<8x2x32xf32>
    %10 = vector.extract_strided_slice %7 {offsets = [0, 32], sizes = [16, 32], strides = [1, 1]} : vector<16x96xf32> to vector<16x32xf32>
    %11 = vector.shape_cast %10 : vector<16x32xf32> to vector<8x2x32xf32>
    %12 = vector.extract_strided_slice %7 {offsets = [0, 64], sizes = [16, 32], strides = [1, 1]} : vector<16x96xf32> to vector<16x32xf32>
    %13 = vector.shape_cast %12 : vector<16x32xf32> to vector<8x2x32xf32>
    %14 = vector.shape_cast %9 : vector<8x2x32xf32> to vector<8x1x2x32xf32>
    %15 = vector.shape_cast %11 : vector<8x2x32xf32> to vector<1x8x2x32xf32>
    %16 = vector.broadcast %14 : vector<8x1x2x32xf32> to vector<8x8x2x32xf32>
    %17 = vector.broadcast %15 : vector<1x8x2x32xf32> to vector<8x8x2x32xf32>
    %18 = arith.mulf %16, %17 : vector<8x8x2x32xf32>
    %19 = vector.shape_cast %18 : vector<8x8x2x32xf32> to vector<128x32xf32>
    %c0_6 = arith.constant 0 : index
    %c0_7 = arith.constant 0 : index
    %20 = vector.load %arg4[%c0_6, %c0_7] : memref<32x8xf32, #tpu.memory_space<vmem>>, vector<32x8xf32>
    %cst_8 = arith.constant dense<0.000000e+00> : vector<128x8xf32>
    %21 = tpu.matmul %19, %20, %cst_8 {dimension_numbers = #tpu.dot_dimension_numbers<[1], [0], [0], [1], [0, 0, 1, 1], [], []>} : vector<128x32xf32>, vector<32x8xf32>, vector<128x8xf32> -> vector<128x8xf32>
    %22 = vector.shape_cast %21 : vector<128x8xf32> to vector<8x8x2x8xf32>
    %cst_9 = arith.constant dense<0xFF800000> : vector<8x2x8xf32>
    %23 = vector.multi_reduction <maximumf>, %22, %cst_9 [1] : vector<8x8x2x8xf32> to vector<8x2x8xf32>
    %24 = vector.shape_cast %23 : vector<8x2x8xf32> to vector<8x1x2x8xf32>
    %25 = vector.broadcast %24 : vector<8x1x2x8xf32> to vector<8x8x2x8xf32>
    %26 = arith.subf %22, %25 : vector<8x8x2x8xf32>
    %27 = math.exp %26 : vector<8x8x2x8xf32>
    %cst_10 = arith.constant dense<0.000000e+00> : vector<8x2x8xf32>
    %28 = vector.multi_reduction <add>, %27, %cst_10 [1] : vector<8x8x2x8xf32> to vector<8x2x8xf32>
    %29 = vector.shape_cast %28 : vector<8x2x8xf32> to vector<8x1x2x8xf32>
    %30 = tpu.reciprocal %29 {approx = true} : vector<8x1x2x8xf32> -> vector<8x1x2x8xf32>
    %31 = vector.broadcast %30 : vector<8x1x2x8xf32> to vector<8x8x2x8xf32>
    %32 = arith.mulf %27, %31 : vector<8x8x2x8xf32>
    %33 = vector.shape_cast %32 : vector<8x8x2x8xf32> to vector<128x8xf32>
    %c0_11 = arith.constant 0 : index
    %c0_12 = arith.constant 0 : index
    %34 = vector.load %arg5[%c0_11, %c0_12] : memref<8x32xf32, #tpu.memory_space<vmem>>, vector<8x32xf32>
    %cst_13 = arith.constant dense<0.000000e+00> : vector<128x32xf32>
    %35 = tpu.matmul %33, %34, %cst_13 {dimension_numbers = #tpu.dot_dimension_numbers<[1], [0], [0], [1], [0, 0, 1, 1], [], []>} : vector<128x8xf32>, vector<8x32xf32>, vector<128x32xf32> -> vector<128x32xf32>
    %36 = vector.shape_cast %35 : vector<128x32xf32> to vector<8x8x2x32xf32>
    %37 = vector.shape_cast %13 : vector<8x2x32xf32> to vector<1x8x2x32xf32>
    %38 = vector.broadcast %37 : vector<1x8x2x32xf32> to vector<8x8x2x32xf32>
    %39 = arith.mulf %36, %38 : vector<8x8x2x32xf32>
    %cst_14 = arith.constant dense<0.000000e+00> : vector<8x2x32xf32>
    %40 = vector.multi_reduction <add>, %39, %cst_14 [1] : vector<8x8x2x32xf32> to vector<8x2x32xf32>
    %41 = vector.shape_cast %40 : vector<8x2x32xf32> to vector<16x32xf32>
    %42 = arith.truncf %41 : vector<16x32xf32> to vector<16x32xbf16>
    %c0_15 = arith.constant 0 : index
    %c0_16 = arith.constant 0 : index
    %43 = vector.load %arg6[%c0_15, %c0_16] : memref<32x32xbf16, #tpu.memory_space<vmem>>, vector<32x32xbf16>
    %cst_17 = arith.constant dense<0.000000e+00> : vector<16x32xf32>
    %44 = tpu.matmul %42, %43, %cst_17 {dimension_numbers = #tpu.dot_dimension_numbers<[1], [0], [0], [1], [0, 0, 1, 1], [], []>} : vector<16x32xbf16>, vector<32x32xbf16>, vector<16x32xf32> -> vector<16x32xf32>
    %c0_18 = arith.constant 0 : index
    %c0_19 = arith.constant 0 : index
    %45 = vector.load %arg7[%c0_18, %c0_19] : memref<1x32xf32, #tpu.memory_space<vmem>>, vector<1x32xf32>
    %46 = vector.broadcast %45 : vector<1x32xf32> to vector<16x32xf32>
    %47 = arith.addf %44, %46 : vector<16x32xf32>
    %48 = arith.addf %1, %47 : vector<16x32xf32>
    %c0_20 = arith.constant 0 : index
    %c0_21 = arith.constant 0 : index
    %49 = vector.load %arg8[%c0_20, %c0_21] : memref<1x32xf32, #tpu.memory_space<vmem>>, vector<1x32xf32>
    %c0_22 = arith.constant 0 : index
    %c0_23 = arith.constant 0 : index
    %50 = vector.load %arg9[%c0_22, %c0_23] : memref<1x32xf32, #tpu.memory_space<vmem>>, vector<1x32xf32>
    %cst_24 = arith.constant dense<0.000000e+00> : vector<16xf32>
    %51 = vector.multi_reduction <add>, %48, %cst_24 [1] : vector<16x32xf32> to vector<16xf32>
    %52 = vector.shape_cast %51 : vector<16xf32> to vector<16x1xf32>
    %cst_25 = arith.constant 3.200000e+01 : f32
    %53 = vector.broadcast %cst_25 : f32 to vector<16x1xf32>
    %54 = arith.divf %52, %53 : vector<16x1xf32>
    %55 = vector.broadcast %54 : vector<16x1xf32> to vector<16x32xf32>
    %56 = arith.subf %48, %55 : vector<16x32xf32>
    %57 = arith.mulf %56, %56 : vector<16x32xf32>
    %cst_26 = arith.constant dense<0.000000e+00> : vector<16xf32>
    %58 = vector.multi_reduction <add>, %57, %cst_26 [1] : vector<16x32xf32> to vector<16xf32>
    %59 = vector.shape_cast %58 : vector<16xf32> to vector<16x1xf32>
    %cst_27 = arith.constant 3.200000e+01 : f32
    %60 = vector.broadcast %cst_27 : f32 to vector<16x1xf32>
    %61 = arith.divf %59, %60 : vector<16x1xf32>
    %62 = vector.broadcast %54 : vector<16x1xf32> to vector<16x32xf32>
    %63 = arith.subf %48, %62 : vector<16x32xf32>
    %cst_28 = arith.constant 9.99999974E-6 : f32
    %64 = vector.broadcast %cst_28 : f32 to vector<16x1xf32>
    %65 = arith.addf %61, %64 : vector<16x1xf32>
    %66 = math.rsqrt %65 : vector<16x1xf32>
    %67 = vector.broadcast %66 : vector<16x1xf32> to vector<16x32xf32>
    %68 = arith.mulf %63, %67 : vector<16x32xf32>
    %69 = vector.broadcast %49 : vector<1x32xf32> to vector<16x32xf32>
    %70 = arith.mulf %68, %69 : vector<16x32xf32>
    %71 = vector.broadcast %50 : vector<1x32xf32> to vector<16x32xf32>
    %72 = arith.addf %70, %71 : vector<16x32xf32>
    %73 = arith.truncf %72 : vector<16x32xf32> to vector<16x32xbf16>
    %c0_29 = arith.constant 0 : index
    %c0_30 = arith.constant 0 : index
    %74 = vector.load %arg10[%c0_29, %c0_30] : memref<32x2048xbf16, #tpu.memory_space<vmem>>, vector<32x2048xbf16>
    %cst_31 = arith.constant dense<0.000000e+00> : vector<16x2048xf32>
    %75 = tpu.matmul %73, %74, %cst_31 {dimension_numbers = #tpu.dot_dimension_numbers<[1], [0], [0], [1], [0, 0, 1, 1], [], []>} : vector<16x32xbf16>, vector<32x2048xbf16>, vector<16x2048xf32> -> vector<16x2048xf32>
    %c0_32 = arith.constant 0 : index
    %c0_33 = arith.constant 0 : index
    %76 = vector.load %arg11[%c0_32, %c0_33] : memref<1x2048xf32, #tpu.memory_space<vmem>>, vector<1x2048xf32>
    %77 = vector.broadcast %76 : vector<1x2048xf32> to vector<16x2048xf32>
    %78 = arith.addf %75, %77 : vector<16x2048xf32>
    %cst_34 = arith.constant 0.000000e+00 : f32
    %79 = vector.broadcast %cst_34 : f32 to vector<16x2048xf32>
    %80 = arith.maximumf %78, %79 : vector<16x2048xf32>
    %81 = arith.truncf %80 : vector<16x2048xf32> to vector<16x2048xbf16>
    %c0_35 = arith.constant 0 : index
    %c0_36 = arith.constant 0 : index
    %82 = vector.load %arg12[%c0_35, %c0_36] : memref<2048x32xbf16, #tpu.memory_space<vmem>>, vector<2048x32xbf16>
    %cst_37 = arith.constant dense<0.000000e+00> : vector<16x32xf32>
    %83 = tpu.matmul %81, %82, %cst_37 {dimension_numbers = #tpu.dot_dimension_numbers<[1], [0], [0], [1], [0, 0, 1, 1], [], []>} : vector<16x2048xbf16>, vector<2048x32xbf16>, vector<16x32xf32> -> vector<16x32xf32>
    %c0_38 = arith.constant 0 : index
    %c0_39 = arith.constant 0 : index
    %84 = vector.load %arg13[%c0_38, %c0_39] : memref<1x32xf32, #tpu.memory_space<vmem>>, vector<1x32xf32>
    %85 = vector.broadcast %84 : vector<1x32xf32> to vector<16x32xf32>
    %86 = arith.addf %83, %85 : vector<16x32xf32>
    %87 = arith.addf %72, %86 : vector<16x32xf32>
    %c0_40 = arith.constant 0 : index
    %c0_41 = arith.constant 0 : index
    %88 = vector.load %arg14[%c0_40, %c0_41] : memref<1x32xf32, #tpu.memory_space<vmem>>, vector<1x32xf32>
    %c0_42 = arith.constant 0 : index
    %c0_43 = arith.constant 0 : index
    %89 = vector.load %arg15[%c0_42, %c0_43] : memref<1x32xf32, #tpu.memory_space<vmem>>, vector<1x32xf32>
    %cst_44 = arith.constant dense<0.000000e+00> : vector<16xf32>
    %90 = vector.multi_reduction <add>, %87, %cst_44 [1] : vector<16x32xf32> to vector<16xf32>
    %91 = vector.shape_cast %90 : vector<16xf32> to vector<16x1xf32>
    %cst_45 = arith.constant 3.200000e+01 : f32
    %92 = vector.broadcast %cst_45 : f32 to vector<16x1xf32>
    %93 = arith.divf %91, %92 : vector<16x1xf32>
    %94 = vector.broadcast %93 : vector<16x1xf32> to vector<16x32xf32>
    %95 = arith.subf %87, %94 : vector<16x32xf32>
    %96 = arith.mulf %95, %95 : vector<16x32xf32>
    %cst_46 = arith.constant dense<0.000000e+00> : vector<16xf32>
    %97 = vector.multi_reduction <add>, %96, %cst_46 [1] : vector<16x32xf32> to vector<16xf32>
    %98 = vector.shape_cast %97 : vector<16xf32> to vector<16x1xf32>
    %cst_47 = arith.constant 3.200000e+01 : f32
    %99 = vector.broadcast %cst_47 : f32 to vector<16x1xf32>
    %100 = arith.divf %98, %99 : vector<16x1xf32>
    %101 = vector.broadcast %93 : vector<16x1xf32> to vector<16x32xf32>
    %102 = arith.subf %87, %101 : vector<16x32xf32>
    %cst_48 = arith.constant 9.99999974E-6 : f32
    %103 = vector.broadcast %cst_48 : f32 to vector<16x1xf32>
    %104 = arith.addf %100, %103 : vector<16x1xf32>
    %105 = math.rsqrt %104 : vector<16x1xf32>
    %106 = vector.broadcast %105 : vector<16x1xf32> to vector<16x32xf32>
    %107 = arith.mulf %102, %106 : vector<16x32xf32>
    %108 = vector.broadcast %88 : vector<1x32xf32> to vector<16x32xf32>
    %109 = arith.mulf %107, %108 : vector<16x32xf32>
    %110 = vector.broadcast %89 : vector<1x32xf32> to vector<16x32xf32>
    %111 = arith.addf %109, %110 : vector<16x32xf32>
    %112 = vector.shape_cast %111 : vector<16x32xf32> to vector<8x2x32xf32>
    %c0_49 = arith.constant 0 : index
    %c0_50 = arith.constant 0 : index
    %113 = vector.load %arg16[%c0_49, %c0_50] : memref<1x32xf32, #tpu.memory_space<vmem>>, vector<1x32xf32>
    %114 = vector.shape_cast %113 : vector<1x32xf32> to vector<1x1x32xf32>
    %115 = vector.broadcast %114 : vector<1x1x32xf32> to vector<8x2x32xf32>
    %116 = arith.mulf %112, %115 : vector<8x2x32xf32>
    %cst_51 = arith.constant dense<0.000000e+00> : vector<8x2xf32>
    %117 = vector.multi_reduction <add>, %116, %cst_51 [2] : vector<8x2x32xf32> to vector<8x2xf32>
    %c0_52 = arith.constant 0 : index
    %c0_53 = arith.constant 0 : index
    %118 = vector.load %arg17[%c0_52, %c0_53] : memref<1x1xf32, #tpu.memory_space<vmem>>, vector<1x1xf32>
    %119 = vector.broadcast %118 : vector<1x1xf32> to vector<8x2xf32>
    %120 = arith.addf %117, %119 : vector<8x2xf32>
    %121 = vector.shape_cast %120 : vector<8x2xf32> to vector<1x8x2xf32>
    %c0_54 = arith.constant 0 : index
    %c0_55 = arith.constant 0 : index
    %c0_56 = arith.constant 0 : index
    %122 = vector.load %arg18[%c0_54, %c0_55, %c0_56] : memref<1x8x2xf32, #tpu.memory_space<vmem>>, vector<1x8x2xf32>
    tpu.vector_store %arg18[%c0_54, %c0_55, %c0_56], %121 {strides = array<i32>} : memref<1x8x2xf32, #tpu.memory_space<vmem>>, vector<1x8x2xf32>,
    return
  }
  func.func @transform_0(%arg0: i32) -> (i32, i32, i32) {
    %c0_i32 = arith.constant 0 : i32
    %c0_i32_0 = arith.constant 0 : i32
    %c0_i32_1 = arith.constant 0 : i32
    return %c0_i32, %arg0, %c0_i32_0 : i32, i32, i32
  }
  func.func @transform_1(%arg0: i32) -> (i32, i32) {
    %c0_i32 = arith.constant 0 : i32
    %c0_i32_0 = arith.constant 0 : i32
    %c0_i32_1 = arith.constant 0 : i32
    return %c0_i32, %c0_i32_0 : i32, i32
  }
  func.func @transform_2(%arg0: i32) -> (i32, i32) {
    %c0_i32 = arith.constant 0 : i32
    %c0_i32_0 = arith.constant 0 : i32
    %c0_i32_1 = arith.constant 0 : i32
    return %c0_i32, %c0_i32_0 : i32, i32
  }
  func.func @transform_3(%arg0: i32) -> (i32, i32) {
    %c0_i32 = arith.constant 0 : i32
    %c0_i32_0 = arith.constant 0 : i32
    %c0_i32_1 = arith.constant 0 : i32
    return %c0_i32, %c0_i32_0 : i32, i32
  }
  func.func @transform_4(%arg0: i32) -> (i32, i32) {
    %c0_i32 = arith.constant 0 : i32
    %c0_i32_0 = arith.constant 0 : i32
    %c0_i32_1 = arith.constant 0 : i32
    return %c0_i32, %c0_i32_0 : i32, i32
  }
  func.func @transform_5(%arg0: i32) -> (i32, i32) {
    %c0_i32 = arith.constant 0 : i32
    %c0_i32_0 = arith.constant 0 : i32
    %c0_i32_1 = arith.constant 0 : i32
    return %c0_i32, %c0_i32_0 : i32, i32
  }
  func.func @transform_6(%arg0: i32) -> (i32, i32) {
    %c0_i32 = arith.constant 0 : i32
    %c0_i32_0 = arith.constant 0 : i32
    %c0_i32_1 = arith.constant 0 : i32
    return %c0_i32, %c0_i32_0 : i32, i32
  }
  func.func @transform_7(%arg0: i32) -> (i32, i32) {
    %c0_i32 = arith.constant 0 : i32
    %c0_i32_0 = arith.constant 0 : i32
    %c0_i32_1 = arith.constant 0 : i32
    return %c0_i32, %c0_i32_0 : i32, i32
  }
  func.func @transform_8(%arg0: i32) -> (i32, i32) {
    %c0_i32 = arith.constant 0 : i32
    %c0_i32_0 = arith.constant 0 : i32
    %c0_i32_1 = arith.constant 0 : i32
    return %c0_i32, %c0_i32_0 : i32, i32
  }
  func.func @transform_9(%arg0: i32) -> (i32, i32) {
    %c0_i32 = arith.constant 0 : i32
    %c0_i32_0 = arith.constant 0 : i32
    %c0_i32_1 = arith.constant 0 : i32
    return %c0_i32, %c0_i32_0 : i32, i32
  }
  func.func @transform_10(%arg0: i32) -> (i32, i32) {
    %c0_i32 = arith.constant 0 : i32
    %c0_i32_0 = arith.constant 0 : i32
    %c0_i32_1 = arith.constant 0 : i32
    return %c0_i32, %c0_i32_0 : i32, i32
  }
  func.func @transform_11(%arg0: i32) -> (i32, i32) {
    %c0_i32 = arith.constant 0 : i32
    %c0_i32_0 = arith.constant 0 : i32
    %c0_i32_1 = arith.constant 0 : i32
    return %c0_i32, %c0_i32_0 : i32, i32
  }
  func.func @transform_12(%arg0: i32) -> (i32, i32) {
    %c0_i32 = arith.constant 0 : i32
    %c0_i32_0 = arith.constant 0 : i32
    %c0_i32_1 = arith.constant 0 : i32
    return %c0_i32, %c0_i32_0 : i32, i32
  }
  func.func @transform_13(%arg0: i32) -> (i32, i32) {
    %c0_i32 = arith.constant 0 : i32
    %c0_i32_0 = arith.constant 0 : i32
    %c0_i32_1 = arith.constant 0 : i32
    return %c0_i32, %c0_i32_0 : i32, i32
  }
  func.func @transform_14(%arg0: i32) -> (i32, i32) {
    %c0_i32 = arith.constant 0 : i32
    %c0_i32_0 = arith.constant 0 : i32
    %c0_i32_1 = arith.constant 0 : i32
    return %c0_i32, %c0_i32_0 : i32, i32
  }
  func.func @transform_15(%arg0: i32) -> (i32, i32) {
    %c0_i32 = arith.constant 0 : i32
    %c0_i32_0 = arith.constant 0 : i32
    %c0_i32_1 = arith.constant 0 : i32
    return %c0_i32, %c0_i32_0 : i32, i32
  }
  func.func @transform_16(%arg0: i32) -> (i32, i32) {
    %c0_i32 = arith.constant 0 : i32
    %c0_i32_0 = arith.constant 0 : i32
    %c0_i32_1 = arith.constant 0 : i32
    return %c0_i32, %c0_i32_0 : i32, i32
  }
  func.func @transform_17(%arg0: i32) -> (i32, i32, i32) {
    %c0_i32 = arith.constant 0 : i32
    %c0_i32_0 = arith.constant 0 : i32
    %c0_i32_1 = arith.constant 0 : i32
    return %arg0, %c0_i32, %c0_i32_0 : i32, i32, i32
  }
}

</mosaic_0001>

<llo_original>
// kernel: transformer_head.1
$region0: #{transformer_head.1}
  #allocation0 [shape = 'u32[]', space=smem, size = 0x4, offset = 0x4, fixed_abs, tag = 'smem constant byte address 0x4 - core index']
  #allocation1 [shape = 'u32[144,128]{1,0:T(1,128)}', space=vmem, size = 0x12000, scoped, tag = 'internal scratch']
  #allocation2 [shape = 'f32[1,1]{1,0:T(1,128)S(1)}', space=vmem, size = 0x200, scoped, tag = 'scoped memory for transformer_head.1']
  %s0 = inlined_call_operand.vmem [shape: f32[8,2,32], index: 0, kind: input, shape index: {}]
  %s1 = inlined_call_operand.vmem [shape: bf16[32,96], index: 1, kind: input, shape index: {}]
  %s2 = inlined_call_operand.vmem [shape: f32[1,96], index: 2, kind: input, shape index: {}]
  %s3 = inlined_call_operand.vmem [shape: f32[32,8], index: 3, kind: input, shape index: {}]
  %s4 = inlined_call_operand.vmem [shape: f32[8,32], index: 4, kind: input, shape index: {}]
  %s5 = inlined_call_operand.vmem [shape: bf16[32,32], index: 5, kind: input, shape index: {}]
  %s6 = inlined_call_operand.vmem [shape: f32[1,32], index: 6, kind: input, shape index: {}]
  %s7 = inlined_call_operand.vmem [shape: f32[1,32], index: 7, kind: input, shape index: {}]
  %s8 = inlined_call_operand.vmem [shape: f32[1,32], index: 8, kind: input, shape index: {}]
  %s9 = inlined_call_operand.vmem [shape: bf16[32,2048], index: 9, kind: input, shape index: {}]
  %s10 = inlined_call_operand.vmem [shape: f32[1,2048], index: 10, kind: input, shape index: {}]
  %s11 = inlined_call_operand.vmem [shape: bf16[2048,32], index: 11, kind: input, shape index: {}]
  %s12 = inlined_call_operand.vmem [shape: f32[1,32], index: 12, kind: input, shape index: {}]
  %s13 = inlined_call_operand.vmem [shape: f32[1,32], index: 13, kind: input, shape index: {}]
  %s14 = inlined_call_operand.vmem [shape: f32[1,32], index: 14, kind: input, shape index: {}]
  %s15 = inlined_call_operand.vmem [shape: f32[1,32], index: 15, kind: input, shape index: {}]
  %s16 = inlined_call_operand.<no memory space> [shape: f32[1,1], index: 16, kind: input, shape index: {}]
  %s17 = inlined_call_operand.vmem [shape: f32[1,8,2], index: 17, kind: output, shape index: {}]
  %s18 = sld [smem:[#allocation0]]
  $region78: #{transformer_head.1} parent=0
    _
  %s20 = ssub.s32 1, %s18
  %s21 = scalar_select 0, %s20, %s18
  %v22 = vstv %s16
  %23 = vst [vmem:[#allocation2] sm:$0x1] %v22
  // Predicated region
  $region2: #{transformer_head.1} parent=0 // pred_check
    _
  $region3: #{transformer_head.1} parent=0 // pred_check_branch
    %25 = sbr.rel (0) target = $region5
  $region4: #{transformer_head.1} parent=0 // pred_region
    _
  $region5: #{transformer_head.1} parent=0 // pred_fallthru
    _
  // Predicated region
  $region6: #{transformer_head.1} parent=0 // pred_check
    _
  $region7: #{transformer_head.1} parent=0 // pred_check_branch
    %27 = sbr.rel (0) target = $region9
  $region8: #{transformer_head.1} parent=0 // pred_region
    _
  $region9: #{transformer_head.1} parent=0 // pred_fallthru
    _
  // Predicated region
  $region10: #{transformer_head.1} parent=0 // pred_check
    _
  $region11: #{transformer_head.1} parent=0 // pred_check_branch
    %29 = sbr.rel (0) target = $region13
  $region12: #{transformer_head.1} parent=0 // pred_region
    _
  $region13: #{transformer_head.1} parent=0 // pred_fallthru
    _
  // Predicated region
  $region14: #{transformer_head.1} parent=0 // pred_check
    _
  $region15: #{transformer_head.1} parent=0 // pred_check_branch
    %31 = sbr.rel (0) target = $region17
  $region16: #{transformer_head.1} parent=0 // pred_region
    _
  $region17: #{transformer_head.1} parent=0 // pred_fallthru
    _
  // Predicated region
  $region18: #{transformer_head.1} parent=0 // pred_check
    _
  $region19: #{transformer_head.1} parent=0 // pred_check_branch
    %33 = sbr.rel (0) target = $region21
  $region20: #{transformer_head.1} parent=0 // pred_region
    _
  $region21: #{transformer_head.1} parent=0 // pred_fallthru
    _
  // Predicated region
  $region22: #{transformer_head.1} parent=0 // pred_check
    _
  $region23: #{transformer_head.1} parent=0 // pred_check_branch
    %35 = sbr.rel (0) target = $region25
  $region24: #{transformer_head.1} parent=0 // pred_region
    _
  $region25: #{transformer_head.1} parent=0 // pred_fallthru
    _
  // Predicated region
  $region26: #{transformer_head.1} parent=0 // pred_check
    _
  $region27: #{transformer_head.1} parent=0 // pred_check_branch
    %37 = sbr.rel (0) target = $region29
  $region28: #{transformer_head.1} parent=0 // pred_region
    _
  $region29: #{transformer_head.1} parent=0 // pred_fallthru
    _
  // Predicated region
  $region30: #{transformer_head.1} parent=0 // pred_check
    _
  $region31: #{transformer_head.1} parent=0 // pred_check_branch
    %39 = sbr.rel (0) target = $region33
  $region32: #{transformer_head.1} parent=0 // pred_region
    _
  $region33: #{transformer_head.1} parent=0 // pred_fallthru
    _
  // Predicated region
  $region34: #{transformer_head.1} parent=0 // pred_check
    _
  $region35: #{transformer_head.1} parent=0 // pred_check_branch
    %41 = sbr.rel (0) target = $region37
  $region36: #{transformer_head.1} parent=0 // pred_region
    _
  $region37: #{transformer_head.1} parent=0 // pred_fallthru
    _
  // Predicated region
  $region38: #{transformer_head.1} parent=0 // pred_check
    _
  $region39: #{transformer_head.1} parent=0 // pred_check_branch
    %43 = sbr.rel (0) target = $region41
  $region40: #{transformer_head.1} parent=0 // pred_region
    _
  $region41: #{transformer_head.1} parent=0 // pred_fallthru
    _
  // Predicated region
  $region42: #{transformer_head.1} parent=0 // pred_check
    _
  $region43: #{transformer_head.1} parent=0 // pred_check_branch
    %45 = sbr.rel (0) target = $region45
  $region44: #{transformer_head.1} parent=0 // pred_region
    _
  $region45: #{transformer_head.1} parent=0 // pred_fallthru
    _
  // Predicated region
  $region46: #{transformer_head.1} parent=0 // pred_check
    _
  $region47: #{transformer_head.1} parent=0 // pred_check_branch
    %47 = sbr.rel (0) target = $region49
  $region48: #{transformer_head.1} parent=0 // pred_region
    _
  $region49: #{transformer_head.1} parent=0 // pred_fallthru
    _
  // Predicated region
  $region50: #{transformer_head.1} parent=0 // pred_check
    _
  $region51: #{transformer_head.1} parent=0 // pred_check_branch
    %49 = sbr.rel (0) target = $region53
  $region52: #{transformer_head.1} parent=0 // pred_region
    _
  $region53: #{transformer_head.1} parent=0 // pred_fallthru
    _
  // Predicated region
  $region54: #{transformer_head.1} parent=0 // pred_check
    _
  $region55: #{transformer_head.1} parent=0 // pred_check_branch
    %51 = sbr.rel (0) target = $region57
  $region56: #{transformer_head.1} parent=0 // pred_region
    _
  $region57: #{transformer_head.1} parent=0 // pred_fallthru
    _
  // Predicated region
  $region58: #{transformer_head.1} parent=0 // pred_check
    _
  $region59: #{transformer_head.1} parent=0 // pred_check_branch
    %53 = sbr.rel (0) target = $region61
  $region60: #{transformer_head.1} parent=0 // pred_region
    _
  $region61: #{transformer_head.1} parent=0 // pred_fallthru
    _
  // Predicated region
  $region62: #{transformer_head.1} parent=0 // pred_check
    _
  $region63: #{transformer_head.1} parent=0 // pred_check_branch
    %55 = sbr.rel (0) target = $region65
  $region64: #{transformer_head.1} parent=0 // pred_region
    _
  $region65: #{transformer_head.1} parent=0 // pred_fallthru
    _
  // Predicated region
  $region66: #{transformer_head.1} parent=0 // pred_check
    _
  $region67: #{transformer_head.1} parent=0 // pred_check_branch
    %57 = sbr.rel (0) target = $region69
  $region68: #{transformer_head.1} parent=0 // pred_region
    _
  $region69: #{transformer_head.1} parent=0 // pred_fallthru
    _
  %v59 = vld [vmem:[%s0] sm:$0x3]
  %v60 = vld [vmem:[%s0 + $0x2] sm:$0x3]
  %v61 = vld [vmem:[%s0 + $0x4] sm:$0x3]
  %v62 = vld [vmem:[%s0 + $0x6] sm:$0x3]
  %v63 = vld [vmem:[%s0 + $0x8] sm:$0x3]
  %v64 = vld [vmem:[%s0 + $0xa] sm:$0x3]
  %v65 = vld [vmem:[%s0 + $0xc] sm:$0x3]
  %v66 = vld [vmem:[%s0 + $0xe] sm:$0x3]
  %v75 = vcombine.low %v59, %v60
  %v76 = vcombine.low %v61, %v62
  %v78 = vunpack.c.l.s4 1983009808
  %v79 = vunpack.c.0.s8 %v78
  %v80 = vlaneseq
  %v81 = vshrl.u32 %v80, 7
  %v82 = vsub.s32 %v79, %v81
  %v83 = vrot.slane %v75, %v82
  %v85 = vunpack.c.l.s4 1983009808
  %v86 = vunpack.c.0.s8 %v85
  %v87 = vlaneseq
  %v88 = vshrl.u32 %v87, 7
  %v89 = vsub.s32 %v86, %v88
  %v90 = vrot.slane %v76, %v89
  %v91 = vcombine.low %v83, %v90
  %v92 = vcombine.low %v63, %v64
  %v93 = vcombine.low %v65, %v66
  %v95 = vunpack.c.l.s4 1983009808
  %v96 = vunpack.c.0.s8 %v95
  %v97 = vlaneseq
  %v98 = vshrl.u32 %v97, 7
  %v99 = vsub.s32 %v96, %v98
  %v100 = vrot.slane %v92, %v99
  %v102 = vunpack.c.l.s4 1983009808
  %v103 = vunpack.c.0.s8 %v102
  %v104 = vlaneseq
  %v105 = vshrl.u32 %v104, 7
  %v106 = vsub.s32 %v103, %v105
  %v107 = vrot.slane %v93, %v106
  %v108 = vcombine.low %v100, %v107
  %v111 = vpack.c.bf16 %v108, %v91
  %v112 = vld [vmem:[%s1] sm:$0xf]
  %v113 = vld [vmem:[%s1 + $0x4] sm:$0xf]
  %v114 = vld [vmem:[%s1 + $0x8] sm:$0xf]
  %v115 = vld [vmem:[%s1 + $0xc] sm:$0xf]
  %v116 = vld [vmem:[%s2] sm:$0x1]
  %v118 = vlaneseq
  %v119 = vshrl.u32 %v118, 7
  %v120 = vsub.s32 0, %v119
  %v121 = vrot.slane %v116, %v120
  %v127 = vunpack.c.l.b16 %v112
  %v128 = vunpack.c.l.b16 %v113
  %v129 = vunpack.c.l.b16 %v114
  %v130 = vunpack.c.l.b16 %v115
  %v131 = vpack.c.b16 %v128, %v127
  %v132 = vpack.c.b16 %v130, %v129
  %vm135 = vcmask 261120
  %v137 = vsel %vm135, %v111, 0
  %139 = vmatprep.subr.bf16.mxu0 0
  %140 = vmatpush1.bf16.msra.mxu0 %v131
  %141 = vmatprep.subr.bf16.mxu0 0
  %142 = vmatpush1.bf16.msra.mxu0 %v132
  %143 = vmatprep.subr.bf16.mxu0 0
  %144 = vmatpush1.bf16.msra.mxu0 0
  %145 = vmatprep.subr.bf16.mxu0 0
  %146 = vmatpush1.bf16.msra.mxu0 0
  %147 = vmatprep.subr.bf16.mxu0 0
  %148 = vmatpush1.bf16.msra.mxu0 0
  %149 = vmatprep.subr.bf16.mxu0 0
  %150 = vmatpush1.bf16.msra.mxu0 0
  %151 = vmatprep.subr.bf16.mxu0 0
  %152 = vmatpush1.bf16.msra.mxu0 0
  %153 = vmatprep.subr.bf16.mxu0 0
  %154 = vmatpush1.bf16.msra.mxu0 0
  %155 = vmatprep.subr.bf16.mxu0 0
  %156 = vmatpush1.bf16.msra.mxu0 0
  %157 = vmatprep.subr.bf16.mxu0 0
  %158 = vmatpush1.bf16.msra.mxu0 0
  %159 = vmatprep.subr.bf16.mxu0 0
  %160 = vmatpush1.bf16.msra.mxu0 0
  %161 = vmatprep.subr.bf16.mxu0 0
  %162 = vmatpush1.bf16.msra.mxu0 0
  %163 = vmatprep.subr.bf16.mxu0 0
  %164 = vmatpush1.bf16.msra.mxu0 0
  %165 = vmatprep.subr.bf16.mxu0 0
  %166 = vmatpush1.bf16.msra.mxu0 0
  %167 = vmatprep.subr.bf16.mxu0 0
  %168 = vmatpush1.bf16.msra.mxu0 0
  %169 = vmatprep.subr.bf16.mxu0 0
  %170 = vmatpush1.bf16.msra.mxu0 0
  %171 = vmatprep.mubr.bf16.mxu0 0
  %172 = vmatmul.mubr.bf16.gmra.mrb[0].mxu0 %v137
  %v173 = vpop.f32.mrb[0].mxu0
  %v174 = vadd.f32 %v121, %v173
  %v175 = vpop.f32.mrb[0].mxu0
  %v176 = vpop.f32.mrb[0].mxu0
  %v177 = vadd.f32 %v121, %v176
  %v178 = vpop.f32.mrb[0].mxu0
  %179 = vdwg.mxu0
  %v182 = vcombine.high %v174, %v174
  %v184 = vunpack.c.l.s4 1983009808
  %v185 = vunpack.c.0.s8 %v184
  %v186 = vlaneseq
  %v187 = vshrl.u32 %v186, 7
  %v188 = vsub.s32 %v185, %v187
  %v189 = vrot.slane %v174, %v188
  %v191 = vunpack.c.l.s4 1983009808
  %v192 = vunpack.c.0.s8 %v191
  %v193 = vlaneseq
  %v194 = vshrl.u32 %v193, 7
  %v195 = vsub.s32 %v192, %v194
  %v196 = vrot.slane %v182, %v195
  %v197 = vcombine.high %v189, %v189
  %v198 = vcombine.high %v196, %v196
  %v199 = vcombine.high %v177, %v177
  %v201 = vunpack.c.l.s4 1983009808
  %v202 = vunpack.c.0.s8 %v201
  %v203 = vlaneseq
  %v204 = vshrl.u32 %v203, 7
  %v205 = vsub.s32 %v202, %v204
  %v206 = vrot.slane %v177, %v205
  %v208 = vunpack.c.l.s4 1983009808
  %v209 = vunpack.c.0.s8 %v208
  %v210 = vlaneseq
  %v211 = vshrl.u32 %v210, 7
  %v212 = vsub.s32 %v209, %v211
  %v213 = vrot.slane %v199, %v212
  %v214 = vcombine.high %v206, %v206
  %v215 = vcombine.high %v213, %v213
  %224 = vrot.lane.b32.xlu0 %v189, 96
  %v225 = vpop.permute.xlu0 %224
  %226 = vrot.lane.b32.xlu0 %v197, 96
  %v227 = vpop.permute.xlu0 %226
  %228 = vrot.lane.b32.xlu0 %v196, 96
  %v229 = vpop.permute.xlu0 %228
  %230 = vrot.lane.b32.xlu0 %v198, 96
  %v231 = vpop.permute.xlu0 %230
  %232 = vrot.lane.b32.xlu0 %v206, 96
  %v233 = vpop.permute.xlu0 %232
  %234 = vrot.lane.b32.xlu0 %v214, 96
  %v235 = vpop.permute.xlu0 %234
  %236 = vrot.lane.b32.xlu0 %v213, 96
  %v237 = vpop.permute.xlu0 %236
  %238 = vrot.lane.b32.xlu0 %v215, 96
  %v239 = vpop.permute.xlu0 %238
  %v248 = vmul.f32 %v189, %v225
  %v249 = vmul.f32 %v189, %v227
  %v250 = vmul.f32 %v189, %v229
  %v251 = vmul.f32 %v189, %v231
  %v252 = vmul.f32 %v189, %v233
  %v253 = vmul.f32 %v189, %v235
  %v254 = vmul.f32 %v189, %v237
  %v255 = vmul.f32 %v189, %v239
  %v256 = vmul.f32 %v197, %v225
  %v257 = vmul.f32 %v197, %v227
  %v258 = vmul.f32 %v197, %v229
  %v259 = vmul.f32 %v197, %v231
  %v260 = vmul.f32 %v197, %v233
  %v261 = vmul.f32 %v197, %v235
  %v262 = vmul.f32 %v197, %v237
  %v263 = vmul.f32 %v197, %v239
  %v264 = vmul.f32 %v196, %v225
  %v265 = vmul.f32 %v196, %v227
  %v266 = vmul.f32 %v196, %v229
  %v267 = vmul.f32 %v196, %v231
  %v268 = vmul.f32 %v196, %v233
  %v269 = vmul.f32 %v196, %v235
  %v270 = vmul.f32 %v196, %v237
  %v271 = vmul.f32 %v196, %v239
  %v272 = vmul.f32 %v198, %v225
  %v273 = vmul.f32 %v198, %v227
  %v274 = vmul.f32 %v198, %v229
  %v275 = vmul.f32 %v198, %v231
  %v276 = vmul.f32 %v198, %v233
  %v277 = vmul.f32 %v198, %v235
  %v278 = vmul.f32 %v198, %v237
  %v279 = vmul.f32 %v198, %v239
  %v280 = vmul.f32 %v206, %v225
  %v281 = vmul.f32 %v206, %v227
  %v282 = vmul.f32 %v206, %v229
  %v283 = vmul.f32 %v206, %v231
  %v284 = vmul.f32 %v206, %v233
  %v285 = vmul.f32 %v206, %v235
  %v286 = vmul.f32 %v206, %v237
  %v287 = vmul.f32 %v206, %v239
  %v288 = vmul.f32 %v214, %v225
  %v289 = vmul.f32 %v214, %v227
  %v290 = vmul.f32 %v214, %v229
  %v291 = vmul.f32 %v214, %v231
  %v292 = vmul.f32 %v214, %v233
  %v293 = vmul.f32 %v214, %v235
  %v294 = vmul.f32 %v214, %v237
  %v295 = vmul.f32 %v214, %v239
  %v296 = vmul.f32 %v213, %v225
  %v297 = vmul.f32 %v213, %v227
  %v298 = vmul.f32 %v213, %v229
  %v299 = vmul.f32 %v213, %v231
  %v300 = vmul.f32 %v213, %v233
  %v301 = vmul.f32 %v213, %v235
  %v302 = vmul.f32 %v213, %v237
  %v303 = vmul.f32 %v213, %v239
  %v304 = vmul.f32 %v215, %v225
  %v305 = vmul.f32 %v215, %v227
  %v306 = vmul.f32 %v215, %v229
  %v307 = vmul.f32 %v215, %v231
  %v308 = vmul.f32 %v215, %v233
  %v309 = vmul.f32 %v215, %v235
  %v310 = vmul.f32 %v215, %v237
  %v311 = vmul.f32 %v215, %v239
  %v312 = vld [vmem:[%s3] sm:$0xff]
  %v313 = vld [vmem:[%s3 + $0x8] sm:$0xff]
  %v314 = vld [vmem:[%s3 + $0x10] sm:$0xff]
  %v315 = vld [vmem:[%s3 + $0x18] sm:$0xff]
  %v380 = vcombine.low %v248, %v249
  %v381 = vcombine.low %v250, %v251
  %v383 = vunpack.c.l.s4 1983009808
  %v384 = vunpack.c.0.s8 %v383
  %v385 = vlaneseq
  %v386 = vshrl.u32 %v385, 7
  %v387 = vsub.s32 %v384, %v386
  %v388 = vrot.slane %v380, %v387
  %v390 = vunpack.c.l.s4 1983009808
  %v391 = vunpack.c.0.s8 %v390
  %v392 = vlaneseq
  %v393 = vshrl.u32 %v392, 7
  %v394 = vsub.s32 %v391, %v393
  %v395 = vrot.slane %v381, %v394
  %v396 = vcombine.low %v388, %v395
  %v397 = vcombine.low %v252, %v253
  %v398 = vcombine.low %v254, %v255
  %v400 = vunpack.c.l.s4 1983009808
  %v401 = vunpack.c.0.s8 %v400
  %v402 = vlaneseq
  %v403 = vshrl.u32 %v402, 7
  %v404 = vsub.s32 %v401, %v403
  %v405 = vrot.slane %v397, %v404
  %v407 = vunpack.c.l.s4 1983009808
  %v408 = vunpack.c.0.s8 %v407
  %v409 = vlaneseq
  %v410 = vshrl.u32 %v409, 7
  %v411 = vsub.s32 %v408, %v410
  %v412 = vrot.slane %v398, %v411
  %v413 = vcombine.low %v405, %v412
  %v414 = vcombine.low %v256, %v257
  %v415 = vcombine.low %v258, %v259
  %v417 = vunpack.c.l.s4 1983009808
  %v418 = vunpack.c.0.s8 %v417
  %v419 = vlaneseq
  %v420 = vshrl.u32 %v419, 7
  %v421 = vsub.s32 %v418, %v420
  %v422 = vrot.slane %v414, %v421
  %v424 = vunpack.c.l.s4 1983009808
  %v425 = vunpack.c.0.s8 %v424
  %v426 = vlaneseq
  %v427 = vshrl.u32 %v426, 7
  %v428 = vsub.s32 %v425, %v427
  %v429 = vrot.slane %v415, %v428
  %v430 = vcombine.low %v422, %v429
  %v431 = vcombine.low %v260, %v261
  %v432 = vcombine.low %v262, %v263
  %v434 = vunpack.c.l.s4 1983009808
  %v435 = vunpack.c.0.s8 %v434
  %v436 = vlaneseq
  %v437 = vshrl.u32 %v436, 7
  %v438 = vsub.s32 %v435, %v437
  %v439 = vrot.slane %v431, %v438
  %v441 = vunpack.c.l.s4 1983009808
  %v442 = vunpack.c.0.s8 %v441
  %v443 = vlaneseq
  %v444 = vshrl.u32 %v443, 7
  %v445 = vsub.s32 %v442, %v444
  %v446 = vrot.slane %v432, %v445
  %v447 = vcombine.low %v439, %v446
  %v448 = vcombine.low %v264, %v265
  %v449 = vcombine.low %v266, %v267
  %v451 = vunpack.c.l.s4 1983009808
  %v452 = vunpack.c.0.s8 %v451
  %v453 = vlaneseq
  %v454 = vshrl.u32 %v453, 7
  %v455 = vsub.s32 %v452, %v454
  %v456 = vrot.slane %v448, %v455
  %v458 = vunpack.c.l.s4 1983009808
  %v459 = vunpack.c.0.s8 %v458
  %v460 = vlaneseq
  %v461 = vshrl.u32 %v460, 7
  %v462 = vsub.s32 %v459, %v461
  %v463 = vrot.slane %v449, %v462
  %v464 = vcombine.low %v456, %v463
  %v465 = vcombine.low %v268, %v269
  %v466 = vcombine.low %v270, %v271
  %v468 = vunpack.c.l.s4 1983009808
  %v469 = vunpack.c.0.s8 %v468
  %v470 = vlaneseq
  %v471 = vshrl.u32 %v470, 7
  %v472 = vsub.s32 %v469, %v471
  %v473 = vrot.slane %v465, %v472
  %v475 = vunpack.c.l.s4 1983009808
  %v476 = vunpack.c.0.s8 %v475
  %v477 = vlaneseq
  %v478 = vshrl.u32 %v477, 7
  %v479 = vsub.s32 %v476, %v478
  %v480 = vrot.slane %v466, %v479
  %v481 = vcombine.low %v473, %v480
  %v482 = vcombine.low %v272, %v273
  %v483 = vcombine.low %v274, %v275
  %v485 = vunpack.c.l.s4 1983009808
  %v486 = vunpack.c.0.s8 %v485
  %v487 = vlaneseq
  %v488 = vshrl.u32 %v487, 7
  %v489 = vsub.s32 %v486, %v488
  %v490 = vrot.slane %v482, %v489
  %v492 = vunpack.c.l.s4 1983009808
  %v493 = vunpack.c.0.s8 %v492
  %v494 = vlaneseq
  %v495 = vshrl.u32 %v494, 7
  %v496 = vsub.s32 %v493, %v495
  %v497 = vrot.slane %v483, %v496
  %v498 = vcombine.low %v490, %v497
  %v499 = vcombine.low %v276, %v277
  %v500 = vcombine.low %v278, %v279
  %v502 = vunpack.c.l.s4 1983009808
  %v503 = vunpack.c.0.s8 %v502
  %v504 = vlaneseq
  %v505 = vshrl.u32 %v504, 7
  %v506 = vsub.s32 %v503, %v505
  %v507 = vrot.slane %v499, %v506
  %v509 = vunpack.c.l.s4 1983009808
  %v510 = vunpack.c.0.s8 %v509
  %v511 = vlaneseq
  %v512 = vshrl.u32 %v511, 7
  %v513 = vsub.s32 %v510, %v512
  %v514 = vrot.slane %v500, %v513
  %v515 = vcombine.low %v507, %v514
  %v516 = vcombine.low %v280, %v281
  %v517 = vcombine.low %v282, %v283
  %v519 = vunpack.c.l.s4 1983009808
  %v520 = vunpack.c.0.s8 %v519
  %v521 = vlaneseq
  %v522 = vshrl.u32 %v521, 7
  %v523 = vsub.s32 %v520, %v522
  %v524 = vrot.slane %v516, %v523
  %v526 = vunpack.c.l.s4 1983009808
  %v527 = vunpack.c.0.s8 %v526
  %v528 = vlaneseq
  %v529 = vshrl.u32 %v528, 7
  %v530 = vsub.s32 %v527, %v529
  %v531 = vrot.slane %v517, %v530
  %v532 = vcombine.low %v524, %v531
  %v533 = vcombine.low %v284, %v285
  %v534 = vcombine.low %v286, %v287
  %v536 = vunpack.c.l.s4 1983009808
  %v537 = vunpack.c.0.s8 %v536
  %v538 = vlaneseq
  %v539 = vshrl.u32 %v538, 7
  %v540 = vsub.s32 %v537, %v539
  %v541 = vrot.slane %v533, %v540
  %v543 = vunpack.c.l.s4 1983009808
  %v544 = vunpack.c.0.s8 %v543
  %v545 = vlaneseq
  %v546 = vshrl.u32 %v545, 7
  %v547 = vsub.s32 %v544, %v546
  %v548 = vrot.slane %v534, %v547
  %v549 = vcombine.low %v541, %v548
  %v550 = vcombine.low %v288, %v289
  %v551 = vcombine.low %v290, %v291
  %v553 = vunpack.c.l.s4 1983009808
  %v554 = vunpack.c.0.s8 %v553
  %v555 = vlaneseq
  %v556 = vshrl.u32 %v555, 7
  %v557 = vsub.s32 %v554, %v556
  %v558 = vrot.slane %v550, %v557
  %v560 = vunpack.c.l.s4 1983009808
  %v561 = vunpack.c.0.s8 %v560
  %v562 = vlaneseq
  %v563 = vshrl.u32 %v562, 7
  %v564 = vsub.s32 %v561, %v563
  %v565 = vrot.slane %v551, %v564
  %v566 = vcombine.low %v558, %v565
  %v567 = vcombine.low %v292, %v293
  %v568 = vcombine.low %v294, %v295
  %v570 = vunpack.c.l.s4 1983009808
  %v571 = vunpack.c.0.s8 %v570
  %v572 = vlaneseq
  %v573 = vshrl.u32 %v572, 7
  %v574 = vsub.s32 %v571, %v573
  %v575 = vrot.slane %v567, %v574
  %v577 = vunpack.c.l.s4 1983009808
  %v578 = vunpack.c.0.s8 %v577
  %v579 = vlaneseq
  %v580 = vshrl.u32 %v579, 7
  %v581 = vsub.s32 %v578, %v580
  %v582 = vrot.slane %v568, %v581
  %v583 = vcombine.low %v575, %v582
  %v584 = vcombine.low %v296, %v297
  %v585 = vcombine.low %v298, %v299
  %v587 = vunpack.c.l.s4 1983009808
  %v588 = vunpack.c.0.s8 %v587
  %v589 = vlaneseq
  %v590 = vshrl.u32 %v589, 7
  %v591 = vsub.s32 %v588, %v590
  %v592 = vrot.slane %v584, %v591
  %v594 = vunpack.c.l.s4 1983009808
  %v595 = vunpack.c.0.s8 %v594
  %v596 = vlaneseq
  %v597 = vshrl.u32 %v596, 7
  %v598 = vsub.s32 %v595, %v597
  %v599 = vrot.slane %v585, %v598
  %v600 = vcombine.low %v592, %v599
  %v601 = vcombine.low %v300, %v301
  %v602 = vcombine.low %v302, %v303
  %v604 = vunpack.c.l.s4 1983009808
  %v605 = vunpack.c.0.s8 %v604
  %v606 = vlaneseq
  %v607 = vshrl.u32 %v606, 7
  %v608 = vsub.s32 %v605, %v607
  %v609 = vrot.slane %v601, %v608
  %v611 = vunpack.c.l.s4 1983009808
  %v612 = vunpack.c.0.s8 %v611
  %v613 = vlaneseq
  %v614 = vshrl.u32 %v613, 7
  %v615 = vsub.s32 %v612, %v614
  %v616 = vrot.slane %v602, %v615
  %v617 = vcombine.low %v609, %v616
  %v618 = vcombine.low %v304, %v305
  %v619 = vcombine.low %v306, %v307
  %v621 = vunpack.c.l.s4 1983009808
  %v622 = vunpack.c.0.s8 %v621
  %v623 = vlaneseq
  %v624 = vshrl.u32 %v623, 7
  %v625 = vsub.s32 %v622, %v624
  %v626 = vrot.slane %v618, %v625
  %v628 = vunpack.c.l.s4 1983009808
  %v629 = vunpack.c.0.s8 %v628
  %v630 = vlaneseq
  %v631 = vshrl.u32 %v630, 7
  %v632 = vsub.s32 %v629, %v631
  %v633 = vrot.slane %v619, %v632
  %v634 = vcombine.low %v626, %v633
  %v635 = vcombine.low %v308, %v309
  %v636 = vcombine.low %v310, %v311
  %v638 = vunpack.c.l.s4 1983009808
  %v639 = vunpack.c.0.s8 %v638
  %v640 = vlaneseq
  %v641 = vshrl.u32 %v640, 7
  %v642 = vsub.s32 %v639, %v641
  %v643 = vrot.slane %v635, %v642
  %v645 = vunpack.c.l.s4 1983009808
  %v646 = vunpack.c.0.s8 %v645
  %v647 = vlaneseq
  %v648 = vshrl.u32 %v647, 7
  %v649 = vsub.s32 %v646, %v648
  %v650 = vrot.slane %v636, %v649
  %v651 = vcombine.low %v643, %v650
  %v652 = vsel %vm135, %v396, 0
  %v654 = vsel %vm135, %v413, 0
  %v656 = vsel %vm135, %v430, 0
  %v658 = vsel %vm135, %v447, 0
  %v660 = vsel %vm135, %v464, 0
  %v662 = vsel %vm135, %v481, 0
  %v664 = vsel %vm135, %v498, 0
  %v666 = vsel %vm135, %v515, 0
  %v668 = vsel %vm135, %v532, 0
  %v670 = vsel %vm135, %v549, 0
  %v672 = vsel %vm135, %v566, 0
  %v674 = vsel %vm135, %v583, 0
  %v676 = vsel %vm135, %v600, 0
  %v678 = vsel %vm135, %v617, 0
  %v680 = vsel %vm135, %v634, 0
  %v682 = vsel %vm135, %v651, 0
  %684 = vmatprep.subr.mxu0 0.0
  %685 = vmatpush1.msra.mxu0 %v312
  %686 = vmatprep.subr.mxu0 0.0
  %687 = vmatpush1.msra.mxu0 %v313
  %688 = vmatprep.subr.mxu0 0.0
  %689 = vmatpush1.msra.mxu0 %v314
  %690 = vmatprep.subr.mxu0 0.0
  %691 = vmatpush1.msra.mxu0 %v315
  %692 = vmatprep.subr.mxu0 0.0
  %693 = vmatpush1.msra.mxu0 0.0
  %694 = vmatprep.subr.mxu0 0.0
  %695 = vmatpush1.msra.mxu0 0.0
  %696 = vmatprep.subr.mxu0 0.0
  %697 = vmatpush1.msra.mxu0 0.0
  %698 = vmatprep.subr.mxu0 0.0
  %699 = vmatpush1.msra.mxu0 0.0
  %700 = vmatprep.subr.mxu0 0.0
  %701 = vmatpush1.msra.mxu0 0.0
  %702 = vmatprep.subr.mxu0 0.0
  %703 = vmatpush1.msra.mxu0 0.0
  %704 = vmatprep.subr.mxu0 0.0
  %705 = vmatpush1.msra.mxu0 0.0
  %706 = vmatprep.subr.mxu0 0.0
  %707 = vmatpush1.msra.mxu0 0.0
  %708 = vmatprep.subr.mxu0 0.0
  %709 = vmatpush1.msra.mxu0 0.0
  %710 = vmatprep.subr.mxu0 0.0
  %711 = vmatpush1.msra.mxu0 0.0
  %712 = vmatprep.subr.mxu0 0.0
  %713 = vmatpush1.msra.mxu0 0.0
  %714 = vmatprep.subr.mxu0 0.0
  %715 = vmatpush1.msra.mxu0 0.0
  %716 = vmatprep.subr.mxu0 0.0
  %717 = vmatpush1.msra.mxu0 0.0
  %718 = vmatprep.subr.mxu0 0.0
  %719 = vmatpush1.msra.mxu0 0.0
  %720 = vmatprep.subr.mxu0 0.0
  %721 = vmatpush1.msra.mxu0 0.0
  %722 = vmatprep.subr.mxu0 0.0
  %723 = vmatpush1.msra.mxu0 0.0
  %724 = vmatprep.subr.mxu0 0.0
  %725 = vmatpush1.msra.mxu0 0.0
  %726 = vmatprep.subr.mxu0 0.0
  %727 = vmatpush1.msra.mxu0 0.0
  %728 = vmatprep.subr.mxu0 0.0
  %729 = vmatpush1.msra.mxu0 0.0
  %730 = vmatprep.subr.mxu0 0.0
  %731 = vmatpush1.msra.mxu0 0.0
  %732 = vmatprep.subr.mxu0 0.0
  %733 = vmatpush1.msra.mxu0 0.0
  %734 = vmatprep.subr.mxu0 0.0
  %735 = vmatpush1.msra.mxu0 0.0
  %736 = vmatprep.subr.mxu0 0.0
  %737 = vmatpush1.msra.mxu0 0.0
  %738 = vmatprep.subr.mxu0 0.0
  %739 = vmatpush1.msra.mxu0 0.0
  %740 = vmatprep.subr.mxu0 0.0
  %741 = vmatpush1.msra.mxu0 0.0
  %742 = vmatprep.subr.mxu0 0.0
  %743 = vmatpush1.msra.mxu0 0.0
  %744 = vmatprep.subr.mxu0 0.0
  %745 = vmatpush1.msra.mxu0 0.0
  %746 = vmatprep.subr.mxu0 0.0
  %747 = vmatpush1.msra.mxu0 0.0
  %748 = vmatprep.mubr.f32.mxu0 0.0
  %749 = vmatmul.mubr.f32.gmra.mrb[0].mxu0 %v652
  %v750 = vpop.f32.mrb[0].mxu0
  %v751 = vadd.f32 0.0, %v750
  %v752 = vpop.f32.mrb[0].mxu0
  %753 = vmatprep.mubr.f32.mxu0 0.0
  %754 = vmatmul.mubr.f32.gmra.mrb[0].mxu0 %v654
  %v755 = vpop.f32.mrb[0].mxu0
  %v756 = vadd.f32 0.0, %v755
  %v757 = vpop.f32.mrb[0].mxu0
  %758 = vmatprep.mubr.f32.mxu0 0.0
  %759 = vmatmul.mubr.f32.gmra.mrb[0].mxu0 %v656
  %v760 = vpop.f32.mrb[0].mxu0
  %v761 = vadd.f32 0.0, %v760
  %v762 = vpop.f32.mrb[0].mxu0
  %763 = vmatprep.mubr.f32.mxu0 0.0
  %764 = vmatmul.mubr.f32.gmra.mrb[0].mxu0 %v658
  %v765 = vpop.f32.mrb[0].mxu0
  %v766 = vadd.f32 0.0, %v765
  %v767 = vpop.f32.mrb[0].mxu0
  %768 = vmatprep.mubr.f32.mxu0 0.0
  %769 = vmatmul.mubr.f32.gmra.mrb[0].mxu0 %v660
  %v770 = vpop.f32.mrb[0].mxu0
  %v771 = vadd.f32 0.0, %v770
  %v772 = vpop.f32.mrb[0].mxu0
  %773 = vmatprep.mubr.f32.mxu0 0.0
  %774 = vmatmul.mubr.f32.gmra.mrb[0].mxu0 %v662
  %v775 = vpop.f32.mrb[0].mxu0
  %v776 = vadd.f32 0.0, %v775
  %v777 = vpop.f32.mrb[0].mxu0
  %778 = vmatprep.mubr.f32.mxu0 0.0
  %779 = vmatmul.mubr.f32.gmra.mrb[0].mxu0 %v664
  %v780 = vpop.f32.mrb[0].mxu0
  %v781 = vadd.f32 0.0, %v780
  %v782 = vpop.f32.mrb[0].mxu0
  %783 = vmatprep.mubr.f32.mxu0 0.0
  %784 = vmatmul.mubr.f32.gmra.mrb[0].mxu0 %v666
  %v785 = vpop.f32.mrb[0].mxu0
  %v786 = vadd.f32 0.0, %v785
  %v787 = vpop.f32.mrb[0].mxu0
  %788 = vmatprep.mubr.f32.mxu0 0.0
  %789 = vmatmul.mubr.f32.gmra.mrb[0].mxu0 %v668
  %v790 = vpop.f32.mrb[0].mxu0
  %v791 = vadd.f32 0.0, %v790
  %v792 = vpop.f32.mrb[0].mxu0
  %793 = vmatprep.mubr.f32.mxu0 0.0
  %794 = vmatmul.mubr.f32.gmra.mrb[0].mxu0 %v670
  %v795 = vpop.f32.mrb[0].mxu0
  %v796 = vadd.f32 0.0, %v795
  %v797 = vpop.f32.mrb[0].mxu0
  %798 = vmatprep.mubr.f32.mxu0 0.0
  %799 = vmatmul.mubr.f32.gmra.mrb[0].mxu0 %v672
  %v800 = vpop.f32.mrb[0].mxu0
  %v801 = vadd.f32 0.0, %v800
  %v802 = vpop.f32.mrb[0].mxu0
  %803 = vmatprep.mubr.f32.mxu0 0.0
  %804 = vmatmul.mubr.f32.gmra.mrb[0].mxu0 %v674
  %v805 = vpop.f32.mrb[0].mxu0
  %v806 = vadd.f32 0.0, %v805
  %v807 = vpop.f32.mrb[0].mxu0
  %808 = vmatprep.mubr.f32.mxu0 0.0
  %809 = vmatmul.mubr.f32.gmra.mrb[0].mxu0 %v676
  %v810 = vpop.f32.mrb[0].mxu0
  %v811 = vadd.f32 0.0, %v810
  %v812 = vpop.f32.mrb[0].mxu0
  %813 = vmatprep.mubr.f32.mxu0 0.0
  %814 = vmatmul.mubr.f32.gmra.mrb[0].mxu0 %v678
  %v815 = vpop.f32.mrb[0].mxu0
  %v816 = vadd.f32 0.0, %v815
  %v817 = vpop.f32.mrb[0].mxu0
  %818 = vmatprep.mubr.f32.mxu0 0.0
  %819 = vmatmul.mubr.f32.gmra.mrb[0].mxu0 %v680
  %v820 = vpop.f32.mrb[0].mxu0
  %v821 = vadd.f32 0.0, %v820
  %v822 = vpop.f32.mrb[0].mxu0
  %823 = vmatprep.mubr.f32.mxu0 0.0
  %824 = vmatmul.mubr.f32.gmra.mrb[0].mxu0 %v682
  %v825 = vpop.f32.mrb[0].mxu0
  %v826 = vadd.f32 0.0, %v825
  %v827 = vpop.f32.mrb[0].mxu0
  %828 = vdwg.mxu0
  %v845 = vcombine.high %v751, %v751
  %v847 = vunpack.c.l.s4 1983009808
  %v848 = vunpack.c.0.s8 %v847
  %v849 = vlaneseq
  %v850 = vshrl.u32 %v849, 7
  %v851 = vsub.s32 %v848, %v850
  %v852 = vrot.slane %v751, %v851
  %v854 = vunpack.c.l.s4 1983009808
  %v855 = vunpack.c.0.s8 %v854
  %v856 = vlaneseq
  %v857 = vshrl.u32 %v856, 7
  %v858 = vsub.s32 %v855, %v857
  %v859 = vrot.slane %v845, %v858
  %v860 = vcombine.high %v852, %v852
  %v861 = vcombine.high %v859, %v859
  %v862 = vcombine.high %v756, %v756
  %v864 = vunpack.c.l.s4 1983009808
  %v865 = vunpack.c.0.s8 %v864
  %v866 = vlaneseq
  %v867 = vshrl.u32 %v866, 7
  %v868 = vsub.s32 %v865, %v867
  %v869 = vrot.slane %v756, %v868
  %v871 = vunpack.c.l.s4 1983009808
  %v872 = vunpack.c.0.s8 %v871
  %v873 = vlaneseq
  %v874 = vshrl.u32 %v873, 7
  %v875 = vsub.s32 %v872, %v874
  %v876 = vrot.slane %v862, %v875
  %v877 = vcombine.high %v869, %v869
  %v878 = vcombine.high %v876, %v876
  %v879 = vcombine.high %v761, %v761
  %v881 = vunpack.c.l.s4 1983009808
  %v882 = vunpack.c.0.s8 %v881
  %v883 = vlaneseq
  %v884 = vshrl.u32 %v883, 7
  %v885 = vsub.s32 %v882, %v884
  %v886 = vrot.slane %v761, %v885
  %v888 = vunpack.c.l.s4 1983009808
  %v889 = vunpack.c.0.s8 %v888
  %v890 = vlaneseq
  %v891 = vshrl.u32 %v890, 7
  %v892 = vsub.s32 %v889, %v891
  %v893 = vrot.slane %v879, %v892
  %v894 = vcombine.high %v886, %v886
  %v895 = vcombine.high %v893, %v893
  %v896 = vcombine.high %v766, %v766
  %v898 = vunpack.c.l.s4 1983009808
  %v899 = vunpack.c.0.s8 %v898
  %v900 = vlaneseq
  %v901 = vshrl.u32 %v900, 7
  %v902 = vsub.s32 %v899, %v901
  %v903 = vrot.slane %v766, %v902
  %v905 = vunpack.c.l.s4 1983009808
  %v906 = vunpack.c.0.s8 %v905
  %v907 = vlaneseq
  %v908 = vshrl.u32 %v907, 7
  %v909 = vsub.s32 %v906, %v908
  %v910 = vrot.slane %v896, %v909
  %v911 = vcombine.high %v903, %v903
  %v912 = vcombine.high %v910, %v910
  %v913 = vcombine.high %v771, %v771
  %v915 = vunpack.c.l.s4 1983009808
  %v916 = vunpack.c.0.s8 %v915
  %v917 = vlaneseq
  %v918 = vshrl.u32 %v917, 7
  %v919 = vsub.s32 %v916, %v918
  %v920 = vrot.slane %v771, %v919
  %v922 = vunpack.c.l.s4 1983009808
  %v923 = vunpack.c.0.s8 %v922
  %v924 = vlaneseq
  %v925 = vshrl.u32 %v924, 7
  %v926 = vsub.s32 %v923, %v925
  %v927 = vrot.slane %v913, %v926
  %v928 = vcombine.high %v920, %v920
  %v929 = vcombine.high %v927, %v927
  %v930 = vcombine.high %v776, %v776
  %v932 = vunpack.c.l.s4 1983009808
  %v933 = vunpack.c.0.s8 %v932
  %v934 = vlaneseq
  %v935 = vshrl.u32 %v934, 7
  %v936 = vsub.s32 %v933, %v935
  %v937 = vrot.slane %v776, %v936
  %v939 = vunpack.c.l.s4 1983009808
  %v940 = vunpack.c.0.s8 %v939
  %v941 = vlaneseq
  %v942 = vshrl.u32 %v941, 7
  %v943 = vsub.s32 %v940, %v942
  %v944 = vrot.slane %v930, %v943
  %v945 = vcombine.high %v937, %v937
  %v946 = vcombine.high %v944, %v944
  %v947 = vcombine.high %v781, %v781
  %v949 = vunpack.c.l.s4 1983009808
  %v950 = vunpack.c.0.s8 %v949
  %v951 = vlaneseq
  %v952 = vshrl.u32 %v951, 7
  %v953 = vsub.s32 %v950, %v952
  %v954 = vrot.slane %v781, %v953
  %v956 = vunpack.c.l.s4 1983009808
  %v957 = vunpack.c.0.s8 %v956
  %v958 = vlaneseq
  %v959 = vshrl.u32 %v958, 7
  %v960 = vsub.s32 %v957, %v959
  %v961 = vrot.slane %v947, %v960
  %v962 = vcombine.high %v954, %v954
  %v963 = vcombine.high %v961, %v961
  %v964 = vcombine.high %v786, %v786
  %v966 = vunpack.c.l.s4 1983009808
  %v967 = vunpack.c.0.s8 %v966
  %v968 = vlaneseq
  %v969 = vshrl.u32 %v968, 7
  %v970 = vsub.s32 %v967, %v969
  %v971 = vrot.slane %v786, %v970
  %v973 = vunpack.c.l.s4 1983009808
  %v974 = vunpack.c.0.s8 %v973
  %v975 = vlaneseq
  %v976 = vshrl.u32 %v975, 7
  %v977 = vsub.s32 %v974, %v976
  %v978 = vrot.slane %v964, %v977
  %v979 = vcombine.high %v971, %v971
  %v980 = vcombine.high %v978, %v978
  %v981 = vcombine.high %v791, %v791
  %v983 = vunpack.c.l.s4 1983009808
  %v984 = vunpack.c.0.s8 %v983
  %v985 = vlaneseq
  %v986 = vshrl.u32 %v985, 7
  %v987 = vsub.s32 %v984, %v986
  %v988 = vrot.slane %v791, %v987
  %v990 = vunpack.c.l.s4 1983009808
  %v991 = vunpack.c.0.s8 %v990
  %v992 = vlaneseq
  %v993 = vshrl.u32 %v992, 7
  %v994 = vsub.s32 %v991, %v993
  %v995 = vrot.slane %v981, %v994
  %v996 = vcombine.high %v988, %v988
  %v997 = vcombine.high %v995, %v995
  %v998 = vcombine.high %v796, %v796
  %v1000 = vunpack.c.l.s4 1983009808
  %v1001 = vunpack.c.0.s8 %v1000
  %v1002 = vlaneseq
  %v1003 = vshrl.u32 %v1002, 7
  %v1004 = vsub.s32 %v1001, %v1003
  %v1005 = vrot.slane %v796, %v1004
  %v1007 = vunpack.c.l.s4 1983009808
  %v1008 = vunpack.c.0.s8 %v1007
  %v1009 = vlaneseq
  %v1010 = vshrl.u32 %v1009, 7
  %v1011 = vsub.s32 %v1008, %v1010
  %v1012 = vrot.slane %v998, %v1011
  %v1013 = vcombine.high %v1005, %v1005
  %v1014 = vcombine.high %v1012, %v1012
  %v1015 = vcombine.high %v801, %v801
  %v1017 = vunpack.c.l.s4 1983009808
  %v1018 = vunpack.c.0.s8 %v1017
  %v1019 = vlaneseq
  %v1020 = vshrl.u32 %v1019, 7
  %v1021 = vsub.s32 %v1018, %v1020
  %v1022 = vrot.slane %v801, %v1021
  %v1024 = vunpack.c.l.s4 1983009808
  %v1025 = vunpack.c.0.s8 %v1024
  %v1026 = vlaneseq
  %v1027 = vshrl.u32 %v1026, 7
  %v1028 = vsub.s32 %v1025, %v1027
  %v1029 = vrot.slane %v1015, %v1028
  %v1030 = vcombine.high %v1022, %v1022
  %v1031 = vcombine.high %v1029, %v1029
  %v1032 = vcombine.high %v806, %v806
  %v1034 = vunpack.c.l.s4 1983009808
  %v1035 = vunpack.c.0.s8 %v1034
  %v1036 = vlaneseq
  %v1037 = vshrl.u32 %v1036, 7
  %v1038 = vsub.s32 %v1035, %v1037
  %v1039 = vrot.slane %v806, %v1038
  %v1041 = vunpack.c.l.s4 1983009808
  %v1042 = vunpack.c.0.s8 %v1041
  %v1043 = vlaneseq
  %v1044 = vshrl.u32 %v1043, 7
  %v1045 = vsub.s32 %v1042, %v1044
  %v1046 = vrot.slane %v1032, %v1045
  %v1047 = vcombine.high %v1039, %v1039
  %v1048 = vcombine.high %v1046, %v1046
  %v1049 = vcombine.high %v811, %v811
  %v1051 = vunpack.c.l.s4 1983009808
  %v1052 = vunpack.c.0.s8 %v1051
  %v1053 = vlaneseq
  %v1054 = vshrl.u32 %v1053, 7
  %v1055 = vsub.s32 %v1052, %v1054
  %v1056 = vrot.slane %v811, %v1055
  %v1058 = vunpack.c.l.s4 1983009808
  %v1059 = vunpack.c.0.s8 %v1058
  %v1060 = vlaneseq
  %v1061 = vshrl.u32 %v1060, 7
  %v1062 = vsub.s32 %v1059, %v1061
  %v1063 = vrot.slane %v1049, %v1062
  %v1064 = vcombine.high %v1056, %v1056
  %v1065 = vcombine.high %v1063, %v1063
  %v1066 = vcombine.high %v816, %v816
  %v1068 = vunpack.c.l.s4 1983009808
  %v1069 = vunpack.c.0.s8 %v1068
  %v1070 = vlaneseq
  %v1071 = vshrl.u32 %v1070, 7
  %v1072 = vsub.s32 %v1069, %v1071
  %v1073 = vrot.slane %v816, %v1072
  %v1075 = vunpack.c.l.s4 1983009808
  %v1076 = vunpack.c.0.s8 %v1075
  %v1077 = vlaneseq
  %v1078 = vshrl.u32 %v1077, 7
  %v1079 = vsub.s32 %v1076, %v1078
  %v1080 = vrot.slane %v1066, %v1079
  %v1081 = vcombine.high %v1073, %v1073
  %v1082 = vcombine.high %v1080, %v1080
  %v1083 = vcombine.high %v821, %v821
  %v1085 = vunpack.c.l.s4 1983009808
  %v1086 = vunpack.c.0.s8 %v1085
  %v1087 = vlaneseq
  %v1088 = vshrl.u32 %v1087, 7
  %v1089 = vsub.s32 %v1086, %v1088
  %v1090 = vrot.slane %v821, %v1089
  %v1092 = vunpack.c.l.s4 1983009808
  %v1093 = vunpack.c.0.s8 %v1092
  %v1094 = vlaneseq
  %v1095 = vshrl.u32 %v1094, 7
  %v1096 = vsub.s32 %v1093, %v1095
  %v1097 = vrot.slane %v1083, %v1096
  %v1098 = vcombine.high %v1090, %v1090
  %v1099 = vcombine.high %v1097, %v1097
  %v1100 = vcombine.high %v826, %v826
  %v1102 = vunpack.c.l.s4 1983009808
  %v1103 = vunpack.c.0.s8 %v1102
  %v1104 = vlaneseq
  %v1105 = vshrl.u32 %v1104, 7
  %v1106 = vsub.s32 %v1103, %v1105
  %v1107 = vrot.slane %v826, %v1106
  %v1109 = vunpack.c.l.s4 1983009808
  %v1110 = vunpack.c.0.s8 %v1109
  %v1111 = vlaneseq
  %v1112 = vshrl.u32 %v1111, 7
  %v1113 = vsub.s32 %v1110, %v1112
  %v1114 = vrot.slane %v1100, %v1113
  %v1115 = vcombine.high %v1107, %v1107
  %v1116 = vcombine.high %v1114, %v1114
  %vm1181 = vcmask 58368
  %v1182 = vsel %vm1181, %v852, -inf
  %v1183 = vsel %vm1181, %v860, -inf
  %v1184 = vmax.f32 %v1182, %v1183
  %v1185 = vsel %vm1181, %v859, -inf
  %v1186 = vmax.f32 %v1184, %v1185
  %v1187 = vsel %vm1181, %v861, -inf
  %v1188 = vmax.f32 %v1186, %v1187
  %v1189 = vsel %vm1181, %v869, -inf
  %v1190 = vmax.f32 %v1188, %v1189
  %v1191 = vsel %vm1181, %v877, -inf
  %v1192 = vmax.f32 %v1190, %v1191
  %v1193 = vsel %vm1181, %v876, -inf
  %v1194 = vmax.f32 %v1192, %v1193
  %v1195 = vsel %vm1181, %v878, -inf
  %v1196 = vmax.f32 %v1194, %v1195
  %v1197 = vsel %vm1181, %v886, -inf
  %v1198 = vsel %vm1181, %v894, -inf
  %v1199 = vmax.f32 %v1197, %v1198
  %v1200 = vsel %vm1181, %v893, -inf
  %v1201 = vmax.f32 %v1199, %v1200
  %v1202 = vsel %vm1181, %v895, -inf
  %v1203 = vmax.f32 %v1201, %v1202
  %v1204 = vsel %vm1181, %v903, -inf
  %v1205 = vmax.f32 %v1203, %v1204
  %v1206 = vsel %vm1181, %v911, -inf
  %v1207 = vmax.f32 %v1205, %v1206
  %v1208 = vsel %vm1181, %v910, -inf
  %v1209 = vmax.f32 %v1207, %v1208
  %v1210 = vsel %vm1181, %v912, -inf
  %v1211 = vmax.f32 %v1209, %v1210
  %v1212 = vsel %vm1181, %v920, -inf
  %v1213 = vsel %vm1181, %v928, -inf
  %v1214 = vmax.f32 %v1212, %v1213
  %v1215 = vsel %vm1181, %v927, -inf
  %v1216 = vmax.f32 %v1214, %v1215
  %v1217 = vsel %vm1181, %v929, -inf
  %v1218 = vmax.f32 %v1216, %v1217
  %v1219 = vsel %vm1181, %v937, -inf
  %v1220 = vmax.f32 %v1218, %v1219
  %v1221 = vsel %vm1181, %v945, -inf
  %v1222 = vmax.f32 %v1220, %v1221
  %v1223 = vsel %vm1181, %v944, -inf
  %v1224 = vmax.f32 %v1222, %v1223
  %v1225 = vsel %vm1181, %v946, -inf
  %v1226 = vmax.f32 %v1224, %v1225
  %v1227 = vsel %vm1181, %v954, -inf
  %v1228 = vsel %vm1181, %v962, -inf
  %v1229 = vmax.f32 %v1227, %v1228
  %v1230 = vsel %vm1181, %v961, -inf
  %v1231 = vmax.f32 %v1229, %v1230
  %v1232 = vsel %vm1181, %v963, -inf
  %v1233 = vmax.f32 %v1231, %v1232
  %v1234 = vsel %vm1181, %v971, -inf
  %v1235 = vmax.f32 %v1233, %v1234
  %v1236 = vsel %vm1181, %v979, -inf
  %v1237 = vmax.f32 %v1235, %v1236
  %v1238 = vsel %vm1181, %v978, -inf
  %v1239 = vmax.f32 %v1237, %v1238
  %v1240 = vsel %vm1181, %v980, -inf
  %v1241 = vmax.f32 %v1239, %v1240
  %v1242 = vsel %vm1181, %v988, -inf
  %v1243 = vsel %vm1181, %v996, -inf
  %v1244 = vmax.f32 %v1242, %v1243
  %v1245 = vsel %vm1181, %v995, -inf
  %v1246 = vmax.f32 %v1244, %v1245
  %v1247 = vsel %vm1181, %v997, -inf
  %v1248 = vmax.f32 %v1246, %v1247
  %v1249 = vsel %vm1181, %v1005, -inf
  %v1250 = vmax.f32 %v1248, %v1249
  %v1251 = vsel %vm1181, %v1013, -inf
  %v1252 = vmax.f32 %v1250, %v1251
  %v1253 = vsel %vm1181, %v1012, -inf
  %v1254 = vmax.f32 %v1252, %v1253
  %v1255 = vsel %vm1181, %v1014, -inf
  %v1256 = vmax.f32 %v1254, %v1255
  %v1257 = vsel %vm1181, %v1022, -inf
  %v1258 = vsel %vm1181, %v1030, -inf
  %v1259 = vmax.f32 %v1257, %v1258
  %v1260 = vsel %vm1181, %v1029, -inf
  %v1261 = vmax.f32 %v1259, %v1260
  %v1262 = vsel %vm1181, %v1031, -inf
  %v1263 = vmax.f32 %v1261, %v1262
  %v1264 = vsel %vm1181, %v1039, -inf
  %v1265 = vmax.f32 %v1263, %v1264
  %v1266 = vsel %vm1181, %v1047, -inf
  %v1267 = vmax.f32 %v1265, %v1266
  %v1268 = vsel %vm1181, %v1046, -inf
  %v1269 = vmax.f32 %v1267, %v1268
  %v1270 = vsel %vm1181, %v1048, -inf
  %v1271 = vmax.f32 %v1269, %v1270
  %v1272 = vsel %vm1181, %v1056, -inf
  %v1273 = vsel %vm1181, %v1064, -inf
  %v1274 = vmax.f32 %v1272, %v1273
  %v1275 = vsel %vm1181, %v1063, -inf
  %v1276 = vmax.f32 %v1274, %v1275
  %v1277 = vsel %vm1181, %v1065, -inf
  %v1278 = vmax.f32 %v1276, %v1277
  %v1279 = vsel %vm1181, %v1073, -inf
  %v1280 = vmax.f32 %v1278, %v1279
  %v1281 = vsel %vm1181, %v1081, -inf
  %v1282 = vmax.f32 %v1280, %v1281
  %v1283 = vsel %vm1181, %v1080, -inf
  %v1284 = vmax.f32 %v1282, %v1283
  %v1285 = vsel %vm1181, %v1082, -inf
  %v1286 = vmax.f32 %v1284, %v1285
  %v1287 = vsel %vm1181, %v1090, -inf
  %v1288 = vsel %vm1181, %v1098, -inf
  %v1289 = vmax.f32 %v1287, %v1288
  %v1290 = vsel %vm1181, %v1097, -inf
  %v1291 = vmax.f32 %v1289, %v1290
  %v1292 = vsel %vm1181, %v1099, -inf
  %v1293 = vmax.f32 %v1291, %v1292
  %v1294 = vsel %vm1181, %v1107, -inf
  %v1295 = vmax.f32 %v1293, %v1294
  %v1296 = vsel %vm1181, %v1115, -inf
  %v1297 = vmax.f32 %v1295, %v1296
  %v1298 = vsel %vm1181, %v1114, -inf
  %v1299 = vmax.f32 %v1297, %v1298
  %v1300 = vsel %vm1181, %v1116, -inf
  %v1301 = vmax.f32 %v1299, %v1300
  %v1302 = vsub.f32 %v852, %v1196
  %v1303 = vsub.f32 %v860, %v1196
  %v1304 = vsub.f32 %v859, %v1196
  %v1305 = vsub.f32 %v861, %v1196
  %v1306 = vsub.f32 %v869, %v1196
  %v1307 = vsub.f32 %v877, %v1196
  %v1308 = vsub.f32 %v876, %v1196
  %v1309 = vsub.f32 %v878, %v1196
  %v1310 = vsub.f32 %v886, %v1211
  %v1311 = vsub.f32 %v894, %v1211
  %v1312 = vsub.f32 %v893, %v1211
  %v1313 = vsub.f32 %v895, %v1211
  %v1314 = vsub.f32 %v903, %v1211
  %v1315 = vsub.f32 %v911, %v1211
  %v1316 = vsub.f32 %v910, %v1211
  %v1317 = vsub.f32 %v912, %v1211
  %v1318 = vsub.f32 %v920, %v1226
  %v1319 = vsub.f32 %v928, %v1226
  %v1320 = vsub.f32 %v927, %v1226
  %v1321 = vsub.f32 %v929, %v1226
  %v1322 = vsub.f32 %v937, %v1226
  %v1323 = vsub.f32 %v945, %v1226
  %v1324 = vsub.f32 %v944, %v1226
  %v1325 = vsub.f32 %v946, %v1226
  %v1326 = vsub.f32 %v954, %v1241
  %v1327 = vsub.f32 %v962, %v1241
  %v1328 = vsub.f32 %v961, %v1241
  %v1329 = vsub.f32 %v963, %v1241
  %v1330 = vsub.f32 %v971, %v1241
  %v1331 = vsub.f32 %v979, %v1241
  %v1332 = vsub.f32 %v978, %v1241
  %v1333 = vsub.f32 %v980, %v1241
  %v1334 = vsub.f32 %v988, %v1256
  %v1335 = vsub.f32 %v996, %v1256
  %v1336 = vsub.f32 %v995, %v1256
  %v1337 = vsub.f32 %v997, %v1256
  %v1338 = vsub.f32 %v1005, %v1256
  %v1339 = vsub.f32 %v1013, %v1256
  %v1340 = vsub.f32 %v1012, %v1256
  %v1341 = vsub.f32 %v1014, %v1256
  %v1342 = vsub.f32 %v1022, %v1271
  %v1343 = vsub.f32 %v1030, %v1271
  %v1344 = vsub.f32 %v1029, %v1271
  %v1345 = vsub.f32 %v1031, %v1271
  %v1346 = vsub.f32 %v1039, %v1271
  %v1347 = vsub.f32 %v1047, %v1271
  %v1348 = vsub.f32 %v1046, %v1271
  %v1349 = vsub.f32 %v1048, %v1271
  %v1350 = vsub.f32 %v1056, %v1286
  %v1351 = vsub.f32 %v1064, %v1286
  %v1352 = vsub.f32 %v1063, %v1286
  %v1353 = vsub.f32 %v1065, %v1286
  %v1354 = vsub.f32 %v1073, %v1286
  %v1355 = vsub.f32 %v1081, %v1286
  %v1356 = vsub.f32 %v1080, %v1286
  %v1357 = vsub.f32 %v1082, %v1286
  %v1358 = vsub.f32 %v1090, %v1301
  %v1359 = vsub.f32 %v1098, %v1301
  %v1360 = vsub.f32 %v1097, %v1301
  %v1361 = vsub.f32 %v1099, %v1301
  %v1362 = vsub.f32 %v1107, %v1301
  %v1363 = vsub.f32 %v1115, %v1301
  %v1364 = vsub.f32 %v1114, %v1301
  %v1365 = vsub.f32 %v1116, %v1301
  %v1366 = vmul.f32 %v1302, 1.442695
  %v1367 = vpow.pop %v1366
  %v1368 = vmul.f32 %v1303, 1.442695
  %v1369 = vpow.pop %v1368
  %v1370 = vmul.f32 %v1304, 1.442695
  %v1371 = vpow.pop %v1370
  %v1372 = vmul.f32 %v1305, 1.442695
  %v1373 = vpow.pop %v1372
  %v1374 = vmul.f32 %v1306, 1.442695
  %v1375 = vpow.pop %v1374
  %v1376 = vmul.f32 %v1307, 1.442695
  %v1377 = vpow.pop %v1376
  %v1378 = vmul.f32 %v1308, 1.442695
  %v1379 = vpow.pop %v1378
  %v1380 = vmul.f32 %v1309, 1.442695
  %v1381 = vpow.pop %v1380
  %v1382 = vmul.f32 %v1310, 1.442695
  %v1383 = vpow.pop %v1382
  %v1384 = vmul.f32 %v1311, 1.442695
  %v1385 = vpow.pop %v1384
  %v1386 = vmul.f32 %v1312, 1.442695
  %v1387 = vpow.pop %v1386
  %v1388 = vmul.f32 %v1313, 1.442695
  %v1389 = vpow.pop %v1388
  %v1390 = vmul.f32 %v1314, 1.442695
  %v1391 = vpow.pop %v1390
  %v1392 = vmul.f32 %v1315, 1.442695
  %v1393 = vpow.pop %v1392
  %v1394 = vmul.f32 %v1316, 1.442695
  %v1395 = vpow.pop %v1394
  %v1396 = vmul.f32 %v1317, 1.442695
  %v1397 = vpow.pop %v1396
  %v1398 = vmul.f32 %v1318, 1.442695
  %v1399 = vpow.pop %v1398
  %v1400 = vmul.f32 %v1319, 1.442695
  %v1401 = vpow.pop %v1400
  %v1402 = vmul.f32 %v1320, 1.442695
  %v1403 = vpow.pop %v1402
  %v1404 = vmul.f32 %v1321, 1.442695
  %v1405 = vpow.pop %v1404
  %v1406 = vmul.f32 %v1322, 1.442695
  %v1407 = vpow.pop %v1406
  %v1408 = vmul.f32 %v1323, 1.442695
  %v1409 = vpow.pop %v1408
  %v1410 = vmul.f32 %v1324, 1.442695
  %v1411 = vpow.pop %v1410
  %v1412 = vmul.f32 %v1325, 1.442695
  %v1413 = vpow.pop %v1412
  %v1414 = vmul.f32 %v1326, 1.442695
  %v1415 = vpow.pop %v1414
  %v1416 = vmul.f32 %v1327, 1.442695
  %v1417 = vpow.pop %v1416
  %v1418 = vmul.f32 %v1328, 1.442695
  %v1419 = vpow.pop %v1418
  %v1420 = vmul.f32 %v1329, 1.442695
  %v1421 = vpow.pop %v1420
  %v1422 = vmul.f32 %v1330, 1.442695
  %v1423 = vpow.pop %v1422
  %v1424 = vmul.f32 %v1331, 1.442695
  %v1425 = vpow.pop %v1424
  %v1426 = vmul.f32 %v1332, 1.442695
  %v1427 = vpow.pop %v1426
  %v1428 = vmul.f32 %v1333, 1.442695
  %v1429 = vpow.pop %v1428
  %v1430 = vmul.f32 %v1334, 1.442695
  %v1431 = vpow.pop %v1430
  %v1432 = vmul.f32 %v1335, 1.442695
  %v1433 = vpow.pop %v1432
  %v1434 = vmul.f32 %v1336, 1.442695
  %v1435 = vpow.pop %v1434
  %v1436 = vmul.f32 %v1337, 1.442695
  %v1437 = vpow.pop %v1436
  %v1438 = vmul.f32 %v1338, 1.442695
  %v1439 = vpow.pop %v1438
  %v1440 = vmul.f32 %v1339, 1.442695
  %v1441 = vpow.pop %v1440
  %v1442 = vmul.f32 %v1340, 1.442695
  %v1443 = vpow.pop %v1442
  %v1444 = vmul.f32 %v1341, 1.442695
  %v1445 = vpow.pop %v1444
  %v1446 = vmul.f32 %v1342, 1.442695
  %v1447 = vpow.pop %v1446
  %v1448 = vmul.f32 %v1343, 1.442695
  %v1449 = vpow.pop %v1448
  %v1450 = vmul.f32 %v1344, 1.442695
  %v1451 = vpow.pop %v1450
  %v1452 = vmul.f32 %v1345, 1.442695
  %v1453 = vpow.pop %v1452
  %v1454 = vmul.f32 %v1346, 1.442695
  %v1455 = vpow.pop %v1454
  %v1456 = vmul.f32 %v1347, 1.442695
  %v1457 = vpow.pop %v1456
  %v1458 = vmul.f32 %v1348, 1.442695
  %v1459 = vpow.pop %v1458
  %v1460 = vmul.f32 %v1349, 1.442695
  %v1461 = vpow.pop %v1460
  %v1462 = vmul.f32 %v1350, 1.442695
  %v1463 = vpow.pop %v1462
  %v1464 = vmul.f32 %v1351, 1.442695
  %v1465 = vpow.pop %v1464
  %v1466 = vmul.f32 %v1352, 1.442695
  %v1467 = vpow.pop %v1466
  %v1468 = vmul.f32 %v1353, 1.442695
  %v1469 = vpow.pop %v1468
  %v1470 = vmul.f32 %v1354, 1.442695
  %v1471 = vpow.pop %v1470
  %v1472 = vmul.f32 %v1355, 1.442695
  %v1473 = vpow.pop %v1472
  %v1474 = vmul.f32 %v1356, 1.442695
  %v1475 = vpow.pop %v1474
  %v1476 = vmul.f32 %v1357, 1.442695
  %v1477 = vpow.pop %v1476
  %v1478 = vmul.f32 %v1358, 1.442695
  %v1479 = vpow.pop %v1478
  %v1480 = vmul.f32 %v1359, 1.442695
  %v1481 = vpow.pop %v1480
  %v1482 = vmul.f32 %v1360, 1.442695
  %v1483 = vpow.pop %v1482
  %v1484 = vmul.f32 %v1361, 1.442695
  %v1485 = vpow.pop %v1484
  %v1486 = vmul.f32 %v1362, 1.442695
  %v1487 = vpow.pop %v1486
  %v1488 = vmul.f32 %v1363, 1.442695
  %v1489 = vpow.pop %v1488
  %v1490 = vmul.f32 %v1364, 1.442695
  %v1491 = vpow.pop %v1490
  %v1492 = vmul.f32 %v1365, 1.442695
  %v1493 = vpow.pop %v1492
  %v1494 = vsel %vm1181, %v1367, 0.0
  %v1495 = vsel %vm1181, %v1369, 0.0
  %v1496 = vadd.f32 %v1494, %v1495
  %v1497 = vsel %vm1181, %v1371, 0.0
  %v1498 = vadd.f32 %v1496, %v1497
  %v1499 = vsel %vm1181, %v1373, 0.0
  %v1500 = vadd.f32 %v1498, %v1499
  %v1501 = vsel %vm1181, %v1375, 0.0
  %v1502 = vadd.f32 %v1500, %v1501
  %v1503 = vsel %vm1181, %v1377, 0.0
  %v1504 = vadd.f32 %v1502, %v1503
  %v1505 = vsel %vm1181, %v1379, 0.0
  %v1506 = vadd.f32 %v1504, %v1505
  %v1507 = vsel %vm1181, %v1381, 0.0
  %v1508 = vadd.f32 %v1506, %v1507
  %v1509 = vsel %vm1181, %v1383, 0.0
  %v1510 = vsel %vm1181, %v1385, 0.0
  %v1511 = vadd.f32 %v1509, %v1510
  %v1512 = vsel %vm1181, %v1387, 0.0
  %v1513 = vadd.f32 %v1511, %v1512
  %v1514 = vsel %vm1181, %v1389, 0.0
  %v1515 = vadd.f32 %v1513, %v1514
  %v1516 = vsel %vm1181, %v1391, 0.0
  %v1517 = vadd.f32 %v1515, %v1516
  %v1518 = vsel %vm1181, %v1393, 0.0
  %v1519 = vadd.f32 %v1517, %v1518
  %v1520 = vsel %vm1181, %v1395, 0.0
  %v1521 = vadd.f32 %v1519, %v1520
  %v1522 = vsel %vm1181, %v1397, 0.0
  %v1523 = vadd.f32 %v1521, %v1522
  %v1524 = vsel %vm1181, %v1399, 0.0
  %v1525 = vsel %vm1181, %v1401, 0.0
  %v1526 = vadd.f32 %v1524, %v1525
  %v1527 = vsel %vm1181, %v1403, 0.0
  %v1528 = vadd.f32 %v1526, %v1527
  %v1529 = vsel %vm1181, %v1405, 0.0
  %v1530 = vadd.f32 %v1528, %v1529
  %v1531 = vsel %vm1181, %v1407, 0.0
  %v1532 = vadd.f32 %v1530, %v1531
  %v1533 = vsel %vm1181, %v1409, 0.0
  %v1534 = vadd.f32 %v1532, %v1533
  %v1535 = vsel %vm1181, %v1411, 0.0
  %v1536 = vadd.f32 %v1534, %v1535
  %v1537 = vsel %vm1181, %v1413, 0.0
  %v1538 = vadd.f32 %v1536, %v1537
  %v1539 = vsel %vm1181, %v1415, 0.0
  %v1540 = vsel %vm1181, %v1417, 0.0
  %v1541 = vadd.f32 %v1539, %v1540
  %v1542 = vsel %vm1181, %v1419, 0.0
  %v1543 = vadd.f32 %v1541, %v1542
  %v1544 = vsel %vm1181, %v1421, 0.0
  %v1545 = vadd.f32 %v1543, %v1544
  %v1546 = vsel %vm1181, %v1423, 0.0
  %v1547 = vadd.f32 %v1545, %v1546
  %v1548 = vsel %vm1181, %v1425, 0.0
  %v1549 = vadd.f32 %v1547, %v1548
  %v1550 = vsel %vm1181, %v1427, 0.0
  %v1551 = vadd.f32 %v1549, %v1550
  %v1552 = vsel %vm1181, %v1429, 0.0
  %v1553 = vadd.f32 %v1551, %v1552
  %v1554 = vsel %vm1181, %v1431, 0.0
  %v1555 = vsel %vm1181, %v1433, 0.0
  %v1556 = vadd.f32 %v1554, %v1555
  %v1557 = vsel %vm1181, %v1435, 0.0
  %v1558 = vadd.f32 %v1556, %v1557
  %v1559 = vsel %vm1181, %v1437, 0.0
  %v1560 = vadd.f32 %v1558, %v1559
  %v1561 = vsel %vm1181, %v1439, 0.0
  %v1562 = vadd.f32 %v1560, %v1561
  %v1563 = vsel %vm1181, %v1441, 0.0
  %v1564 = vadd.f32 %v1562, %v1563
  %v1565 = vsel %vm1181, %v1443, 0.0
  %v1566 = vadd.f32 %v1564, %v1565
  %v1567 = vsel %vm1181, %v1445, 0.0
  %v1568 = vadd.f32 %v1566, %v1567
  %v1569 = vsel %vm1181, %v1447, 0.0
  %v1570 = vsel %vm1181, %v1449, 0.0
  %v1571 = vadd.f32 %v1569, %v1570
  %v1572 = vsel %vm1181, %v1451, 0.0
  %v1573 = vadd.f32 %v1571, %v1572
  %v1574 = vsel %vm1181, %v1453, 0.0
  %v1575 = vadd.f32 %v1573, %v1574
  %v1576 = vsel %vm1181, %v1455, 0.0
  %v1577 = vadd.f32 %v1575, %v1576
  %v1578 = vsel %vm1181, %v1457, 0.0
  %v1579 = vadd.f32 %v1577, %v1578
  %v1580 = vsel %vm1181, %v1459, 0.0
  %v1581 = vadd.f32 %v1579, %v1580
  %v1582 = vsel %vm1181, %v1461, 0.0
  %v1583 = vadd.f32 %v1581, %v1582
  %v1584 = vsel %vm1181, %v1463, 0.0
  %v1585 = vsel %vm1181, %v1465, 0.0
  %v1586 = vadd.f32 %v1584, %v1585
  %v1587 = vsel %vm1181, %v1467, 0.0
  %v1588 = vadd.f32 %v1586, %v1587
  %v1589 = vsel %vm1181, %v1469, 0.0
  %v1590 = vadd.f32 %v1588, %v1589
  %v1591 = vsel %vm1181, %v1471, 0.0
  %v1592 = vadd.f32 %v1590, %v1591
  %v1593 = vsel %vm1181, %v1473, 0.0
  %v1594 = vadd.f32 %v1592, %v1593
  %v1595 = vsel %vm1181, %v1475, 0.0
  %v1596 = vadd.f32 %v1594, %v1595
  %v1597 = vsel %vm1181, %v1477, 0.0
  %v1598 = vadd.f32 %v1596, %v1597
  %v1599 = vsel %vm1181, %v1479, 0.0
  %v1600 = vsel %vm1181, %v1481, 0.0
  %v1601 = vadd.f32 %v1599, %v1600
  %v1602 = vsel %vm1181, %v1483, 0.0
  %v1603 = vadd.f32 %v1601, %v1602
  %v1604 = vsel %vm1181, %v1485, 0.0
  %v1605 = vadd.f32 %v1603, %v1604
  %v1606 = vsel %vm1181, %v1487, 0.0
  %v1607 = vadd.f32 %v1605, %v1606
  %v1608 = vsel %vm1181, %v1489, 0.0
  %v1609 = vadd.f32 %v1607, %v1608
  %v1610 = vsel %vm1181, %v1491, 0.0
  %v1611 = vadd.f32 %v1609, %v1610
  %v1612 = vsel %vm1181, %v1493, 0.0
  %v1613 = vadd.f32 %v1611, %v1612
  %v1614 = vrcp.pop %v1508
  %v1615 = vrcp.pop %v1523
  %v1616 = vrcp.pop %v1538
  %v1617 = vrcp.pop %v1553
  %v1618 = vrcp.pop %v1568
  %v1619 = vrcp.pop %v1583
  %v1620 = vrcp.pop %v1598
  %v1621 = vrcp.pop %v1613
  %v1622 = vmul.f32 %v1367, %v1614
  %v1623 = vmul.f32 %v1369, %v1614
  %v1624 = vmul.f32 %v1371, %v1614
  %v1625 = vmul.f32 %v1373, %v1614
  %v1626 = vmul.f32 %v1375, %v1614
  %v1627 = vmul.f32 %v1377, %v1614
  %v1628 = vmul.f32 %v1379, %v1614
  %v1629 = vmul.f32 %v1381, %v1614
  %v1630 = vmul.f32 %v1383, %v1615
  %v1631 = vmul.f32 %v1385, %v1615
  %v1632 = vmul.f32 %v1387, %v1615
  %v1633 = vmul.f32 %v1389, %v1615
  %v1634 = vmul.f32 %v1391, %v1615
  %v1635 = vmul.f32 %v1393, %v1615
  %v1636 = vmul.f32 %v1395, %v1615
  %v1637 = vmul.f32 %v1397, %v1615
  %v1638 = vmul.f32 %v1399, %v1616
  %v1639 = vmul.f32 %v1401, %v1616
  %v1640 = vmul.f32 %v1403, %v1616
  %v1641 = vmul.f32 %v1405, %v1616
  %v1642 = vmul.f32 %v1407, %v1616
  %v1643 = vmul.f32 %v1409, %v1616
  %v1644 = vmul.f32 %v1411, %v1616
  %v1645 = vmul.f32 %v1413, %v1616
  %v1646 = vmul.f32 %v1415, %v1617
  %v1647 = vmul.f32 %v1417, %v1617
  %v1648 = vmul.f32 %v1419, %v1617
  %v1649 = vmul.f32 %v1421, %v1617
  %v1650 = vmul.f32 %v1423, %v1617
  %v1651 = vmul.f32 %v1425, %v1617
  %v1652 = vmul.f32 %v1427, %v1617
  %v1653 = vmul.f32 %v1429, %v1617
  %v1654 = vmul.f32 %v1431, %v1618
  %v1655 = vmul.f32 %v1433, %v1618
  %v1656 = vmul.f32 %v1435, %v1618
  %v1657 = vmul.f32 %v1437, %v1618
  %v1658 = vmul.f32 %v1439, %v1618
  %v1659 = vmul.f32 %v1441, %v1618
  %v1660 = vmul.f32 %v1443, %v1618
  %v1661 = vmul.f32 %v1445, %v1618
  %v1662 = vmul.f32 %v1447, %v1619
  %v1663 = vmul.f32 %v1449, %v1619
  %v1664 = vmul.f32 %v1451, %v1619
  %v1665 = vmul.f32 %v1453, %v1619
  %v1666 = vmul.f32 %v1455, %v1619
  %v1667 = vmul.f32 %v1457, %v1619
  %v1668 = vmul.f32 %v1459, %v1619
  %v1669 = vmul.f32 %v1461, %v1619
  %v1670 = vmul.f32 %v1463, %v1620
  %v1671 = vmul.f32 %v1465, %v1620
  %v1672 = vmul.f32 %v1467, %v1620
  %v1673 = vmul.f32 %v1469, %v1620
  %v1674 = vmul.f32 %v1471, %v1620
  %v1675 = vmul.f32 %v1473, %v1620
  %v1676 = vmul.f32 %v1475, %v1620
  %v1677 = vmul.f32 %v1477, %v1620
  %v1678 = vmul.f32 %v1479, %v1621
  %v1679 = vmul.f32 %v1481, %v1621
  %v1680 = vmul.f32 %v1483, %v1621
  %v1681 = vmul.f32 %v1485, %v1621
  %v1682 = vmul.f32 %v1487, %v1621
  %v1683 = vmul.f32 %v1489, %v1621
  %v1684 = vmul.f32 %v1491, %v1621
  %v1685 = vmul.f32 %v1493, %v1621
  %v1686 = vld [vmem:[%s4] sm:$0xff]
  %v1751 = vcombine.low %v1622, %v1623
  %v1752 = vcombine.low %v1624, %v1625
  %v1754 = vunpack.c.l.s4 1983009808
  %v1755 = vunpack.c.0.s8 %v1754
  %v1756 = vlaneseq
  %v1757 = vshrl.u32 %v1756, 7
  %v1758 = vsub.s32 %v1755, %v1757
  %v1759 = vrot.slane %v1751, %v1758
  %v1761 = vunpack.c.l.s4 1983009808
  %v1762 = vunpack.c.0.s8 %v1761
  %v1763 = vlaneseq
  %v1764 = vshrl.u32 %v1763, 7
  %v1765 = vsub.s32 %v1762, %v1764
  %v1766 = vrot.slane %v1752, %v1765
  %v1767 = vcombine.low %v1759, %v1766
  %v1768 = vcombine.low %v1626, %v1627
  %v1769 = vcombine.low %v1628, %v1629
  %v1771 = vunpack.c.l.s4 1983009808
  %v1772 = vunpack.c.0.s8 %v1771
  %v1773 = vlaneseq
  %v1774 = vshrl.u32 %v1773, 7
  %v1775 = vsub.s32 %v1772, %v1774
  %v1776 = vrot.slane %v1768, %v1775
  %v1778 = vunpack.c.l.s4 1983009808
  %v1779 = vunpack.c.0.s8 %v1778
  %v1780 = vlaneseq
  %v1781 = vshrl.u32 %v1780, 7
  %v1782 = vsub.s32 %v1779, %v1781
  %v1783 = vrot.slane %v1769, %v1782
  %v1784 = vcombine.low %v1776, %v1783
  %v1785 = vcombine.low %v1630, %v1631
  %v1786 = vcombine.low %v1632, %v1633
  %v1788 = vunpack.c.l.s4 1983009808
  %v1789 = vunpack.c.0.s8 %v1788
  %v1790 = vlaneseq
  %v1791 = vshrl.u32 %v1790, 7
  %v1792 = vsub.s32 %v1789, %v1791
  %v1793 = vrot.slane %v1785, %v1792
  %v1795 = vunpack.c.l.s4 1983009808
  %v1796 = vunpack.c.0.s8 %v1795
  %v1797 = vlaneseq
  %v1798 = vshrl.u32 %v1797, 7
  %v1799 = vsub.s32 %v1796, %v1798
  %v1800 = vrot.slane %v1786, %v1799
  %v1801 = vcombine.low %v1793, %v1800
  %v1802 = vcombine.low %v1634, %v1635
  %v1803 = vcombine.low %v1636, %v1637
  %v1805 = vunpack.c.l.s4 1983009808
  %v1806 = vunpack.c.0.s8 %v1805
  %v1807 = vlaneseq
  %v1808 = vshrl.u32 %v1807, 7
  %v1809 = vsub.s32 %v1806, %v1808
  %v1810 = vrot.slane %v1802, %v1809
  %v1812 = vunpack.c.l.s4 1983009808
  %v1813 = vunpack.c.0.s8 %v1812
  %v1814 = vlaneseq
  %v1815 = vshrl.u32 %v1814, 7
  %v1816 = vsub.s32 %v1813, %v1815
  %v1817 = vrot.slane %v1803, %v1816
  %v1818 = vcombine.low %v1810, %v1817
  %v1819 = vcombine.low %v1638, %v1639
  %v1820 = vcombine.low %v1640, %v1641
  %v1822 = vunpack.c.l.s4 1983009808
  %v1823 = vunpack.c.0.s8 %v1822
  %v1824 = vlaneseq
  %v1825 = vshrl.u32 %v1824, 7
  %v1826 = vsub.s32 %v1823, %v1825
  %v1827 = vrot.slane %v1819, %v1826
  %v1829 = vunpack.c.l.s4 1983009808
  %v1830 = vunpack.c.0.s8 %v1829
  %v1831 = vlaneseq
  %v1832 = vshrl.u32 %v1831, 7
  %v1833 = vsub.s32 %v1830, %v1832
  %v1834 = vrot.slane %v1820, %v1833
  %v1835 = vcombine.low %v1827, %v1834
  %v1836 = vcombine.low %v1642, %v1643
  %v1837 = vcombine.low %v1644, %v1645
  %v1839 = vunpack.c.l.s4 1983009808
  %v1840 = vunpack.c.0.s8 %v1839
  %v1841 = vlaneseq
  %v1842 = vshrl.u32 %v1841, 7
  %v1843 = vsub.s32 %v1840, %v1842
  %v1844 = vrot.slane %v1836, %v1843
  %v1846 = vunpack.c.l.s4 1983009808
  %v1847 = vunpack.c.0.s8 %v1846
  %v1848 = vlaneseq
  %v1849 = vshrl.u32 %v1848, 7
  %v1850 = vsub.s32 %v1847, %v1849
  %v1851 = vrot.slane %v1837, %v1850
  %v1852 = vcombine.low %v1844, %v1851
  %v1853 = vcombine.low %v1646, %v1647
  %v1854 = vcombine.low %v1648, %v1649
  %v1856 = vunpack.c.l.s4 1983009808
  %v1857 = vunpack.c.0.s8 %v1856
  %v1858 = vlaneseq
  %v1859 = vshrl.u32 %v1858, 7
  %v1860 = vsub.s32 %v1857, %v1859
  %v1861 = vrot.slane %v1853, %v1860
  %v1863 = vunpack.c.l.s4 1983009808
  %v1864 = vunpack.c.0.s8 %v1863
  %v1865 = vlaneseq
  %v1866 = vshrl.u32 %v1865, 7
  %v1867 = vsub.s32 %v1864, %v1866
  %v1868 = vrot.slane %v1854, %v1867
  %v1869 = vcombine.low %v1861, %v1868
  %v1870 = vcombine.low %v1650, %v1651
  %v1871 = vcombine.low %v1652, %v1653
  %v1873 = vunpack.c.l.s4 1983009808
  %v1874 = vunpack.c.0.s8 %v1873
  %v1875 = vlaneseq
  %v1876 = vshrl.u32 %v1875, 7
  %v1877 = vsub.s32 %v1874, %v1876
  %v1878 = vrot.slane %v1870, %v1877
  %v1880 = vunpack.c.l.s4 1983009808
  %v1881 = vunpack.c.0.s8 %v1880
  %v1882 = vlaneseq
  %v1883 = vshrl.u32 %v1882, 7
  %v1884 = vsub.s32 %v1881, %v1883
  %v1885 = vrot.slane %v1871, %v1884
  %v1886 = vcombine.low %v1878, %v1885
  %v1887 = vcombine.low %v1654, %v1655
  %v1888 = vcombine.low %v1656, %v1657
  %v1890 = vunpack.c.l.s4 1983009808
  %v1891 = vunpack.c.0.s8 %v1890
  %v1892 = vlaneseq
  %v1893 = vshrl.u32 %v1892, 7
  %v1894 = vsub.s32 %v1891, %v1893
  %v1895 = vrot.slane %v1887, %v1894
  %v1897 = vunpack.c.l.s4 1983009808
  %v1898 = vunpack.c.0.s8 %v1897
  %v1899 = vlaneseq
  %v1900 = vshrl.u32 %v1899, 7
  %v1901 = vsub.s32 %v1898, %v1900
  %v1902 = vrot.slane %v1888, %v1901
  %v1903 = vcombine.low %v1895, %v1902
  %v1904 = vcombine.low %v1658, %v1659
  %v1905 = vcombine.low %v1660, %v1661
  %v1907 = vunpack.c.l.s4 1983009808
  %v1908 = vunpack.c.0.s8 %v1907
  %v1909 = vlaneseq
  %v1910 = vshrl.u32 %v1909, 7
  %v1911 = vsub.s32 %v1908, %v1910
  %v1912 = vrot.slane %v1904, %v1911
  %v1914 = vunpack.c.l.s4 1983009808
  %v1915 = vunpack.c.0.s8 %v1914
  %v1916 = vlaneseq
  %v1917 = vshrl.u32 %v1916, 7
  %v1918 = vsub.s32 %v1915, %v1917
  %v1919 = vrot.slane %v1905, %v1918
  %v1920 = vcombine.low %v1912, %v1919
  %v1921 = vcombine.low %v1662, %v1663
  %v1922 = vcombine.low %v1664, %v1665
  %v1924 = vunpack.c.l.s4 1983009808
  %v1925 = vunpack.c.0.s8 %v1924
  %v1926 = vlaneseq
  %v1927 = vshrl.u32 %v1926, 7
  %v1928 = vsub.s32 %v1925, %v1927
  %v1929 = vrot.slane %v1921, %v1928
  %v1931 = vunpack.c.l.s4 1983009808
  %v1932 = vunpack.c.0.s8 %v1931
  %v1933 = vlaneseq
  %v1934 = vshrl.u32 %v1933, 7
  %v1935 = vsub.s32 %v1932, %v1934
  %v1936 = vrot.slane %v1922, %v1935
  %v1937 = vcombine.low %v1929, %v1936
  %v1938 = vcombine.low %v1666, %v1667
  %v1939 = vcombine.low %v1668, %v1669
  %v1941 = vunpack.c.l.s4 1983009808
  %v1942 = vunpack.c.0.s8 %v1941
  %v1943 = vlaneseq
  %v1944 = vshrl.u32 %v1943, 7
  %v1945 = vsub.s32 %v1942, %v1944
  %v1946 = vrot.slane %v1938, %v1945
  %v1948 = vunpack.c.l.s4 1983009808
  %v1949 = vunpack.c.0.s8 %v1948
  %v1950 = vlaneseq
  %v1951 = vshrl.u32 %v1950, 7
  %v1952 = vsub.s32 %v1949, %v1951
  %v1953 = vrot.slane %v1939, %v1952
  %v1954 = vcombine.low %v1946, %v1953
  %v1955 = vcombine.low %v1670, %v1671
  %v1956 = vcombine.low %v1672, %v1673
  %v1958 = vunpack.c.l.s4 1983009808
  %v1959 = vunpack.c.0.s8 %v1958
  %v1960 = vlaneseq
  %v1961 = vshrl.u32 %v1960, 7
  %v1962 = vsub.s32 %v1959, %v1961
  %v1963 = vrot.slane %v1955, %v1962
  %v1965 = vunpack.c.l.s4 1983009808
  %v1966 = vunpack.c.0.s8 %v1965
  %v1967 = vlaneseq
  %v1968 = vshrl.u32 %v1967, 7
  %v1969 = vsub.s32 %v1966, %v1968
  %v1970 = vrot.slane %v1956, %v1969
  %v1971 = vcombine.low %v1963, %v1970
  %v1972 = vcombine.low %v1674, %v1675
  %v1973 = vcombine.low %v1676, %v1677
  %v1975 = vunpack.c.l.s4 1983009808
  %v1976 = vunpack.c.0.s8 %v1975
  %v1977 = vlaneseq
  %v1978 = vshrl.u32 %v1977, 7
  %v1979 = vsub.s32 %v1976, %v1978
  %v1980 = vrot.slane %v1972, %v1979
  %v1982 = vunpack.c.l.s4 1983009808
  %v1983 = vunpack.c.0.s8 %v1982
  %v1984 = vlaneseq
  %v1985 = vshrl.u32 %v1984, 7
  %v1986 = vsub.s32 %v1983, %v1985
  %v1987 = vrot.slane %v1973, %v1986
  %v1988 = vcombine.low %v1980, %v1987
  %v1989 = vcombine.low %v1678, %v1679
  %v1990 = vcombine.low %v1680, %v1681
  %v1992 = vunpack.c.l.s4 1983009808
  %v1993 = vunpack.c.0.s8 %v1992
  %v1994 = vlaneseq
  %v1995 = vshrl.u32 %v1994, 7
  %v1996 = vsub.s32 %v1993, %v1995
  %v1997 = vrot.slane %v1989, %v1996
  %v1999 = vunpack.c.l.s4 1983009808
  %v2000 = vunpack.c.0.s8 %v1999
  %v2001 = vlaneseq
  %v2002 = vshrl.u32 %v2001, 7
  %v2003 = vsub.s32 %v2000, %v2002
  %v2004 = vrot.slane %v1990, %v2003
  %v2005 = vcombine.low %v1997, %v2004
  %v2006 = vcombine.low %v1682, %v1683
  %v2007 = vcombine.low %v1684, %v1685
  %v2009 = vunpack.c.l.s4 1983009808
  %v2010 = vunpack.c.0.s8 %v2009
  %v2011 = vlaneseq
  %v2012 = vshrl.u32 %v2011, 7
  %v2013 = vsub.s32 %v2010, %v2012
  %v2014 = vrot.slane %v2006, %v2013
  %v2016 = vunpack.c.l.s4 1983009808
  %v2017 = vunpack.c.0.s8 %v2016
  %v2018 = vlaneseq
  %v2019 = vshrl.u32 %v2018, 7
  %v2020 = vsub.s32 %v2017, %v2019
  %v2021 = vrot.slane %v2007, %v2020
  %v2022 = vcombine.low %v2014, %v2021
  %vm2023 = vcmask 64512
  %v2024 = vsel %vm2023, %v1767, 0
  %v2026 = vsel %vm2023, %v1784, 0
  %v2028 = vsel %vm2023, %v1801, 0
  %v2030 = vsel %vm2023, %v1818, 0
  %v2032 = vsel %vm2023, %v1835, 0
  %v2034 = vsel %vm2023, %v1852, 0
  %v2036 = vsel %vm2023, %v1869, 0
  %v2038 = vsel %vm2023, %v1886, 0
  %v2040 = vsel %vm2023, %v1903, 0
  %v2042 = vsel %vm2023, %v1920, 0
  %v2044 = vsel %vm2023, %v1937, 0
  %v2046 = vsel %vm2023, %v1954, 0
  %v2048 = vsel %vm2023, %v1971, 0
  %v2050 = vsel %vm2023, %v1988, 0
  %v2052 = vsel %vm2023, %v2005, 0
  %v2054 = vsel %vm2023, %v2022, 0
  %2056 = vmatprep.subr.mxu0 0.0
  %2057 = vmatpush1.msra.mxu0 %v1686
  %2058 = vmatprep.subr.mxu0 0.0
  %2059 = vmatpush1.msra.mxu0 0.0
  %2060 = vmatprep.subr.mxu0 0.0
  %2061 = vmatpush1.msra.mxu0 0.0
  %2062 = vmatprep.subr.mxu0 0.0
  %2063 = vmatpush1.msra.mxu0 0.0
  %2064 = vmatprep.subr.mxu0 0.0
  %2065 = vmatpush1.msra.mxu0 0.0
  %2066 = vmatprep.subr.mxu0 0.0
  %2067 = vmatpush1.msra.mxu0 0.0
  %2068 = vmatprep.subr.mxu0 0.0
  %2069 = vmatpush1.msra.mxu0 0.0
  %2070 = vmatprep.subr.mxu0 0.0
  %2071 = vmatpush1.msra.mxu0 0.0
  %2072 = vmatprep.subr.mxu0 0.0
  %2073 = vmatpush1.msra.mxu0 0.0
  %2074 = vmatprep.subr.mxu0 0.0
  %2075 = vmatpush1.msra.mxu0 0.0
  %2076 = vmatprep.subr.mxu0 0.0
  %2077 = vmatpush1.msra.mxu0 0.0
  %2078 = vmatprep.subr.mxu0 0.0
  %2079 = vmatpush1.msra.mxu0 0.0
  %2080 = vmatprep.subr.mxu0 0.0
  %2081 = vmatpush1.msra.mxu0 0.0
  %2082 = vmatprep.subr.mxu0 0.0
  %2083 = vmatpush1.msra.mxu0 0.0
  %2084 = vmatprep.subr.mxu0 0.0
  %2085 = vmatpush1.msra.mxu0 0.0
  %2086 = vmatprep.subr.mxu0 0.0
  %2087 = vmatpush1.msra.mxu0 0.0
  %2088 = vmatprep.subr.mxu0 0.0
  %2089 = vmatpush1.msra.mxu0 0.0
  %2090 = vmatprep.subr.mxu0 0.0
  %2091 = vmatpush1.msra.mxu0 0.0
  %2092 = vmatprep.subr.mxu0 0.0
  %2093 = vmatpush1.msra.mxu0 0.0
  %2094 = vmatprep.subr.mxu0 0.0
  %2095 = vmatpush1.msra.mxu0 0.0
  %2096 = vmatprep.subr.mxu0 0.0
  %2097 = vmatpush1.msra.mxu0 0.0
  %2098 = vmatprep.subr.mxu0 0.0
  %2099 = vmatpush1.msra.mxu0 0.0
  %2100 = vmatprep.subr.mxu0 0.0
  %2101 = vmatpush1.msra.mxu0 0.0
  %2102 = vmatprep.subr.mxu0 0.0
  %2103 = vmatpush1.msra.mxu0 0.0
  %2104 = vmatprep.subr.mxu0 0.0
  %2105 = vmatpush1.msra.mxu0 0.0
  %2106 = vmatprep.subr.mxu0 0.0
  %2107 = vmatpush1.msra.mxu0 0.0
  %2108 = vmatprep.subr.mxu0 0.0
  %2109 = vmatpush1.msra.mxu0 0.0
  %2110 = vmatprep.subr.mxu0 0.0
  %2111 = vmatpush1.msra.mxu0 0.0
  %2112 = vmatprep.subr.mxu0 0.0
  %2113 = vmatpush1.msra.mxu0 0.0
  %2114 = vmatprep.subr.mxu0 0.0
  %2115 = vmatpush1.msra.mxu0 0.0
  %2116 = vmatprep.subr.mxu0 0.0
  %2117 = vmatpush1.msra.mxu0 0.0
  %2118 = vmatprep.subr.mxu0 0.0
  %2119 = vmatpush1.msra.mxu0 0.0
  %2120 = vmatprep.mubr.f32.mxu0 0.0
  %2121 = vmatmul.mubr.f32.gmra.mrb[0].mxu0 %v2024
  %v2122 = vpop.f32.mrb[0].mxu0
  %v2123 = vadd.f32 0.0, %v2122
  %v2124 = vpop.f32.mrb[0].mxu0
  %2125 = vmatprep.mubr.f32.mxu0 0.0
  %2126 = vmatmul.mubr.f32.gmra.mrb[0].mxu0 %v2026
  %v2127 = vpop.f32.mrb[0].mxu0
  %v2128 = vadd.f32 0.0, %v2127
  %v2129 = vpop.f32.mrb[0].mxu0
  %2130 = vmatprep.mubr.f32.mxu0 0.0
  %2131 = vmatmul.mubr.f32.gmra.mrb[0].mxu0 %v2028
  %v2132 = vpop.f32.mrb[0].mxu0
  %v2133 = vadd.f32 0.0, %v2132
  %v2134 = vpop.f32.mrb[0].mxu0
  %2135 = vmatprep.mubr.f32.mxu0 0.0
  %2136 = vmatmul.mubr.f32.gmra.mrb[0].mxu0 %v2030
  %v2137 = vpop.f32.mrb[0].mxu0
  %v2138 = vadd.f32 0.0, %v2137
  %v2139 = vpop.f32.mrb[0].mxu0
  %2140 = vmatprep.mubr.f32.mxu0 0.0
  %2141 = vmatmul.mubr.f32.gmra.mrb[0].mxu0 %v2032
  %v2142 = vpop.f32.mrb[0].mxu0
  %v2143 = vadd.f32 0.0, %v2142
  %v2144 = vpop.f32.mrb[0].mxu0
  %2145 = vmatprep.mubr.f32.mxu0 0.0
  %2146 = vmatmul.mubr.f32.gmra.mrb[0].mxu0 %v2034
  %v2147 = vpop.f32.mrb[0].mxu0
  %v2148 = vadd.f32 0.0, %v2147
  %v2149 = vpop.f32.mrb[0].mxu0
  %2150 = vmatprep.mubr.f32.mxu0 0.0
  %2151 = vmatmul.mubr.f32.gmra.mrb[0].mxu0 %v2036
  %v2152 = vpop.f32.mrb[0].mxu0
  %v2153 = vadd.f32 0.0, %v2152
  %v2154 = vpop.f32.mrb[0].mxu0
  %2155 = vmatprep.mubr.f32.mxu0 0.0
  %2156 = vmatmul.mubr.f32.gmra.mrb[0].mxu0 %v2038
  %v2157 = vpop.f32.mrb[0].mxu0
  %v2158 = vadd.f32 0.0, %v2157
  %v2159 = vpop.f32.mrb[0].mxu0
  %2160 = vmatprep.mubr.f32.mxu0 0.0
  %2161 = vmatmul.mubr.f32.gmra.mrb[0].mxu0 %v2040
  %v2162 = vpop.f32.mrb[0].mxu0
  %v2163 = vadd.f32 0.0, %v2162
  %v2164 = vpop.f32.mrb[0].mxu0
  %2165 = vmatprep.mubr.f32.mxu0 0.0
  %2166 = vmatmul.mubr.f32.gmra.mrb[0].mxu0 %v2042
  %v2167 = vpop.f32.mrb[0].mxu0
  %v2168 = vadd.f32 0.0, %v2167
  %v2169 = vpop.f32.mrb[0].mxu0
  %2170 = vmatprep.mubr.f32.mxu0 0.0
  %2171 = vmatmul.mubr.f32.gmra.mrb[0].mxu0 %v2044
  %v2172 = vpop.f32.mrb[0].mxu0
  %v2173 = vadd.f32 0.0, %v2172
  %v2174 = vpop.f32.mrb[0].mxu0
  %2175 = vmatprep.mubr.f32.mxu0 0.0
  %2176 = vmatmul.mubr.f32.gmra.mrb[0].mxu0 %v2046
  %v2177 = vpop.f32.mrb[0].mxu0
  %v2178 = vadd.f32 0.0, %v2177
  %v2179 = vpop.f32.mrb[0].mxu0
  %2180 = vmatprep.mubr.f32.mxu0 0.0
  %2181 = vmatmul.mubr.f32.gmra.mrb[0].mxu0 %v2048
  %v2182 = vpop.f32.mrb[0].mxu0
  %v2183 = vadd.f32 0.0, %v2182
  %v2184 = vpop.f32.mrb[0].mxu0
  %2185 = vmatprep.mubr.f32.mxu0 0.0
  %2186 = vmatmul.mubr.f32.gmra.mrb[0].mxu0 %v2050
  %v2187 = vpop.f32.mrb[0].mxu0
  %v2188 = vadd.f32 0.0, %v2187
  %v2189 = vpop.f32.mrb[0].mxu0
  %2190 = vmatprep.mubr.f32.mxu0 0.0
  %2191 = vmatmul.mubr.f32.gmra.mrb[0].mxu0 %v2052
  %v2192 = vpop.f32.mrb[0].mxu0
  %v2193 = vadd.f32 0.0, %v2192
  %v2194 = vpop.f32.mrb[0].mxu0
  %2195 = vmatprep.mubr.f32.mxu0 0.0
  %2196 = vmatmul.mubr.f32.gmra.mrb[0].mxu0 %v2054
  %v2197 = vpop.f32.mrb[0].mxu0
  %v2198 = vadd.f32 0.0, %v2197
  %v2199 = vpop.f32.mrb[0].mxu0
  %2200 = vdwg.mxu0
  %v2217 = vcombine.high %v2123, %v2123
  %v2219 = vunpack.c.l.s4 1983009808
  %v2220 = vunpack.c.0.s8 %v2219
  %v2221 = vlaneseq
  %v2222 = vshrl.u32 %v2221, 7
  %v2223 = vsub.s32 %v2220, %v2222
  %v2224 = vrot.slane %v2123, %v2223
  %v2226 = vunpack.c.l.s4 1983009808
  %v2227 = vunpack.c.0.s8 %v2226
  %v2228 = vlaneseq
  %v2229 = vshrl.u32 %v2228, 7
  %v2230 = vsub.s32 %v2227, %v2229
  %v2231 = vrot.slane %v2217, %v2230
  %v2232 = vcombine.high %v2224, %v2224
  %v2233 = vcombine.high %v2231, %v2231
  %v2234 = vcombine.high %v2128, %v2128
  %v2236 = vunpack.c.l.s4 1983009808
  %v2237 = vunpack.c.0.s8 %v2236
  %v2238 = vlaneseq
  %v2239 = vshrl.u32 %v2238, 7
  %v2240 = vsub.s32 %v2237, %v2239
  %v2241 = vrot.slane %v2128, %v2240
  %v2243 = vunpack.c.l.s4 1983009808
  %v2244 = vunpack.c.0.s8 %v2243
  %v2245 = vlaneseq
  %v2246 = vshrl.u32 %v2245, 7
  %v2247 = vsub.s32 %v2244, %v2246
  %v2248 = vrot.slane %v2234, %v2247
  %v2249 = vcombine.high %v2241, %v2241
  %v2250 = vcombine.high %v2248, %v2248
  %v2251 = vcombine.high %v2133, %v2133
  %v2253 = vunpack.c.l.s4 1983009808
  %v2254 = vunpack.c.0.s8 %v2253
  %v2255 = vlaneseq
  %v2256 = vshrl.u32 %v2255, 7
  %v2257 = vsub.s32 %v2254, %v2256
  %v2258 = vrot.slane %v2133, %v2257
  %v2260 = vunpack.c.l.s4 1983009808
  %v2261 = vunpack.c.0.s8 %v2260
  %v2262 = vlaneseq
  %v2263 = vshrl.u32 %v2262, 7
  %v2264 = vsub.s32 %v2261, %v2263
  %v2265 = vrot.slane %v2251, %v2264
  %v2266 = vcombine.high %v2258, %v2258
  %v2267 = vcombine.high %v2265, %v2265
  %v2268 = vcombine.high %v2138, %v2138
  %v2270 = vunpack.c.l.s4 1983009808
  %v2271 = vunpack.c.0.s8 %v2270
  %v2272 = vlaneseq
  %v2273 = vshrl.u32 %v2272, 7
  %v2274 = vsub.s32 %v2271, %v2273
  %v2275 = vrot.slane %v2138, %v2274
  %v2277 = vunpack.c.l.s4 1983009808
  %v2278 = vunpack.c.0.s8 %v2277
  %v2279 = vlaneseq
  %v2280 = vshrl.u32 %v2279, 7
  %v2281 = vsub.s32 %v2278, %v2280
  %v2282 = vrot.slane %v2268, %v2281
  %v2283 = vcombine.high %v2275, %v2275
  %v2284 = vcombine.high %v2282, %v2282
  %v2285 = vcombine.high %v2143, %v2143
  %v2287 = vunpack.c.l.s4 1983009808
  %v2288 = vunpack.c.0.s8 %v2287
  %v2289 = vlaneseq
  %v2290 = vshrl.u32 %v2289, 7
  %v2291 = vsub.s32 %v2288, %v2290
  %v2292 = vrot.slane %v2143, %v2291
  %v2294 = vunpack.c.l.s4 1983009808
  %v2295 = vunpack.c.0.s8 %v2294
  %v2296 = vlaneseq
  %v2297 = vshrl.u32 %v2296, 7
  %v2298 = vsub.s32 %v2295, %v2297
  %v2299 = vrot.slane %v2285, %v2298
  %v2300 = vcombine.high %v2292, %v2292
  %v2301 = vcombine.high %v2299, %v2299
  %v2302 = vcombine.high %v2148, %v2148
  %v2304 = vunpack.c.l.s4 1983009808
  %v2305 = vunpack.c.0.s8 %v2304
  %v2306 = vlaneseq
  %v2307 = vshrl.u32 %v2306, 7
  %v2308 = vsub.s32 %v2305, %v2307
  %v2309 = vrot.slane %v2148, %v2308
  %v2311 = vunpack.c.l.s4 1983009808
  %v2312 = vunpack.c.0.s8 %v2311
  %v2313 = vlaneseq
  %v2314 = vshrl.u32 %v2313, 7
  %v2315 = vsub.s32 %v2312, %v2314
  %v2316 = vrot.slane %v2302, %v2315
  %v2317 = vcombine.high %v2309, %v2309
  %v2318 = vcombine.high %v2316, %v2316
  %v2319 = vcombine.high %v2153, %v2153
  %v2321 = vunpack.c.l.s4 1983009808
  %v2322 = vunpack.c.0.s8 %v2321
  %v2323 = vlaneseq
  %v2324 = vshrl.u32 %v2323, 7
  %v2325 = vsub.s32 %v2322, %v2324
  %v2326 = vrot.slane %v2153, %v2325
  %v2328 = vunpack.c.l.s4 1983009808
  %v2329 = vunpack.c.0.s8 %v2328
  %v2330 = vlaneseq
  %v2331 = vshrl.u32 %v2330, 7
  %v2332 = vsub.s32 %v2329, %v2331
  %v2333 = vrot.slane %v2319, %v2332
  %v2334 = vcombine.high %v2326, %v2326
  %v2335 = vcombine.high %v2333, %v2333
  %v2336 = vcombine.high %v2158, %v2158
  %v2338 = vunpack.c.l.s4 1983009808
  %v2339 = vunpack.c.0.s8 %v2338
  %v2340 = vlaneseq
  %v2341 = vshrl.u32 %v2340, 7
  %v2342 = vsub.s32 %v2339, %v2341
  %v2343 = vrot.slane %v2158, %v2342
  %v2345 = vunpack.c.l.s4 1983009808
  %v2346 = vunpack.c.0.s8 %v2345
  %v2347 = vlaneseq
  %v2348 = vshrl.u32 %v2347, 7
  %v2349 = vsub.s32 %v2346, %v2348
  %v2350 = vrot.slane %v2336, %v2349
  %v2351 = vcombine.high %v2343, %v2343
  %v2352 = vcombine.high %v2350, %v2350
  %v2353 = vcombine.high %v2163, %v2163
  %v2355 = vunpack.c.l.s4 1983009808
  %v2356 = vunpack.c.0.s8 %v2355
  %v2357 = vlaneseq
  %v2358 = vshrl.u32 %v2357, 7
  %v2359 = vsub.s32 %v2356, %v2358
  %v2360 = vrot.slane %v2163, %v2359
  %v2362 = vunpack.c.l.s4 1983009808
  %v2363 = vunpack.c.0.s8 %v2362
  %v2364 = vlaneseq
  %v2365 = vshrl.u32 %v2364, 7
  %v2366 = vsub.s32 %v2363, %v2365
  %v2367 = vrot.slane %v2353, %v2366
  %v2368 = vcombine.high %v2360, %v2360
  %v2369 = vcombine.high %v2367, %v2367
  %v2370 = vcombine.high %v2168, %v2168
  %v2372 = vunpack.c.l.s4 1983009808
  %v2373 = vunpack.c.0.s8 %v2372
  %v2374 = vlaneseq
  %v2375 = vshrl.u32 %v2374, 7
  %v2376 = vsub.s32 %v2373, %v2375
  %v2377 = vrot.slane %v2168, %v2376
  %v2379 = vunpack.c.l.s4 1983009808
  %v2380 = vunpack.c.0.s8 %v2379
  %v2381 = vlaneseq
  %v2382 = vshrl.u32 %v2381, 7
  %v2383 = vsub.s32 %v2380, %v2382
  %v2384 = vrot.slane %v2370, %v2383
  %v2385 = vcombine.high %v2377, %v2377
  %v2386 = vcombine.high %v2384, %v2384
  %v2387 = vcombine.high %v2173, %v2173
  %v2389 = vunpack.c.l.s4 1983009808
  %v2390 = vunpack.c.0.s8 %v2389
  %v2391 = vlaneseq
  %v2392 = vshrl.u32 %v2391, 7
  %v2393 = vsub.s32 %v2390, %v2392
  %v2394 = vrot.slane %v2173, %v2393
  %v2396 = vunpack.c.l.s4 1983009808
  %v2397 = vunpack.c.0.s8 %v2396
  %v2398 = vlaneseq
  %v2399 = vshrl.u32 %v2398, 7
  %v2400 = vsub.s32 %v2397, %v2399
  %v2401 = vrot.slane %v2387, %v2400
  %v2402 = vcombine.high %v2394, %v2394
  %v2403 = vcombine.high %v2401, %v2401
  %v2404 = vcombine.high %v2178, %v2178
  %v2406 = vunpack.c.l.s4 1983009808
  %v2407 = vunpack.c.0.s8 %v2406
  %v2408 = vlaneseq
  %v2409 = vshrl.u32 %v2408, 7
  %v2410 = vsub.s32 %v2407, %v2409
  %v2411 = vrot.slane %v2178, %v2410
  %v2413 = vunpack.c.l.s4 1983009808
  %v2414 = vunpack.c.0.s8 %v2413
  %v2415 = vlaneseq
  %v2416 = vshrl.u32 %v2415, 7
  %v2417 = vsub.s32 %v2414, %v2416
  %v2418 = vrot.slane %v2404, %v2417
  %v2419 = vcombine.high %v2411, %v2411
  %v2420 = vcombine.high %v2418, %v2418
  %v2421 = vcombine.high %v2183, %v2183
  %v2423 = vunpack.c.l.s4 1983009808
  %v2424 = vunpack.c.0.s8 %v2423
  %v2425 = vlaneseq
  %v2426 = vshrl.u32 %v2425, 7
  %v2427 = vsub.s32 %v2424, %v2426
  %v2428 = vrot.slane %v2183, %v2427
  %v2430 = vunpack.c.l.s4 1983009808
  %v2431 = vunpack.c.0.s8 %v2430
  %v2432 = vlaneseq
  %v2433 = vshrl.u32 %v2432, 7
  %v2434 = vsub.s32 %v2431, %v2433
  %v2435 = vrot.slane %v2421, %v2434
  %v2436 = vcombine.high %v2428, %v2428
  %v2437 = vcombine.high %v2435, %v2435
  %v2438 = vcombine.high %v2188, %v2188
  %v2440 = vunpack.c.l.s4 1983009808
  %v2441 = vunpack.c.0.s8 %v2440
  %v2442 = vlaneseq
  %v2443 = vshrl.u32 %v2442, 7
  %v2444 = vsub.s32 %v2441, %v2443
  %v2445 = vrot.slane %v2188, %v2444
  %v2447 = vunpack.c.l.s4 1983009808
  %v2448 = vunpack.c.0.s8 %v2447
  %v2449 = vlaneseq
  %v2450 = vshrl.u32 %v2449, 7
  %v2451 = vsub.s32 %v2448, %v2450
  %v2452 = vrot.slane %v2438, %v2451
  %v2453 = vcombine.high %v2445, %v2445
  %v2454 = vcombine.high %v2452, %v2452
  %v2455 = vcombine.high %v2193, %v2193
  %v2457 = vunpack.c.l.s4 1983009808
  %v2458 = vunpack.c.0.s8 %v2457
  %v2459 = vlaneseq
  %v2460 = vshrl.u32 %v2459, 7
  %v2461 = vsub.s32 %v2458, %v2460
  %v2462 = vrot.slane %v2193, %v2461
  %v2464 = vunpack.c.l.s4 1983009808
  %v2465 = vunpack.c.0.s8 %v2464
  %v2466 = vlaneseq
  %v2467 = vshrl.u32 %v2466, 7
  %v2468 = vsub.s32 %v2465, %v2467
  %v2469 = vrot.slane %v2455, %v2468
  %v2470 = vcombine.high %v2462, %v2462
  %v2471 = vcombine.high %v2469, %v2469
  %v2472 = vcombine.high %v2198, %v2198
  %v2474 = vunpack.c.l.s4 1983009808
  %v2475 = vunpack.c.0.s8 %v2474
  %v2476 = vlaneseq
  %v2477 = vshrl.u32 %v2476, 7
  %v2478 = vsub.s32 %v2475, %v2477
  %v2479 = vrot.slane %v2198, %v2478
  %v2481 = vunpack.c.l.s4 1983009808
  %v2482 = vunpack.c.0.s8 %v2481
  %v2483 = vlaneseq
  %v2484 = vshrl.u32 %v2483, 7
  %v2485 = vsub.s32 %v2482, %v2484
  %v2486 = vrot.slane %v2472, %v2485
  %v2487 = vcombine.high %v2479, %v2479
  %v2488 = vcombine.high %v2486, %v2486
  %2553 = vrot.lane.b32.xlu0 %v189, 64
  %v2554 = vpop.permute.xlu0 %2553
  %2555 = vrot.lane.b32.xlu0 %v197, 64
  %v2556 = vpop.permute.xlu0 %2555
  %2557 = vrot.lane.b32.xlu0 %v196, 64
  %v2558 = vpop.permute.xlu0 %2557
  %2559 = vrot.lane.b32.xlu0 %v198, 64
  %v2560 = vpop.permute.xlu0 %2559
  %2561 = vrot.lane.b32.xlu0 %v206, 64
  %v2562 = vpop.permute.xlu0 %2561
  %2563 = vrot.lane.b32.xlu0 %v214, 64
  %v2564 = vpop.permute.xlu0 %2563
  %2565 = vrot.lane.b32.xlu0 %v213, 64
  %v2566 = vpop.permute.xlu0 %2565
  %2567 = vrot.lane.b32.xlu0 %v215, 64
  %v2568 = vpop.permute.xlu0 %2567
  %v2577 = vmul.f32 %v2224, %v2554
  %v2578 = vmul.f32 %v2232, %v2556
  %v2579 = vmul.f32 %v2231, %v2558
  %v2580 = vmul.f32 %v2233, %v2560
  %v2581 = vmul.f32 %v2241, %v2562
  %v2582 = vmul.f32 %v2249, %v2564
  %v2583 = vmul.f32 %v2248, %v2566
  %v2584 = vmul.f32 %v2250, %v2568
  %v2585 = vmul.f32 %v2258, %v2554
  %v2586 = vmul.f32 %v2266, %v2556
  %v2587 = vmul.f32 %v2265, %v2558
  %v2588 = vmul.f32 %v2267, %v2560
  %v2589 = vmul.f32 %v2275, %v2562
  %v2590 = vmul.f32 %v2283, %v2564
  %v2591 = vmul.f32 %v2282, %v2566
  %v2592 = vmul.f32 %v2284, %v2568
  %v2593 = vmul.f32 %v2292, %v2554
  %v2594 = vmul.f32 %v2300, %v2556
  %v2595 = vmul.f32 %v2299, %v2558
  %v2596 = vmul.f32 %v2301, %v2560
  %v2597 = vmul.f32 %v2309, %v2562
  %v2598 = vmul.f32 %v2317, %v2564
  %v2599 = vmul.f32 %v2316, %v2566
  %v2600 = vmul.f32 %v2318, %v2568
  %v2601 = vmul.f32 %v2326, %v2554
  %v2602 = vmul.f32 %v2334, %v2556
  %v2603 = vmul.f32 %v2333, %v2558
  %v2604 = vmul.f32 %v2335, %v2560
  %v2605 = vmul.f32 %v2343, %v2562
  %v2606 = vmul.f32 %v2351, %v2564
  %v2607 = vmul.f32 %v2350, %v2566
  %v2608 = vmul.f32 %v2352, %v2568
  %v2609 = vmul.f32 %v2360, %v2554
  %v2610 = vmul.f32 %v2368, %v2556
  %v2611 = vmul.f32 %v2367, %v2558
  %v2612 = vmul.f32 %v2369, %v2560
  %v2613 = vmul.f32 %v2377, %v2562
  %v2614 = vmul.f32 %v2385, %v2564
  %v2615 = vmul.f32 %v2384, %v2566
  %v2616 = vmul.f32 %v2386, %v2568
  %v2617 = vmul.f32 %v2394, %v2554
  %v2618 = vmul.f32 %v2402, %v2556
  %v2619 = vmul.f32 %v2401, %v2558
  %v2620 = vmul.f32 %v2403, %v2560
  %v2621 = vmul.f32 %v2411, %v2562
  %v2622 = vmul.f32 %v2419, %v2564
  %v2623 = vmul.f32 %v2418, %v2566
  %v2624 = vmul.f32 %v2420, %v2568
  %v2625 = vmul.f32 %v2428, %v2554
  %v2626 = vmul.f32 %v2436, %v2556
  %v2627 = vmul.f32 %v2435, %v2558
  %v2628 = vmul.f32 %v2437, %v2560
  %v2629 = vmul.f32 %v2445, %v2562
  %v2630 = vmul.f32 %v2453, %v2564
  %v2631 = vmul.f32 %v2452, %v2566
  %v2632 = vmul.f32 %v2454, %v2568
  %v2633 = vmul.f32 %v2462, %v2554
  %v2634 = vmul.f32 %v2470, %v2556
  %v2635 = vmul.f32 %v2469, %v2558
  %v2636 = vmul.f32 %v2471, %v2560
  %v2637 = vmul.f32 %v2479, %v2562
  %v2638 = vmul.f32 %v2487, %v2564
  %v2639 = vmul.f32 %v2486, %v2566
  %v2640 = vmul.f32 %v2488, %v2568
  %vm2641 = vcmask 254976
  %v2642 = vsel %vm2641, %v2577, 0.0
  %v2643 = vsel %vm2641, %v2578, 0.0
  %v2644 = vadd.f32 %v2642, %v2643
  %v2645 = vsel %vm2641, %v2579, 0.0
  %v2646 = vadd.f32 %v2644, %v2645
  %v2647 = vsel %vm2641, %v2580, 0.0
  %v2648 = vadd.f32 %v2646, %v2647
  %v2649 = vsel %vm2641, %v2581, 0.0
  %v2650 = vadd.f32 %v2648, %v2649
  %v2651 = vsel %vm2641, %v2582, 0.0
  %v2652 = vadd.f32 %v2650, %v2651
  %v2653 = vsel %vm2641, %v2583, 0.0
  %v2654 = vadd.f32 %v2652, %v2653
  %v2655 = vsel %vm2641, %v2584, 0.0
  %v2656 = vadd.f32 %v2654, %v2655
  %v2657 = vsel %vm2641, %v2585, 0.0
  %v2658 = vsel %vm2641, %v2586, 0.0
  %v2659 = vadd.f32 %v2657, %v2658
  %v2660 = vsel %vm2641, %v2587, 0.0
  %v2661 = vadd.f32 %v2659, %v2660
  %v2662 = vsel %vm2641, %v2588, 0.0
  %v2663 = vadd.f32 %v2661, %v2662
  %v2664 = vsel %vm2641, %v2589, 0.0
  %v2665 = vadd.f32 %v2663, %v2664
  %v2666 = vsel %vm2641, %v2590, 0.0
  %v2667 = vadd.f32 %v2665, %v2666
  %v2668 = vsel %vm2641, %v2591, 0.0
  %v2669 = vadd.f32 %v2667, %v2668
  %v2670 = vsel %vm2641, %v2592, 0.0
  %v2671 = vadd.f32 %v2669, %v2670
  %v2672 = vsel %vm2641, %v2593, 0.0
  %v2673 = vsel %vm2641, %v2594, 0.0
  %v2674 = vadd.f32 %v2672, %v2673
  %v2675 = vsel %vm2641, %v2595, 0.0
  %v2676 = vadd.f32 %v2674, %v2675
  %v2677 = vsel %vm2641, %v2596, 0.0
  %v2678 = vadd.f32 %v2676, %v2677
  %v2679 = vsel %vm2641, %v2597, 0.0
  %v2680 = vadd.f32 %v2678, %v2679
  %v2681 = vsel %vm2641, %v2598, 0.0
  %v2682 = vadd.f32 %v2680, %v2681
  %v2683 = vsel %vm2641, %v2599, 0.0
  %v2684 = vadd.f32 %v2682, %v2683
  %v2685 = vsel %vm2641, %v2600, 0.0
  %v2686 = vadd.f32 %v2684, %v2685
  %v2687 = vsel %vm2641, %v2601, 0.0
  %v2688 = vsel %vm2641, %v2602, 0.0
  %v2689 = vadd.f32 %v2687, %v2688
  %v2690 = vsel %vm2641, %v2603, 0.0
  %v2691 = vadd.f32 %v2689, %v2690
  %v2692 = vsel %vm2641, %v2604, 0.0
  %v2693 = vadd.f32 %v2691, %v2692
  %v2694 = vsel %vm2641, %v2605, 0.0
  %v2695 = vadd.f32 %v2693, %v2694
  %v2696 = vsel %vm2641, %v2606, 0.0
  %v2697 = vadd.f32 %v2695, %v2696
  %v2698 = vsel %vm2641, %v2607, 0.0
  %v2699 = vadd.f32 %v2697, %v2698
  %v2700 = vsel %vm2641, %v2608, 0.0
  %v2701 = vadd.f32 %v2699, %v2700
  %v2702 = vsel %vm2641, %v2609, 0.0
  %v2703 = vsel %vm2641, %v2610, 0.0
  %v2704 = vadd.f32 %v2702, %v2703
  %v2705 = vsel %vm2641, %v2611, 0.0
  %v2706 = vadd.f32 %v2704, %v2705
  %v2707 = vsel %vm2641, %v2612, 0.0
  %v2708 = vadd.f32 %v2706, %v2707
  %v2709 = vsel %vm2641, %v2613, 0.0
  %v2710 = vadd.f32 %v2708, %v2709
  %v2711 = vsel %vm2641, %v2614, 0.0
  %v2712 = vadd.f32 %v2710, %v2711
  %v2713 = vsel %vm2641, %v2615, 0.0
  %v2714 = vadd.f32 %v2712, %v2713
  %v2715 = vsel %vm2641, %v2616, 0.0
  %v2716 = vadd.f32 %v2714, %v2715
  %v2717 = vsel %vm2641, %v2617, 0.0
  %v2718 = vsel %vm2641, %v2618, 0.0
  %v2719 = vadd.f32 %v2717, %v2718
  %v2720 = vsel %vm2641, %v2619, 0.0
  %v2721 = vadd.f32 %v2719, %v2720
  %v2722 = vsel %vm2641, %v2620, 0.0
  %v2723 = vadd.f32 %v2721, %v2722
  %v2724 = vsel %vm2641, %v2621, 0.0
  %v2725 = vadd.f32 %v2723, %v2724
  %v2726 = vsel %vm2641, %v2622, 0.0
  %v2727 = vadd.f32 %v2725, %v2726
  %v2728 = vsel %vm2641, %v2623, 0.0
  %v2729 = vadd.f32 %v2727, %v2728
  %v2730 = vsel %vm2641, %v2624, 0.0
  %v2731 = vadd.f32 %v2729, %v2730
  %v2732 = vsel %vm2641, %v2625, 0.0
  %v2733 = vsel %vm2641, %v2626, 0.0
  %v2734 = vadd.f32 %v2732, %v2733
  %v2735 = vsel %vm2641, %v2627, 0.0
  %v2736 = vadd.f32 %v2734, %v2735
  %v2737 = vsel %vm2641, %v2628, 0.0
  %v2738 = vadd.f32 %v2736, %v2737
  %v2739 = vsel %vm2641, %v2629, 0.0
  %v2740 = vadd.f32 %v2738, %v2739
  %v2741 = vsel %vm2641, %v2630, 0.0
  %v2742 = vadd.f32 %v2740, %v2741
  %v2743 = vsel %vm2641, %v2631, 0.0
  %v2744 = vadd.f32 %v2742, %v2743
  %v2745 = vsel %vm2641, %v2632, 0.0
  %v2746 = vadd.f32 %v2744, %v2745
  %v2747 = vsel %vm2641, %v2633, 0.0
  %v2748 = vsel %vm2641, %v2634, 0.0
  %v2749 = vadd.f32 %v2747, %v2748
  %v2750 = vsel %vm2641, %v2635, 0.0
  %v2751 = vadd.f32 %v2749, %v2750
  %v2752 = vsel %vm2641, %v2636, 0.0
  %v2753 = vadd.f32 %v2751, %v2752
  %v2754 = vsel %vm2641, %v2637, 0.0
  %v2755 = vadd.f32 %v2753, %v2754
  %v2756 = vsel %vm2641, %v2638, 0.0
  %v2757 = vadd.f32 %v2755, %v2756
  %v2758 = vsel %vm2641, %v2639, 0.0
  %v2759 = vadd.f32 %v2757, %v2758
  %v2760 = vsel %vm2641, %v2640, 0.0
  %v2761 = vadd.f32 %v2759, %v2760
  %v2770 = vcombine.low %v2656, %v2671
  %v2771 = vcombine.low %v2686, %v2701
  %v2773 = vunpack.c.l.s4 1983009808
  %v2774 = vunpack.c.0.s8 %v2773
  %v2775 = vlaneseq
  %v2776 = vshrl.u32 %v2775, 7
  %v2777 = vsub.s32 %v2774, %v2776
  %v2778 = vrot.slane %v2770, %v2777
  %v2780 = vunpack.c.l.s4 1983009808
  %v2781 = vunpack.c.0.s8 %v2780
  %v2782 = vlaneseq
  %v2783 = vshrl.u32 %v2782, 7
  %v2784 = vsub.s32 %v2781, %v2783
  %v2785 = vrot.slane %v2771, %v2784
  %v2786 = vcombine.low %v2778, %v2785
  %v2787 = vcombine.low %v2716, %v2731
  %v2788 = vcombine.low %v2746, %v2761
  %v2790 = vunpack.c.l.s4 1983009808
  %v2791 = vunpack.c.0.s8 %v2790
  %v2792 = vlaneseq
  %v2793 = vshrl.u32 %v2792, 7
  %v2794 = vsub.s32 %v2791, %v2793
  %v2795 = vrot.slane %v2787, %v2794
  %v2797 = vunpack.c.l.s4 1983009808
  %v2798 = vunpack.c.0.s8 %v2797
  %v2799 = vlaneseq
  %v2800 = vshrl.u32 %v2799, 7
  %v2801 = vsub.s32 %v2798, %v2800
  %v2802 = vrot.slane %v2788, %v2801
  %v2803 = vcombine.low %v2795, %v2802
  %v2806 = vpack.c.bf16 %v2803, %v2786
  %v2807 = vld [vmem:[%s5] sm:$0xf]
  %v2808 = vld [vmem:[%s5 + $0x4] sm:$0xf]
  %v2809 = vld [vmem:[%s5 + $0x8] sm:$0xf]
  %v2810 = vld [vmem:[%s5 + $0xc] sm:$0xf]
  %v2811 = vld [vmem:[%s6] sm:$0x1]
  %v2813 = vlaneseq
  %v2814 = vshrl.u32 %v2813, 7
  %v2815 = vsub.s32 0, %v2814
  %v2816 = vrot.slane %v2811, %v2815
  %v2822 = vunpack.c.l.b16 %v2807
  %v2823 = vunpack.c.l.b16 %v2808
  %v2824 = vunpack.c.l.b16 %v2809
  %v2825 = vunpack.c.l.b16 %v2810
  %v2826 = vpack.c.b16 %v2823, %v2822
  %v2827 = vpack.c.b16 %v2825, %v2824
  %v2831 = vsel %vm135, %v2806, 0
  %2833 = vmatprep.subr.bf16.mxu0 0
  %2834 = vmatpush1.bf16.msra.mxu0 %v2826
  %2835 = vmatprep.subr.bf16.mxu0 0
  %2836 = vmatpush1.bf16.msra.mxu0 %v2827
  %2837 = vmatprep.subr.bf16.mxu0 0
  %2838 = vmatpush1.bf16.msra.mxu0 0
  %2839 = vmatprep.subr.bf16.mxu0 0
  %2840 = vmatpush1.bf16.msra.mxu0 0
  %2841 = vmatprep.subr.bf16.mxu0 0
  %2842 = vmatpush1.bf16.msra.mxu0 0
  %2843 = vmatprep.subr.bf16.mxu0 0
  %2844 = vmatpush1.bf16.msra.mxu0 0
  %2845 = vmatprep.subr.bf16.mxu0 0
  %2846 = vmatpush1.bf16.msra.mxu0 0
  %2847 = vmatprep.subr.bf16.mxu0 0
  %2848 = vmatpush1.bf16.msra.mxu0 0
  %2849 = vmatprep.subr.bf16.mxu0 0
  %2850 = vmatpush1.bf16.msra.mxu0 0
  %2851 = vmatprep.subr.bf16.mxu0 0
  %2852 = vmatpush1.bf16.msra.mxu0 0
  %2853 = vmatprep.subr.bf16.mxu0 0
  %2854 = vmatpush1.bf16.msra.mxu0 0
  %2855 = vmatprep.subr.bf16.mxu0 0
  %2856 = vmatpush1.bf16.msra.mxu0 0
  %2857 = vmatprep.subr.bf16.mxu0 0
  %2858 = vmatpush1.bf16.msra.mxu0 0
  %2859 = vmatprep.subr.bf16.mxu0 0
  %2860 = vmatpush1.bf16.msra.mxu0 0
  %2861 = vmatprep.subr.bf16.mxu0 0
  %2862 = vmatpush1.bf16.msra.mxu0 0
  %2863 = vmatprep.subr.bf16.mxu0 0
  %2864 = vmatpush1.bf16.msra.mxu0 0
  %2865 = vmatprep.mubr.bf16.mxu0 0
  %2866 = vmatmul.mubr.bf16.gmra.mrb[0].mxu0 %v2831
  %v2867 = vpop.f32.mrb[0].mxu0
  %v2868 = vadd.f32 %v2816, %v2867
  %v2869 = vpop.f32.mrb[0].mxu0
  %v2870 = vpop.f32.mrb[0].mxu0
  %v2871 = vadd.f32 %v2816, %v2870
  %v2872 = vpop.f32.mrb[0].mxu0
  %2873 = vdwg.mxu0
  %v2876 = vcombine.high %v2868, %v2868
  %v2878 = vunpack.c.l.s4 1983009808
  %v2879 = vunpack.c.0.s8 %v2878
  %v2880 = vlaneseq
  %v2881 = vshrl.u32 %v2880, 7
  %v2882 = vsub.s32 %v2879, %v2881
  %v2883 = vrot.slane %v2868, %v2882
  %v2885 = vunpack.c.l.s4 1983009808
  %v2886 = vunpack.c.0.s8 %v2885
  %v2887 = vlaneseq
  %v2888 = vshrl.u32 %v2887, 7
  %v2889 = vsub.s32 %v2886, %v2888
  %v2890 = vrot.slane %v2876, %v2889
  %v2891 = vcombine.high %v2883, %v2883
  %v2892 = vcombine.high %v2890, %v2890
  %v2893 = vcombine.high %v2871, %v2871
  %v2895 = vunpack.c.l.s4 1983009808
  %v2896 = vunpack.c.0.s8 %v2895
  %v2897 = vlaneseq
  %v2898 = vshrl.u32 %v2897, 7
  %v2899 = vsub.s32 %v2896, %v2898
  %v2900 = vrot.slane %v2871, %v2899
  %v2902 = vunpack.c.l.s4 1983009808
  %v2903 = vunpack.c.0.s8 %v2902
  %v2904 = vlaneseq
  %v2905 = vshrl.u32 %v2904, 7
  %v2906 = vsub.s32 %v2903, %v2905
  %v2907 = vrot.slane %v2893, %v2906
  %v2908 = vcombine.high %v2900, %v2900
  %v2909 = vcombine.high %v2907, %v2907
  %v2918 = vadd.f32 %v59, %v2883
  %v2919 = vadd.f32 %v60, %v2891
  %v2920 = vadd.f32 %v61, %v2890
  %v2921 = vadd.f32 %v62, %v2892
  %v2922 = vadd.f32 %v63, %v2900
  %v2923 = vadd.f32 %v64, %v2908
  %v2924 = vadd.f32 %v65, %v2907
  %v2925 = vadd.f32 %v66, %v2909
  %v2926 = vld [vmem:[%s7] sm:$0x1]
  %v2927 = vld [vmem:[%s8] sm:$0x1]
  %v2936 = vcombine.low %v2918, %v2919
  %v2937 = vcombine.low %v2920, %v2921
  %v2939 = vunpack.c.l.s4 1983009808
  %v2940 = vunpack.c.0.s8 %v2939
  %v2941 = vlaneseq
  %v2942 = vshrl.u32 %v2941, 7
  %v2943 = vsub.s32 %v2940, %v2942
  %v2944 = vrot.slane %v2936, %v2943
  %v2946 = vunpack.c.l.s4 1983009808
  %v2947 = vunpack.c.0.s8 %v2946
  %v2948 = vlaneseq
  %v2949 = vshrl.u32 %v2948, 7
  %v2950 = vsub.s32 %v2947, %v2949
  %v2951 = vrot.slane %v2937, %v2950
  %v2952 = vcombine.low %v2944, %v2951
  %v2953 = vcombine.low %v2922, %v2923
  %v2954 = vcombine.low %v2924, %v2925
  %v2956 = vunpack.c.l.s4 1983009808
  %v2957 = vunpack.c.0.s8 %v2956
  %v2958 = vlaneseq
  %v2959 = vshrl.u32 %v2958, 7
  %v2960 = vsub.s32 %v2957, %v2959
  %v2961 = vrot.slane %v2953, %v2960
  %v2963 = vunpack.c.l.s4 1983009808
  %v2964 = vunpack.c.0.s8 %v2963
  %v2965 = vlaneseq
  %v2966 = vshrl.u32 %v2965, 7
  %v2967 = vsub.s32 %v2964, %v2966
  %v2968 = vrot.slane %v2954, %v2967
  %v2969 = vcombine.low %v2961, %v2968
  %v2972 = vsel %vm135, %v2952, 0.0
  %2973 = vadd.xlane.f32.xlu0 %v2972
  %v2974 = vpop.xlane.xlu0 %2973
  %v2975 = vsel %vm135, %v2969, 0.0
  %2976 = vadd.xlane.f32.xlu0 %v2975
  %v2977 = vpop.xlane.xlu0 %2976
  %v2978 = vrcp.pop 32.0
  %v2979 = vmul.f32 %v2974, %v2978
  %v2980 = vmul.f32 %v2977, %v2978
  %v2984 = vunpack.c.l.s4 269488144
  %v2985 = vunpack.c.0.s8 %v2984
  %v2986 = vlaneseq
  %v2987 = vshrl.u32 %v2986, 7
  %v2988 = vsub.s32 %v2985, %v2987
  %v2989 = vrot.slane %v2979, %v2988
  %v2991 = vunpack.c.l.s4 842150450
  %v2992 = vunpack.c.0.s8 %v2991
  %v2993 = vlaneseq
  %v2994 = vshrl.u32 %v2993, 7
  %v2995 = vsub.s32 %v2992, %v2994
  %v2996 = vrot.slane %v2979, %v2995
  %v2998 = vunpack.c.l.s4 1414812756
  %v2999 = vunpack.c.0.s8 %v2998
  %v3000 = vlaneseq
  %v3001 = vshrl.u32 %v3000, 7
  %v3002 = vsub.s32 %v2999, %v3001
  %v3003 = vrot.slane %v2979, %v3002
  %v3005 = vunpack.c.l.s4 1987475062
  %v3006 = vunpack.c.0.s8 %v3005
  %v3007 = vlaneseq
  %v3008 = vshrl.u32 %v3007, 7
  %v3009 = vsub.s32 %v3006, %v3008
  %v3010 = vrot.slane %v2979, %v3009
  %v3012 = vunpack.c.l.s4 269488144
  %v3013 = vunpack.c.0.s8 %v3012
  %v3014 = vlaneseq
  %v3015 = vshrl.u32 %v3014, 7
  %v3016 = vsub.s32 %v3013, %v3015
  %v3017 = vrot.slane %v2980, %v3016
  %v3019 = vunpack.c.l.s4 842150450
  %v3020 = vunpack.c.0.s8 %v3019
  %v3021 = vlaneseq
  %v3022 = vshrl.u32 %v3021, 7
  %v3023 = vsub.s32 %v3020, %v3022
  %v3024 = vrot.slane %v2980, %v3023
  %v3026 = vunpack.c.l.s4 1414812756
  %v3027 = vunpack.c.0.s8 %v3026
  %v3028 = vlaneseq
  %v3029 = vshrl.u32 %v3028, 7
  %v3030 = vsub.s32 %v3027, %v3029
  %v3031 = vrot.slane %v2980, %v3030
  %v3033 = vunpack.c.l.s4 1987475062
  %v3034 = vunpack.c.0.s8 %v3033
  %v3035 = vlaneseq
  %v3036 = vshrl.u32 %v3035, 7
  %v3037 = vsub.s32 %v3034, %v3036
  %v3038 = vrot.slane %v2980, %v3037
  %v3047 = vsub.f32 %v2918, %v2989
  %v3048 = vsub.f32 %v2919, %v2996
  %v3049 = vsub.f32 %v2920, %v3003
  %v3050 = vsub.f32 %v2921, %v3010
  %v3051 = vsub.f32 %v2922, %v3017
  %v3052 = vsub.f32 %v2923, %v3024
  %v3053 = vsub.f32 %v2924, %v3031
  %v3054 = vsub.f32 %v2925, %v3038
  %v3055 = vmul.f32 %v3047, %v3047
  %v3056 = vmul.f32 %v3048, %v3048
  %v3057 = vmul.f32 %v3049, %v3049
  %v3058 = vmul.f32 %v3050, %v3050
  %v3059 = vmul.f32 %v3051, %v3051
  %v3060 = vmul.f32 %v3052, %v3052
  %v3061 = vmul.f32 %v3053, %v3053
  %v3062 = vmul.f32 %v3054, %v3054
  %v3071 = vcombine.low %v3055, %v3056
  %v3072 = vcombine.low %v3057, %v3058
  %v3074 = vunpack.c.l.s4 1983009808
  %v3075 = vunpack.c.0.s8 %v3074
  %v3076 = vlaneseq
  %v3077 = vshrl.u32 %v3076, 7
  %v3078 = vsub.s32 %v3075, %v3077
  %v3079 = vrot.slane %v3071, %v3078
  %v3081 = vunpack.c.l.s4 1983009808
  %v3082 = vunpack.c.0.s8 %v3081
  %v3083 = vlaneseq
  %v3084 = vshrl.u32 %v3083, 7
  %v3085 = vsub.s32 %v3082, %v3084
  %v3086 = vrot.slane %v3072, %v3085
  %v3087 = vcombine.low %v3079, %v3086
  %v3088 = vcombine.low %v3059, %v3060
  %v3089 = vcombine.low %v3061, %v3062
  %v3091 = vunpack.c.l.s4 1983009808
  %v3092 = vunpack.c.0.s8 %v3091
  %v3093 = vlaneseq
  %v3094 = vshrl.u32 %v3093, 7
  %v3095 = vsub.s32 %v3092, %v3094
  %v3096 = vrot.slane %v3088, %v3095
  %v3098 = vunpack.c.l.s4 1983009808
  %v3099 = vunpack.c.0.s8 %v3098
  %v3100 = vlaneseq
  %v3101 = vshrl.u32 %v3100, 7
  %v3102 = vsub.s32 %v3099, %v3101
  %v3103 = vrot.slane %v3089, %v3102
  %v3104 = vcombine.low %v3096, %v3103
  %v3107 = vsel %vm135, %v3087, 0.0
  %3108 = vadd.xlane.f32.xlu0 %v3107
  %v3109 = vpop.xlane.xlu0 %3108
  %v3110 = vsel %vm135, %v3104, 0.0
  %3111 = vadd.xlane.f32.xlu0 %v3110
  %v3112 = vpop.xlane.xlu0 %3111
  %v3113 = vmul.f32 %v3109, %v2978
  %v3114 = vmul.f32 %v3112, %v2978
  %v3115 = vadd.f32 %v3113, 1e-05
  %v3116 = vadd.f32 %v3114, 1e-05
  %v3117 = vrsqrt.pop %v3115
  %v3118 = vrsqrt.pop %v3116
  %v3122 = vunpack.c.l.s4 269488144
  %v3123 = vunpack.c.0.s8 %v3122
  %v3124 = vlaneseq
  %v3125 = vshrl.u32 %v3124, 7
  %v3126 = vsub.s32 %v3123, %v3125
  %v3127 = vrot.slane %v3117, %v3126
  %v3129 = vunpack.c.l.s4 842150450
  %v3130 = vunpack.c.0.s8 %v3129
  %v3131 = vlaneseq
  %v3132 = vshrl.u32 %v3131, 7
  %v3133 = vsub.s32 %v3130, %v3132
  %v3134 = vrot.slane %v3117, %v3133
  %v3136 = vunpack.c.l.s4 1414812756
  %v3137 = vunpack.c.0.s8 %v3136
  %v3138 = vlaneseq
  %v3139 = vshrl.u32 %v3138, 7
  %v3140 = vsub.s32 %v3137, %v3139
  %v3141 = vrot.slane %v3117, %v3140
  %v3143 = vunpack.c.l.s4 1987475062
  %v3144 = vunpack.c.0.s8 %v3143
  %v3145 = vlaneseq
  %v3146 = vshrl.u32 %v3145, 7
  %v3147 = vsub.s32 %v3144, %v3146
  %v3148 = vrot.slane %v3117, %v3147
  %v3150 = vunpack.c.l.s4 269488144
  %v3151 = vunpack.c.0.s8 %v3150
  %v3152 = vlaneseq
  %v3153 = vshrl.u32 %v3152, 7
  %v3154 = vsub.s32 %v3151, %v3153
  %v3155 = vrot.slane %v3118, %v3154
  %v3157 = vunpack.c.l.s4 842150450
  %v3158 = vunpack.c.0.s8 %v3157
  %v3159 = vlaneseq
  %v3160 = vshrl.u32 %v3159, 7
  %v3161 = vsub.s32 %v3158, %v3160
  %v3162 = vrot.slane %v3118, %v3161
  %v3164 = vunpack.c.l.s4 1414812756
  %v3165 = vunpack.c.0.s8 %v3164
  %v3166 = vlaneseq
  %v3167 = vshrl.u32 %v3166, 7
  %v3168 = vsub.s32 %v3165, %v3167
  %v3169 = vrot.slane %v3118, %v3168
  %v3171 = vunpack.c.l.s4 1987475062
  %v3172 = vunpack.c.0.s8 %v3171
  %v3173 = vlaneseq
  %v3174 = vshrl.u32 %v3173, 7
  %v3175 = vsub.s32 %v3172, %v3174
  %v3176 = vrot.slane %v3118, %v3175
  %v3185 = vmul.f32 %v3047, %v3127
  %v3186 = vmul.f32 %v3048, %v3134
  %v3187 = vmul.f32 %v3049, %v3141
  %v3188 = vmul.f32 %v3050, %v3148
  %v3189 = vmul.f32 %v3051, %v3155
  %v3190 = vmul.f32 %v3052, %v3162
  %v3191 = vmul.f32 %v3053, %v3169
  %v3192 = vmul.f32 %v3054, %v3176
  %v3194 = vlaneseq
  %v3195 = vshrl.u32 %v3194, 7
  %v3196 = vsub.s32 0, %v3195
  %v3197 = vrot.slane %v2926, %v3196
  %v3198 = vcombine.high %v3197, %v3197
  %v3200 = vunpack.c.l.s4 1983009808
  %v3201 = vunpack.c.0.s8 %v3200
  %v3202 = vlaneseq
  %v3203 = vshrl.u32 %v3202, 7
  %v3204 = vsub.s32 %v3201, %v3203
  %v3205 = vrot.slane %v3197, %v3204
  %v3207 = vunpack.c.l.s4 1983009808
  %v3208 = vunpack.c.0.s8 %v3207
  %v3209 = vlaneseq
  %v3210 = vshrl.u32 %v3209, 7
  %v3211 = vsub.s32 %v3208, %v3210
  %v3212 = vrot.slane %v3198, %v3211
  %v3213 = vcombine.high %v3205, %v3205
  %v3214 = vcombine.high %v3212, %v3212
  %v3219 = vmul.f32 %v3185, %v3205
  %v3220 = vmul.f32 %v3186, %v3213
  %v3221 = vmul.f32 %v3187, %v3212
  %v3222 = vmul.f32 %v3188, %v3214
  %v3223 = vmul.f32 %v3189, %v3205
  %v3224 = vmul.f32 %v3190, %v3213
  %v3225 = vmul.f32 %v3191, %v3212
  %v3226 = vmul.f32 %v3192, %v3214
  %v3228 = vlaneseq
  %v3229 = vshrl.u32 %v3228, 7
  %v3230 = vsub.s32 0, %v3229
  %v3231 = vrot.slane %v2927, %v3230
  %v3232 = vcombine.high %v3231, %v3231
  %v3234 = vunpack.c.l.s4 1983009808
  %v3235 = vunpack.c.0.s8 %v3234
  %v3236 = vlaneseq
  %v3237 = vshrl.u32 %v3236, 7
  %v3238 = vsub.s32 %v3235, %v3237
  %v3239 = vrot.slane %v3231, %v3238
  %v3241 = vunpack.c.l.s4 1983009808
  %v3242 = vunpack.c.0.s8 %v3241
  %v3243 = vlaneseq
  %v3244 = vshrl.u32 %v3243, 7
  %v3245 = vsub.s32 %v3242, %v3244
  %v3246 = vrot.slane %v3232, %v3245
  %v3247 = vcombine.high %v3239, %v3239
  %v3248 = vcombine.high %v3246, %v3246
  %v3253 = vadd.f32 %v3219, %v3239
  %v3254 = vadd.f32 %v3220, %v3247
  %v3255 = vadd.f32 %v3221, %v3246
  %v3256 = vadd.f32 %v3222, %v3248
  %v3257 = vadd.f32 %v3223, %v3239
  %v3258 = vadd.f32 %v3224, %v3247
  %v3259 = vadd.f32 %v3225, %v3246
  %v3260 = vadd.f32 %v3226, %v3248
  %v3269 = vcombine.low %v3253, %v3254
  %v3270 = vcombine.low %v3255, %v3256
  %v3272 = vunpack.c.l.s4 1983009808
  %v3273 = vunpack.c.0.s8 %v3272
  %v3274 = vlaneseq
  %v3275 = vshrl.u32 %v3274, 7
  %v3276 = vsub.s32 %v3273, %v3275
  %v3277 = vrot.slane %v3269, %v3276
  %v3279 = vunpack.c.l.s4 1983009808
  %v3280 = vunpack.c.0.s8 %v3279
  %v3281 = vlaneseq
  %v3282 = vshrl.u32 %v3281, 7
  %v3283 = vsub.s32 %v3280, %v3282
  %v3284 = vrot.slane %v3270, %v3283
  %v3285 = vcombine.low %v3277, %v3284
  %v3286 = vcombine.low %v3257, %v3258
  %v3287 = vcombine.low %v3259, %v3260
  %v3289 = vunpack.c.l.s4 1983009808
  %v3290 = vunpack.c.0.s8 %v3289
  %v3291 = vlaneseq
  %v3292 = vshrl.u32 %v3291, 7
  %v3293 = vsub.s32 %v3290, %v3292
  %v3294 = vrot.slane %v3286, %v3293
  %v3296 = vunpack.c.l.s4 1983009808
  %v3297 = vunpack.c.0.s8 %v3296
  %v3298 = vlaneseq
  %v3299 = vshrl.u32 %v3298, 7
  %v3300 = vsub.s32 %v3297, %v3299
  %v3301 = vrot.slane %v3287, %v3300
  %v3302 = vcombine.low %v3294, %v3301
  %v3305 = vpack.c.bf16 %v3302, %v3285
  %v3306 = vld [vmem:[%s9] sm:$0xff]
  %v3307 = vld [vmem:[%s9 + $0x8] sm:$0xff]
  %v3308 = vld [vmem:[%s9 + $0x10] sm:$0xff]
  %v3309 = vld [vmem:[%s9 + $0x18] sm:$0xff]
  %v3310 = vld [vmem:[%s9 + $0x20] sm:$0xff]
  %v3311 = vld [vmem:[%s9 + $0x28] sm:$0xff]
  %v3312 = vld [vmem:[%s9 + $0x30] sm:$0xff]
  %v3313 = vld [vmem:[%s9 + $0x38] sm:$0xff]
  %v3314 = vld [vmem:[%s9 + $0x40] sm:$0xff]
  %v3315 = vld [vmem:[%s9 + $0x48] sm:$0xff]
  %v3316 = vld [vmem:[%s9 + $0x50] sm:$0xff]
  %v3317 = vld [vmem:[%s9 + $0x58] sm:$0xff]
  %v3318 = vld [vmem:[%s9 + $0x60] sm:$0xff]
  %v3319 = vld [vmem:[%s9 + $0x68] sm:$0xff]
  %v3320 = vld [vmem:[%s9 + $0x70] sm:$0xff]
  %v3321 = vld [vmem:[%s9 + $0x78] sm:$0xff]
  %v3322 = vld [vmem:[%s9 + $0x80] sm:$0xff]
  %v3323 = vld [vmem:[%s9 + $0x88] sm:$0xff]
  %v3324 = vld [vmem:[%s9 + $0x90] sm:$0xff]
  %v3325 = vld [vmem:[%s9 + $0x98] sm:$0xff]
  %v3326 = vld [vmem:[%s9 + $0xa0] sm:$0xff]
  %v3327 = vld [vmem:[%s9 + $0xa8] sm:$0xff]
  %v3328 = vld [vmem:[%s9 + $0xb0] sm:$0xff]
  %v3329 = vld [vmem:[%s9 + $0xb8] sm:$0xff]
  %v3330 = vld [vmem:[%s9 + $0xc0] sm:$0xff]
  %v3331 = vld [vmem:[%s9 + $0xc8] sm:$0xff]
  %v3332 = vld [vmem:[%s9 + $0xd0] sm:$0xff]
  %v3333 = vld [vmem:[%s9 + $0xd8] sm:$0xff]
  %v3334 = vld [vmem:[%s9 + $0xe0] sm:$0xff]
  %v3335 = vld [vmem:[%s9 + $0xe8] sm:$0xff]
  %v3336 = vld [vmem:[%s9 + $0xf0] sm:$0xff]
  %v3337 = vld [vmem:[%s9 + $0xf8] sm:$0xff]
  %v3338 = vld [vmem:[%s10] sm:$0xff]
  %v3339 = vld [vmem:[%s10 + $0x8] sm:$0xff]
  %v3342 = vlaneseq
  %v3343 = vshrl.u32 %v3342, 7
  %v3344 = vsub.s32 0, %v3343
  %v3345 = vrot.slane %v3338, %v3344
  %v3346 = vlaneseq
  %v3347 = vshrl.u32 %v3346, 7
  %v3348 = vsub.s32 1, %v3347
  %v3349 = vrot.slane %v3338, %v3348
  %v3350 = vlaneseq
  %v3351 = vshrl.u32 %v3350, 7
  %v3352 = vsub.s32 2, %v3351
  %v3353 = vrot.slane %v3338, %v3352
  %v3354 = vlaneseq
  %v3355 = vshrl.u32 %v3354, 7
  %v3356 = vsub.s32 3, %v3355
  %v3357 = vrot.slane %v3338, %v3356
  %v3358 = vlaneseq
  %v3359 = vshrl.u32 %v3358, 7
  %v3360 = vsub.s32 4, %v3359
  %v3361 = vrot.slane %v3338, %v3360
  %v3362 = vlaneseq
  %v3363 = vshrl.u32 %v3362, 7
  %v3364 = vsub.s32 5, %v3363
  %v3365 = vrot.slane %v3338, %v3364
  %v3366 = vlaneseq
  %v3367 = vshrl.u32 %v3366, 7
  %v3368 = vsub.s32 6, %v3367
  %v3369 = vrot.slane %v3338, %v3368
  %v3370 = vlaneseq
  %v3371 = vshrl.u32 %v3370, 7
  %v3372 = vsub.s32 7, %v3371
  %v3373 = vrot.slane %v3338, %v3372
  %v3374 = vlaneseq
  %v3375 = vshrl.u32 %v3374, 7
  %v3376 = vsub.s32 0, %v3375
  %v3377 = vrot.slane %v3339, %v3376
  %v3378 = vlaneseq
  %v3379 = vshrl.u32 %v3378, 7
  %v3380 = vsub.s32 1, %v3379
  %v3381 = vrot.slane %v3339, %v3380
  %v3382 = vlaneseq
  %v3383 = vshrl.u32 %v3382, 7
  %v3384 = vsub.s32 2, %v3383
  %v3385 = vrot.slane %v3339, %v3384
  %v3386 = vlaneseq
  %v3387 = vshrl.u32 %v3386, 7
  %v3388 = vsub.s32 3, %v3387
  %v3389 = vrot.slane %v3339, %v3388
  %v3390 = vlaneseq
  %v3391 = vshrl.u32 %v3390, 7
  %v3392 = vsub.s32 4, %v3391
  %v3393 = vrot.slane %v3339, %v3392
  %v3394 = vlaneseq
  %v3395 = vshrl.u32 %v3394, 7
  %v3396 = vsub.s32 5, %v3395
  %v3397 = vrot.slane %v3339, %v3396
  %v3398 = vlaneseq
  %v3399 = vshrl.u32 %v3398, 7
  %v3400 = vsub.s32 6, %v3399
  %v3401 = vrot.slane %v3339, %v3400
  %v3402 = vlaneseq
  %v3403 = vshrl.u32 %v3402, 7
  %v3404 = vsub.s32 7, %v3403
  %v3405 = vrot.slane %v3339, %v3404
  %v3454 = vunpack.c.l.b16 %v3306
  %v3455 = vunpack.c.h.b16 %v3306
  %v3456 = vunpack.c.l.b16 %v3307
  %v3457 = vunpack.c.h.b16 %v3307
  %v3458 = vunpack.c.l.b16 %v3308
  %v3459 = vunpack.c.h.b16 %v3308
  %v3460 = vunpack.c.l.b16 %v3309
  %v3461 = vunpack.c.h.b16 %v3309
  %v3462 = vunpack.c.l.b16 %v3310
  %v3463 = vunpack.c.h.b16 %v3310
  %v3464 = vunpack.c.l.b16 %v3311
  %v3465 = vunpack.c.h.b16 %v3311
  %v3466 = vunpack.c.l.b16 %v3312
  %v3467 = vunpack.c.h.b16 %v3312
  %v3468 = vunpack.c.l.b16 %v3313
  %v3469 = vunpack.c.h.b16 %v3313
  %v3470 = vunpack.c.l.b16 %v3314
  %v3471 = vunpack.c.h.b16 %v3314
  %v3472 = vunpack.c.l.b16 %v3315
  %v3473 = vunpack.c.h.b16 %v3315
  %v3474 = vunpack.c.l.b16 %v3316
  %v3475 = vunpack.c.h.b16 %v3316
  %v3476 = vunpack.c.l.b16 %v3317
  %v3477 = vunpack.c.h.b16 %v3317
  %v3478 = vunpack.c.l.b16 %v3318
  %v3479 = vunpack.c.h.b16 %v3318
  %v3480 = vunpack.c.l.b16 %v3319
  %v3481 = vunpack.c.h.b16 %v3319
  %v3482 = vunpack.c.l.b16 %v3320
  %v3483 = vunpack.c.h.b16 %v3320
  %v3484 = vunpack.c.l.b16 %v3321
  %v3485 = vunpack.c.h.b16 %v3321
  %v3486 = vunpack.c.l.b16 %v3322
  %v3487 = vunpack.c.h.b16 %v3322
  %v3488 = vunpack.c.l.b16 %v3323
  %v3489 = vunpack.c.h.b16 %v3323
  %v3490 = vunpack.c.l.b16 %v3324
  %v3491 = vunpack.c.h.b16 %v3324
  %v3492 = vunpack.c.l.b16 %v3325
  %v3493 = vunpack.c.h.b16 %v3325
  %v3494 = vunpack.c.l.b16 %v3326
  %v3495 = vunpack.c.h.b16 %v3326
  %v3496 = vunpack.c.l.b16 %v3327
  %v3497 = vunpack.c.h.b16 %v3327
  %v3498 = vunpack.c.l.b16 %v3328
  %v3499 = vunpack.c.h.b16 %v3328
  %v3500 = vunpack.c.l.b16 %v3329
  %v3501 = vunpack.c.h.b16 %v3329
  %v3502 = vunpack.c.l.b16 %v3330
  %v3503 = vunpack.c.h.b16 %v3330
  %v3504 = vunpack.c.l.b16 %v3331
  %v3505 = vunpack.c.h.b16 %v3331
  %v3506 = vunpack.c.l.b16 %v3332
  %v3507 = vunpack.c.h.b16 %v3332
  %v3508 = vunpack.c.l.b16 %v3333
  %v3509 = vunpack.c.h.b16 %v3333
  %v3510 = vunpack.c.l.b16 %v3334
  %v3511 = vunpack.c.h.b16 %v3334
  %v3512 = vunpack.c.l.b16 %v3335
  %v3513 = vunpack.c.h.b16 %v3335
  %v3514 = vunpack.c.l.b16 %v3336
  %v3515 = vunpack.c.h.b16 %v3336
  %v3516 = vunpack.c.l.b16 %v3337
  %v3517 = vunpack.c.h.b16 %v3337
  %v3518 = vpack.c.b16 %v3470, %v3454
  %v3519 = vpack.c.b16 %v3471, %v3455
  %v3520 = vpack.c.b16 %v3472, %v3456
  %v3521 = vpack.c.b16 %v3473, %v3457
  %v3522 = vpack.c.b16 %v3474, %v3458
  %v3523 = vpack.c.b16 %v3475, %v3459
  %v3524 = vpack.c.b16 %v3476, %v3460
  %v3525 = vpack.c.b16 %v3477, %v3461
  %v3526 = vpack.c.b16 %v3478, %v3462
  %v3527 = vpack.c.b16 %v3479, %v3463
  %v3528 = vpack.c.b16 %v3480, %v3464
  %v3529 = vpack.c.b16 %v3481, %v3465
  %v3530 = vpack.c.b16 %v3482, %v3466
  %v3531 = vpack.c.b16 %v3483, %v3467
  %v3532 = vpack.c.b16 %v3484, %v3468
  %v3533 = vpack.c.b16 %v3485, %v3469
  %v3534 = vpack.c.b16 %v3502, %v3486
  %v3535 = vpack.c.b16 %v3503, %v3487
  %v3536 = vpack.c.b16 %v3504, %v3488
  %v3537 = vpack.c.b16 %v3505, %v3489
  %v3538 = vpack.c.b16 %v3506, %v3490
  %v3539 = vpack.c.b16 %v3507, %v3491
  %v3540 = vpack.c.b16 %v3508, %v3492
  %v3541 = vpack.c.b16 %v3509, %v3493
  %v3542 = vpack.c.b16 %v3510, %v3494
  %v3543 = vpack.c.b16 %v3511, %v3495
  %v3544 = vpack.c.b16 %v3512, %v3496
  %v3545 = vpack.c.b16 %v3513, %v3497
  %v3546 = vpack.c.b16 %v3514, %v3498
  %v3547 = vpack.c.b16 %v3515, %v3499
  %v3548 = vpack.c.b16 %v3516, %v3500
  %v3549 = vpack.c.b16 %v3517, %v3501
  %v3583 = vsel %vm135, %v3305, 0
  %3585 = vmatprep.subr.bf16.mxu0 %v3519
  %3586 = vmatpush1.bf16.msra.mxu0 %v3518
  %3587 = vmatprep.subr.bf16.mxu0 %v3535
  %3588 = vmatpush1.bf16.msra.mxu0 %v3534
  %3589 = vmatprep.subr.bf16.mxu0 0
  %3590 = vmatpush1.bf16.msra.mxu0 0
  %3591 = vmatprep.subr.bf16.mxu0 0
  %3592 = vmatpush1.bf16.msra.mxu0 0
  %3593 = vmatprep.subr.bf16.mxu0 0
  %3594 = vmatpush1.bf16.msra.mxu0 0
  %3595 = vmatprep.subr.bf16.mxu0 0
  %3596 = vmatpush1.bf16.msra.mxu0 0
  %3597 = vmatprep.subr.bf16.mxu0 0
  %3598 = vmatpush1.bf16.msra.mxu0 0
  %3599 = vmatprep.subr.bf16.mxu0 0
  %3600 = vmatpush1.bf16.msra.mxu0 0
  %3601 = vmatprep.subr.bf16.mxu0 0
  %3602 = vmatpush1.bf16.msra.mxu0 0
  %3603 = vmatprep.subr.bf16.mxu0 0
  %3604 = vmatpush1.bf16.msra.mxu0 0
  %3605 = vmatprep.subr.bf16.mxu0 0
  %3606 = vmatpush1.bf16.msra.mxu0 0
  %3607 = vmatprep.subr.bf16.mxu0 0
  %3608 = vmatpush1.bf16.msra.mxu0 0
  %3609 = vmatprep.subr.bf16.mxu0 0
  %3610 = vmatpush1.bf16.msra.mxu0 0
  %3611 = vmatprep.subr.bf16.mxu0 0
  %3612 = vmatpush1.bf16.msra.mxu0 0
  %3613 = vmatprep.subr.bf16.mxu0 0
  %3614 = vmatpush1.bf16.msra.mxu0 0
  %3615 = vmatprep.subr.bf16.mxu0 0
  %3616 = vmatpush1.bf16.msra.mxu0 0
  %3617 = vmatprep.mubr.bf16.mxu0 0
  %3618 = vmatmul.mubr.bf16.gmra.mrb[0].mxu0 %v3583
  %v3619 = vpop.f32.mrb[0].mxu0
  %v3620 = vadd.f32 %v3345, %v3619
  %v3621 = vpop.f32.mrb[0].mxu0
  %v3622 = vadd.f32 %v3349, %v3621
  %v3623 = vpop.f32.mrb[0].mxu0
  %v3624 = vadd.f32 %v3345, %v3623
  %v3625 = vpop.f32.mrb[0].mxu0
  %v3626 = vadd.f32 %v3349, %v3625
  %3627 = vdwg.mxu0
  %3628 = vmatprep.subr.bf16.mxu0 %v3521
  %3629 = vmatpush1.bf16.msra.mxu0 %v3520
  %3630 = vmatprep.subr.bf16.mxu0 %v3537
  %3631 = vmatpush1.bf16.msra.mxu0 %v3536
  %3632 = vmatprep.subr.bf16.mxu0 0
  %3633 = vmatpush1.bf16.msra.mxu0 0
  %3634 = vmatprep.subr.bf16.mxu0 0
  %3635 = vmatpush1.bf16.msra.mxu0 0
  %3636 = vmatprep.subr.bf16.mxu0 0
  %3637 = vmatpush1.bf16.msra.mxu0 0
  %3638 = vmatprep.subr.bf16.mxu0 0
  %3639 = vmatpush1.bf16.msra.mxu0 0
  %3640 = vmatprep.subr.bf16.mxu0 0
  %3641 = vmatpush1.bf16.msra.mxu0 0
  %3642 = vmatprep.subr.bf16.mxu0 0
  %3643 = vmatpush1.bf16.msra.mxu0 0
  %3644 = vmatprep.subr.bf16.mxu0 0
  %3645 = vmatpush1.bf16.msra.mxu0 0
  %3646 = vmatprep.subr.bf16.mxu0 0
  %3647 = vmatpush1.bf16.msra.mxu0 0
  %3648 = vmatprep.subr.bf16.mxu0 0
  %3649 = vmatpush1.bf16.msra.mxu0 0
  %3650 = vmatprep.subr.bf16.mxu0 0
  %3651 = vmatpush1.bf16.msra.mxu0 0
  %3652 = vmatprep.subr.bf16.mxu0 0
  %3653 = vmatpush1.bf16.msra.mxu0 0
  %3654 = vmatprep.subr.bf16.mxu0 0
  %3655 = vmatpush1.bf16.msra.mxu0 0
  %3656 = vmatprep.subr.bf16.mxu0 0
  %3657 = vmatpush1.bf16.msra.mxu0 0
  %3658 = vmatprep.subr.bf16.mxu0 0
  %3659 = vmatpush1.bf16.msra.mxu0 0
  %3660 = vmatprep.mubr.bf16.mxu0 0
  %3661 = vmatmul.mubr.bf16.gmra.mrb[0].mxu0 %v3583
  %v3662 = vpop.f32.mrb[0].mxu0
  %v3663 = vadd.f32 %v3353, %v3662
  %v3664 = vpop.f32.mrb[0].mxu0
  %v3665 = vadd.f32 %v3357, %v3664
  %v3666 = vpop.f32.mrb[0].mxu0
  %v3667 = vadd.f32 %v3353, %v3666
  %v3668 = vpop.f32.mrb[0].mxu0
  %v3669 = vadd.f32 %v3357, %v3668
  %3670 = vdwg.mxu0
  %3671 = vmatprep.subr.bf16.mxu0 %v3523
  %3672 = vmatpush1.bf16.msra.mxu0 %v3522
  %3673 = vmatprep.subr.bf16.mxu0 %v3539
  %3674 = vmatpush1.bf16.msra.mxu0 %v3538
  %3675 = vmatprep.subr.bf16.mxu0 0
  %3676 = vmatpush1.bf16.msra.mxu0 0
  %3677 = vmatprep.subr.bf16.mxu0 0
  %3678 = vmatpush1.bf16.msra.mxu0 0
  %3679 = vmatprep.subr.bf16.mxu0 0
  %3680 = vmatpush1.bf16.msra.mxu0 0
  %3681 = vmatprep.subr.bf16.mxu0 0
  %3682 = vmatpush1.bf16.msra.mxu0 0
  %3683 = vmatprep.subr.bf16.mxu0 0
  %3684 = vmatpush1.bf16.msra.mxu0 0
  %3685 = vmatprep.subr.bf16.mxu0 0
  %3686 = vmatpush1.bf16.msra.mxu0 0
  %3687 = vmatprep.subr.bf16.mxu0 0
  %3688 = vmatpush1.bf16.msra.mxu0 0
  %3689 = vmatprep.subr.bf16.mxu0 0
  %3690 = vmatpush1.bf16.msra.mxu0 0
  %3691 = vmatprep.subr.bf16.mxu0 0
  %3692 = vmatpush1.bf16.msra.mxu0 0
  %3693 = vmatprep.subr.bf16.mxu0 0
  %3694 = vmatpush1.bf16.msra.mxu0 0
  %3695 = vmatprep.subr.bf16.mxu0 0
  %3696 = vmatpush1.bf16.msra.mxu0 0
  %3697 = vmatprep.subr.bf16.mxu0 0
  %3698 = vmatpush1.bf16.msra.mxu0 0
  %3699 = vmatprep.subr.bf16.mxu0 0
  %3700 = vmatpush1.bf16.msra.mxu0 0
  %3701 = vmatprep.subr.bf16.mxu0 0
  %3702 = vmatpush1.bf16.msra.mxu0 0
  %3703 = vmatprep.mubr.bf16.mxu0 0
  %3704 = vmatmul.mubr.bf16.gmra.mrb[0].mxu0 %v3583
  %v3705 = vpop.f32.mrb[0].mxu0
  %v3706 = vadd.f32 %v3361, %v3705
  %v3707 = vpop.f32.mrb[0].mxu0
  %v3708 = vadd.f32 %v3365, %v3707
  %v3709 = vpop.f32.mrb[0].mxu0
  %v3710 = vadd.f32 %v3361, %v3709
  %v3711 = vpop.f32.mrb[0].mxu0
  %v3712 = vadd.f32 %v3365, %v3711
  %3713 = vdwg.mxu0
  %3714 = vmatprep.subr.bf16.mxu0 %v3525
  %3715 = vmatpush1.bf16.msra.mxu0 %v3524
  %3716 = vmatprep.subr.bf16.mxu0 %v3541
  %3717 = vmatpush1.bf16.msra.mxu0 %v3540
  %3718 = vmatprep.subr.bf16.mxu0 0
  %3719 = vmatpush1.bf16.msra.mxu0 0
  %3720 = vmatprep.subr.bf16.mxu0 0
  %3721 = vmatpush1.bf16.msra.mxu0 0
  %3722 = vmatprep.subr.bf16.mxu0 0
  %3723 = vmatpush1.bf16.msra.mxu0 0
  %3724 = vmatprep.subr.bf16.mxu0 0
  %3725 = vmatpush1.bf16.msra.mxu0 0
  %3726 = vmatprep.subr.bf16.mxu0 0
  %3727 = vmatpush1.bf16.msra.mxu0 0
  %3728 = vmatprep.subr.bf16.mxu0 0
  %3729 = vmatpush1.bf16.msra.mxu0 0
  %3730 = vmatprep.subr.bf16.mxu0 0
  %3731 = vmatpush1.bf16.msra.mxu0 0
  %3732 = vmatprep.subr.bf16.mxu0 0
  %3733 = vmatpush1.bf16.msra.mxu0 0
  %3734 = vmatprep.subr.bf16.mxu0 0
  %3735 = vmatpush1.bf16.msra.mxu0 0
  %3736 = vmatprep.subr.bf16.mxu0 0
  %3737 = vmatpush1.bf16.msra.mxu0 0
  %3738 = vmatprep.subr.bf16.mxu0 0
  %3739 = vmatpush1.bf16.msra.mxu0 0
  %3740 = vmatprep.subr.bf16.mxu0 0
  %3741 = vmatpush1.bf16.msra.mxu0 0
  %3742 = vmatprep.subr.bf16.mxu0 0
  %3743 = vmatpush1.bf16.msra.mxu0 0
  %3744 = vmatprep.subr.bf16.mxu0 0
  %3745 = vmatpush1.bf16.msra.mxu0 0
  %3746 = vmatprep.mubr.bf16.mxu0 0
  %3747 = vmatmul.mubr.bf16.gmra.mrb[0].mxu0 %v3583
  %v3748 = vpop.f32.mrb[0].mxu0
  %v3749 = vadd.f32 %v3369, %v3748
  %v3750 = vpop.f32.mrb[0].mxu0
  %v3751 = vadd.f32 %v3373, %v3750
  %v3752 = vpop.f32.mrb[0].mxu0
  %v3753 = vadd.f32 %v3369, %v3752
  %v3754 = vpop.f32.mrb[0].mxu0
  %v3755 = vadd.f32 %v3373, %v3754
  %3756 = vdwg.mxu0
  %3757 = vmatprep.subr.bf16.mxu0 %v3527
  %3758 = vmatpush1.bf16.msra.mxu0 %v3526
  %3759 = vmatprep.subr.bf16.mxu0 %v3543
  %3760 = vmatpush1.bf16.msra.mxu0 %v3542
  %3761 = vmatprep.subr.bf16.mxu0 0
  %3762 = vmatpush1.bf16.msra.mxu0 0
  %3763 = vmatprep.subr.bf16.mxu0 0
  %3764 = vmatpush1.bf16.msra.mxu0 0
  %3765 = vmatprep.subr.bf16.mxu0 0
  %3766 = vmatpush1.bf16.msra.mxu0 0
  %3767 = vmatprep.subr.bf16.mxu0 0
  %3768 = vmatpush1.bf16.msra.mxu0 0
  %3769 = vmatprep.subr.bf16.mxu0 0
  %3770 = vmatpush1.bf16.msra.mxu0 0
  %3771 = vmatprep.subr.bf16.mxu0 0
  %3772 = vmatpush1.bf16.msra.mxu0 0
  %3773 = vmatprep.subr.bf16.mxu0 0
  %3774 = vmatpush1.bf16.msra.mxu0 0
  %3775 = vmatprep.subr.bf16.mxu0 0
  %3776 = vmatpush1.bf16.msra.mxu0 0
  %3777 = vmatprep.subr.bf16.mxu0 0
  %3778 = vmatpush1.bf16.msra.mxu0 0
  %3779 = vmatprep.subr.bf16.mxu0 0
  %3780 = vmatpush1.bf16.msra.mxu0 0
  %3781 = vmatprep.subr.bf16.mxu0 0
  %3782 = vmatpush1.bf16.msra.mxu0 0
  %3783 = vmatprep.subr.bf16.mxu0 0
  %3784 = vmatpush1.bf16.msra.mxu0 0
  %3785 = vmatprep.subr.bf16.mxu0 0
  %3786 = vmatpush1.bf16.msra.mxu0 0
  %3787 = vmatprep.subr.bf16.mxu0 0
  %3788 = vmatpush1.bf16.msra.mxu0 0
  %3789 = vmatprep.mubr.bf16.mxu0 0
  %3790 = vmatmul.mubr.bf16.gmra.mrb[0].mxu0 %v3583
  %v3791 = vpop.f32.mrb[0].mxu0
  %v3792 = vadd.f32 %v3377, %v3791
  %v3793 = vpop.f32.mrb[0].mxu0
  %v3794 = vadd.f32 %v3381, %v3793
  %v3795 = vpop.f32.mrb[0].mxu0
  %v3796 = vadd.f32 %v3377, %v3795
  %v3797 = vpop.f32.mrb[0].mxu0
  %v3798 = vadd.f32 %v3381, %v3797
  %3799 = vdwg.mxu0
  %3800 = vmatprep.subr.bf16.mxu0 %v3529
  %3801 = vmatpush1.bf16.msra.mxu0 %v3528
  %3802 = vmatprep.subr.bf16.mxu0 %v3545
  %3803 = vmatpush1.bf16.msra.mxu0 %v3544
  %3804 = vmatprep.subr.bf16.mxu0 0
  %3805 = vmatpush1.bf16.msra.mxu0 0
  %3806 = vmatprep.subr.bf16.mxu0 0
  %3807 = vmatpush1.bf16.msra.mxu0 0
  %3808 = vmatprep.subr.bf16.mxu0 0
  %3809 = vmatpush1.bf16.msra.mxu0 0
  %3810 = vmatprep.subr.bf16.mxu0 0
  %3811 = vmatpush1.bf16.msra.mxu0 0
  %3812 = vmatprep.subr.bf16.mxu0 0
  %3813 = vmatpush1.bf16.msra.mxu0 0
  %3814 = vmatprep.subr.bf16.mxu0 0
  %3815 = vmatpush1.bf16.msra.mxu0 0
  %3816 = vmatprep.subr.bf16.mxu0 0
  %3817 = vmatpush1.bf16.msra.mxu0 0
  %3818 = vmatprep.subr.bf16.mxu0 0
  %3819 = vmatpush1.bf16.msra.mxu0 0
  %3820 = vmatprep.subr.bf16.mxu0 0
  %3821 = vmatpush1.bf16.msra.mxu0 0
  %3822 = vmatprep.subr.bf16.mxu0 0
  %3823 = vmatpush1.bf16.msra.mxu0 0
  %3824 = vmatprep.subr.bf16.mxu0 0
  %3825 = vmatpush1.bf16.msra.mxu0 0
  %3826 = vmatprep.subr.bf16.mxu0 0
  %3827 = vmatpush1.bf16.msra.mxu0 0
  %3828 = vmatprep.subr.bf16.mxu0 0
  %3829 = vmatpush1.bf16.msra.mxu0 0
  %3830 = vmatprep.subr.bf16.mxu0 0
  %3831 = vmatpush1.bf16.msra.mxu0 0
  %3832 = vmatprep.mubr.bf16.mxu0 0
  %3833 = vmatmul.mubr.bf16.gmra.mrb[0].mxu0 %v3583
  %v3834 = vpop.f32.mrb[0].mxu0
  %v3835 = vadd.f32 %v3385, %v3834
  %v3836 = vpop.f32.mrb[0].mxu0
  %v3837 = vadd.f32 %v3389, %v3836
  %v3838 = vpop.f32.mrb[0].mxu0
  %v3839 = vadd.f32 %v3385, %v3838
  %v3840 = vpop.f32.mrb[0].mxu0
  %v3841 = vadd.f32 %v3389, %v3840
  %3842 = vdwg.mxu0
  %3843 = vmatprep.subr.bf16.mxu0 %v3531
  %3844 = vmatpush1.bf16.msra.mxu0 %v3530
  %3845 = vmatprep.subr.bf16.mxu0 %v3547
  %3846 = vmatpush1.bf16.msra.mxu0 %v3546
  %3847 = vmatprep.subr.bf16.mxu0 0
  %3848 = vmatpush1.bf16.msra.mxu0 0
  %3849 = vmatprep.subr.bf16.mxu0 0
  %3850 = vmatpush1.bf16.msra.mxu0 0
  %3851 = vmatprep.subr.bf16.mxu0 0
  %3852 = vmatpush1.bf16.msra.mxu0 0
  %3853 = vmatprep.subr.bf16.mxu0 0
  %3854 = vmatpush1.bf16.msra.mxu0 0
  %3855 = vmatprep.subr.bf16.mxu0 0
  %3856 = vmatpush1.bf16.msra.mxu0 0
  %3857 = vmatprep.subr.bf16.mxu0 0
  %3858 = vmatpush1.bf16.msra.mxu0 0
  %3859 = vmatprep.subr.bf16.mxu0 0
  %3860 = vmatpush1.bf16.msra.mxu0 0
  %3861 = vmatprep.subr.bf16.mxu0 0
  %3862 = vmatpush1.bf16.msra.mxu0 0
  %3863 = vmatprep.subr.bf16.mxu0 0
  %3864 = vmatpush1.bf16.msra.mxu0 0
  %3865 = vmatprep.subr.bf16.mxu0 0
  %3866 = vmatpush1.bf16.msra.mxu0 0
  %3867 = vmatprep.subr.bf16.mxu0 0
  %3868 = vmatpush1.bf16.msra.mxu0 0
  %3869 = vmatprep.subr.bf16.mxu0 0
  %3870 = vmatpush1.bf16.msra.mxu0 0
  %3871 = vmatprep.subr.bf16.mxu0 0
  %3872 = vmatpush1.bf16.msra.mxu0 0
  %3873 = vmatprep.subr.bf16.mxu0 0
  %3874 = vmatpush1.bf16.msra.mxu0 0
  %3875 = vmatprep.mubr.bf16.mxu0 0
  %3876 = vmatmul.mubr.bf16.gmra.mrb[0].mxu0 %v3583
  %v3877 = vpop.f32.mrb[0].mxu0
  %v3878 = vadd.f32 %v3393, %v3877
  %v3879 = vpop.f32.mrb[0].mxu0
  %v3880 = vadd.f32 %v3397, %v3879
  %v3881 = vpop.f32.mrb[0].mxu0
  %v3882 = vadd.f32 %v3393, %v3881
  %v3883 = vpop.f32.mrb[0].mxu0
  %v3884 = vadd.f32 %v3397, %v3883
  %3885 = vdwg.mxu0
  %3886 = vmatprep.subr.bf16.mxu0 %v3533
  %3887 = vmatpush1.bf16.msra.mxu0 %v3532
  %3888 = vmatprep.subr.bf16.mxu0 %v3549
  %3889 = vmatpush1.bf16.msra.mxu0 %v3548
  %3890 = vmatprep.subr.bf16.mxu0 0
  %3891 = vmatpush1.bf16.msra.mxu0 0
  %3892 = vmatprep.subr.bf16.mxu0 0
  %3893 = vmatpush1.bf16.msra.mxu0 0
  %3894 = vmatprep.subr.bf16.mxu0 0
  %3895 = vmatpush1.bf16.msra.mxu0 0
  %3896 = vmatprep.subr.bf16.mxu0 0
  %3897 = vmatpush1.bf16.msra.mxu0 0
  %3898 = vmatprep.subr.bf16.mxu0 0
  %3899 = vmatpush1.bf16.msra.mxu0 0
  %3900 = vmatprep.subr.bf16.mxu0 0
  %3901 = vmatpush1.bf16.msra.mxu0 0
  %3902 = vmatprep.subr.bf16.mxu0 0
  %3903 = vmatpush1.bf16.msra.mxu0 0
  %3904 = vmatprep.subr.bf16.mxu0 0
  %3905 = vmatpush1.bf16.msra.mxu0 0
  %3906 = vmatprep.subr.bf16.mxu0 0
  %3907 = vmatpush1.bf16.msra.mxu0 0
  %3908 = vmatprep.subr.bf16.mxu0 0
  %3909 = vmatpush1.bf16.msra.mxu0 0
  %3910 = vmatprep.subr.bf16.mxu0 0
  %3911 = vmatpush1.bf16.msra.mxu0 0
  %3912 = vmatprep.subr.bf16.mxu0 0
  %3913 = vmatpush1.bf16.msra.mxu0 0
  %3914 = vmatprep.subr.bf16.mxu0 0
  %3915 = vmatpush1.bf16.msra.mxu0 0
  %3916 = vmatprep.subr.bf16.mxu0 0
  %3917 = vmatpush1.bf16.msra.mxu0 0
  %3918 = vmatprep.mubr.bf16.mxu0 0
  %3919 = vmatmul.mubr.bf16.gmra.mrb[0].mxu0 %v3583
  %v3920 = vpop.f32.mrb[0].mxu0
  %v3921 = vadd.f32 %v3401, %v3920
  %v3922 = vpop.f32.mrb[0].mxu0
  %v3923 = vadd.f32 %v3405, %v3922
  %v3924 = vpop.f32.mrb[0].mxu0
  %v3925 = vadd.f32 %v3401, %v3924
  %v3926 = vpop.f32.mrb[0].mxu0
  %v3927 = vadd.f32 %v3405, %v3926
  %3928 = vdwg.mxu0
  %v3929 = vmax.f32 %v3620, 0.0
  %v3930 = vmax.f32 %v3622, 0.0
  %v3931 = vmax.f32 %v3663, 0.0
  %v3932 = vmax.f32 %v3665, 0.0
  %v3933 = vmax.f32 %v3706, 0.0
  %v3934 = vmax.f32 %v3708, 0.0
  %v3935 = vmax.f32 %v3749, 0.0
  %v3936 = vmax.f32 %v3751, 0.0
  %v3937 = vmax.f32 %v3792, 0.0
  %v3938 = vmax.f32 %v3794, 0.0
  %v3939 = vmax.f32 %v3835, 0.0
  %v3940 = vmax.f32 %v3837, 0.0
  %v3941 = vmax.f32 %v3878, 0.0
  %v3942 = vmax.f32 %v3880, 0.0
  %v3943 = vmax.f32 %v3921, 0.0
  %v3944 = vmax.f32 %v3923, 0.0
  %v3945 = vmax.f32 %v3624, 0.0
  %v3946 = vmax.f32 %v3626, 0.0
  %v3947 = vmax.f32 %v3667, 0.0
  %v3948 = vmax.f32 %v3669, 0.0
  %v3949 = vmax.f32 %v3710, 0.0
  %v3950 = vmax.f32 %v3712, 0.0
  %v3951 = vmax.f32 %v3753, 0.0
  %v3952 = vmax.f32 %v3755, 0.0
  %v3953 = vmax.f32 %v3796, 0.0
  %v3954 = vmax.f32 %v3798, 0.0
  %v3955 = vmax.f32 %v3839, 0.0
  %v3956 = vmax.f32 %v3841, 0.0
  %v3957 = vmax.f32 %v3882, 0.0
  %v3958 = vmax.f32 %v3884, 0.0
  %v3959 = vmax.f32 %v3925, 0.0
  %v3960 = vmax.f32 %v3927, 0.0
  %v3961 = vpack.c.bf16 %v3945, %v3929
  %v3962 = vpack.c.bf16 %v3946, %v3930
  %v3963 = vpack.c.bf16 %v3947, %v3931
  %v3964 = vpack.c.bf16 %v3948, %v3932
  %v3965 = vpack.c.bf16 %v3949, %v3933
  %v3966 = vpack.c.bf16 %v3950, %v3934
  %v3967 = vpack.c.bf16 %v3951, %v3935
  %v3968 = vpack.c.bf16 %v3952, %v3936
  %v3969 = vpack.c.bf16 %v3953, %v3937
  %v3970 = vpack.c.bf16 %v3954, %v3938
  %v3971 = vpack.c.bf16 %v3955, %v3939
  %v3972 = vpack.c.bf16 %v3956, %v3940
  %v3973 = vpack.c.bf16 %v3957, %v3941
  %v3974 = vpack.c.bf16 %v3958, %v3942
  %v3975 = vpack.c.bf16 %v3959, %v3943
  %v3976 = vpack.c.bf16 %v3960, %v3944
  %v3977 = vld [vmem:[%s11] sm:$0xf]
  %v3978 = vld [vmem:[%s11 + $0x4] sm:$0xf]
  %v3979 = vld [vmem:[%s11 + $0x8] sm:$0xf]
  %v3980 = vld [vmem:[%s11 + $0xc] sm:$0xf]
  %v3981 = vld [vmem:[%s11 + $0x10] sm:$0xf]
  %v3982 = vld [vmem:[%s11 + $0x14] sm:$0xf]
  %v3983 = vld [vmem:[%s11 + $0x18] sm:$0xf]
  %v3984 = vld [vmem:[%s11 + $0x1c] sm:$0xf]
  %v3985 = vld [vmem:[%s11 + $0x20] sm:$0xf]
  %v3986 = vld [vmem:[%s11 + $0x24] sm:$0xf]
  %v3987 = vld [vmem:[%s11 + $0x28] sm:$0xf]
  %v3988 = vld [vmem:[%s11 + $0x2c] sm:$0xf]
  %v3989 = vld [vmem:[%s11 + $0x30] sm:$0xf]
  %v3990 = vld [vmem:[%s11 + $0x34] sm:$0xf]
  %v3991 = vld [vmem:[%s11 + $0x38] sm:$0xf]
  %v3992 = vld [vmem:[%s11 + $0x3c] sm:$0xf]
  %v3993 = vld [vmem:[%s11 + $0x40] sm:$0xf]
  %v3994 = vld [vmem:[%s11 + $0x44] sm:$0xf]
  %v3995 = vld [vmem:[%s11 + $0x48] sm:$0xf]
  %v3996 = vld [vmem:[%s11 + $0x4c] sm:$0xf]
  %v3997 = vld [vmem:[%s11 + $0x50] sm:$0xf]
  %v3998 = vld [vmem:[%s11 + $0x54] sm:$0xf]
  %v3999 = vld [vmem:[%s11 + $0x58] sm:$0xf]
  %v4000 = vld [vmem:[%s11 + $0x5c] sm:$0xf]
  %v4001 = vld [vmem:[%s11 + $0x60] sm:$0xf]
  %v4002 = vld [vmem:[%s11 + $0x64] sm:$0xf]
  %v4003 = vld [vmem:[%s11 + $0x68] sm:$0xf]
  %v4004 = vld [vmem:[%s11 + $0x6c] sm:$0xf]
  %v4005 = vld [vmem:[%s11 + $0x70] sm:$0xf]
  %v4006 = vld [vmem:[%s11 + $0x74] sm:$0xf]
  %v4007 = vld [vmem:[%s11 + $0x78] sm:$0xf]
  %v4008 = vld [vmem:[%s11 + $0x7c] sm:$0xf]
  %v4009 = vld [vmem:[%s11 + $0x80] sm:$0xf]
  %v4010 = vld [vmem:[%s11 + $0x84] sm:$0xf]
  %v4011 = vld [vmem:[%s11 + $0x88] sm:$0xf]
  %v4012 = vld [vmem:[%s11 + $0x8c] sm:$0xf]
  %v4013 = vld [vmem:[%s11 + $0x90] sm:$0xf]
  %v4014 = vld [vmem:[%s11 + $0x94] sm:$0xf]
  %v4015 = vld [vmem:[%s11 + $0x98] sm:$0xf]
  %v4016 = vld [vmem:[%s11 + $0x9c] sm:$0xf]
  %v4017 = vld [vmem:[%s11 + $0xa0] sm:$0xf]
  %v4018 = vld [vmem:[%s11 + $0xa4] sm:$0xf]
  %v4019 = vld [vmem:[%s11 + $0xa8] sm:$0xf]
  %v4020 = vld [vmem:[%s11 + $0xac] sm:$0xf]
  %v4021 = vld [vmem:[%s11 + $0xb0] sm:$0xf]
  %v4022 = vld [vmem:[%s11 + $0xb4] sm:$0xf]
  %v4023 = vld [vmem:[%s11 + $0xb8] sm:$0xf]
  %v4024 = vld [vmem:[%s11 + $0xbc] sm:$0xf]
  %v4025 = vld [vmem:[%s11 + $0xc0] sm:$0xf]
  %v4026 = vld [vmem:[%s11 + $0xc4] sm:$0xf]
  %v4027 = vld [vmem:[%s11 + $0xc8] sm:$0xf]
  %v4028 = vld [vmem:[%s11 + $0xcc] sm:$0xf]
  %v4029 = vld [vmem:[%s11 + $0xd0] sm:$0xf]
  %v4030 = vld [vmem:[%s11 + $0xd4] sm:$0xf]
  %v4031 = vld [vmem:[%s11 + $0xd8] sm:$0xf]
  %v4032 = vld [vmem:[%s11 + $0xdc] sm:$0xf]
  %v4033 = vld [vmem:[%s11 + $0xe0] sm:$0xf]
  %v4034 = vld [vmem:[%s11 + $0xe4] sm:$0xf]
  %v4035 = vld [vmem:[%s11 + $0xe8] sm:$0xf]
  %v4036 = vld [vmem:[%s11 + $0xec] sm:$0xf]
  %v4037 = vld [vmem:[%s11 + $0xf0] sm:$0xf]
  %v4038 = vld [vmem:[%s11 + $0xf4] sm:$0xf]
  %v4039 = vld [vmem:[%s11 + $0xf8] sm:$0xf]
  %v4040 = vld [vmem:[%s11 + $0xfc] sm:$0xf]
  %v4041 = vld [vmem:[%s11 + $0x100] sm:$0xf]
  %v4042 = vld [vmem:[%s11 + $0x104] sm:$0xf]
  %v4043 = vld [vmem:[%s11 + $0x108] sm:$0xf]
  %v4044 = vld [vmem:[%s11 + $0x10c] sm:$0xf]
  %v4045 = vld [vmem:[%s11 + $0x110] sm:$0xf]
  %v4046 = vld [vmem:[%s11 + $0x114] sm:$0xf]
  %v4047 = vld [vmem:[%s11 + $0x118] sm:$0xf]
  %v4048 = vld [vmem:[%s11 + $0x11c] sm:$0xf]
  %v4049 = vld [vmem:[%s11 + $0x120] sm:$0xf]
  %v4050 = vld [vmem:[%s11 + $0x124] sm:$0xf]
  %v4051 = vld [vmem:[%s11 + $0x128] sm:$0xf]
  %v4052 = vld [vmem:[%s11 + $0x12c] sm:$0xf]
  %v4053 = vld [vmem:[%s11 + $0x130] sm:$0xf]
  %v4054 = vld [vmem:[%s11 + $0x134] sm:$0xf]
  %v4055 = vld [vmem:[%s11 + $0x138] sm:$0xf]
  %v4056 = vld [vmem:[%s11 + $0x13c] sm:$0xf]
  %v4057 = vld [vmem:[%s11 + $0x140] sm:$0xf]
  %v4058 = vld [vmem:[%s11 + $0x144] sm:$0xf]
  %v4059 = vld [vmem:[%s11 + $0x148] sm:$0xf]
  %v4060 = vld [vmem:[%s11 + $0x14c] sm:$0xf]
  %v4061 = vld [vmem:[%s11 + $0x150] sm:$0xf]
  %v4062 = vld [vmem:[%s11 + $0x154] sm:$0xf]
  %v4063 = vld [vmem:[%s11 + $0x158] sm:$0xf]
  %v4064 = vld [vmem:[%s11 + $0x15c] sm:$0xf]
  %v4065 = vld [vmem:[%s11 + $0x160] sm:$0xf]
  %v4066 = vld [vmem:[%s11 + $0x164] sm:$0xf]
  %v4067 = vld [vmem:[%s11 + $0x168] sm:$0xf]
  %v4068 = vld [vmem:[%s11 + $0x16c] sm:$0xf]
  %v4069 = vld [vmem:[%s11 + $0x170] sm:$0xf]
  %v4070 = vld [vmem:[%s11 + $0x174] sm:$0xf]
  %v4071 = vld [vmem:[%s11 + $0x178] sm:$0xf]
  %v4072 = vld [vmem:[%s11 + $0x17c] sm:$0xf]
  %v4073 = vld [vmem:[%s11 + $0x180] sm:$0xf]
  %v4074 = vld [vmem:[%s11 + $0x184] sm:$0xf]
  %v4075 = vld [vmem:[%s11 + $0x188] sm:$0xf]
  %v4076 = vld [vmem:[%s11 + $0x18c] sm:$0xf]
  %v4077 = vld [vmem:[%s11 + $0x190] sm:$0xf]
  %v4078 = vld [vmem:[%s11 + $0x194] sm:$0xf]
  %v4079 = vld [vmem:[%s11 + $0x198] sm:$0xf]
  %v4080 = vld [vmem:[%s11 + $0x19c] sm:$0xf]
  %v4081 = vld [vmem:[%s11 + $0x1a0] sm:$0xf]
  %v4082 = vld [vmem:[%s11 + $0x1a4] sm:$0xf]
  %v4083 = vld [vmem:[%s11 + $0x1a8] sm:$0xf]
  %v4084 = vld [vmem:[%s11 + $0x1ac] sm:$0xf]
  %v4085 = vld [vmem:[%s11 + $0x1b0] sm:$0xf]
  %v4086 = vld [vmem:[%s11 + $0x1b4] sm:$0xf]
  %v4087 = vld [vmem:[%s11 + $0x1b8] sm:$0xf]
  %v4088 = vld [vmem:[%s11 + $0x1bc] sm:$0xf]
  %v4089 = vld [vmem:[%s11 + $0x1c0] sm:$0xf]
  %v4090 = vld [vmem:[%s11 + $0x1c4] sm:$0xf]
  %v4091 = vld [vmem:[%s11 + $0x1c8] sm:$0xf]
  %v4092 = vld [vmem:[%s11 + $0x1cc] sm:$0xf]
  %v4093 = vld [vmem:[%s11 + $0x1d0] sm:$0xf]
  %v4094 = vld [vmem:[%s11 + $0x1d4] sm:$0xf]
  %v4095 = vld [vmem:[%s11 + $0x1d8] sm:$0xf]
  %v4096 = vld [vmem:[%s11 + $0x1dc] sm:$0xf]
  %v4097 = vld [vmem:[%s11 + $0x1e0] sm:$0xf]
  %v4098 = vld [vmem:[%s11 + $0x1e4] sm:$0xf]
  %v4099 = vld [vmem:[%s11 + $0x1e8] sm:$0xf]
  %v4100 = vld [vmem:[%s11 + $0x1ec] sm:$0xf]
  %v4101 = vld [vmem:[%s11 + $0x1f0] sm:$0xf]
  %v4102 = vld [vmem:[%s11 + $0x1f4] sm:$0xf]
  %v4103 = vld [vmem:[%s11 + $0x1f8] sm:$0xf]
  %v4104 = vld [vmem:[%s11 + $0x1fc] sm:$0xf]
  %v4105 = vld [vmem:[%s11 + $0x200] sm:$0xf]
  %v4106 = vld [vmem:[%s11 + $0x204] sm:$0xf]
  %v4107 = vld [vmem:[%s11 + $0x208] sm:$0xf]
  %v4108 = vld [vmem:[%s11 + $0x20c] sm:$0xf]
  %v4109 = vld [vmem:[%s11 + $0x210] sm:$0xf]
  %v4110 = vld [vmem:[%s11 + $0x214] sm:$0xf]
  %v4111 = vld [vmem:[%s11 + $0x218] sm:$0xf]
  %v4112 = vld [vmem:[%s11 + $0x21c] sm:$0xf]
  %v4113 = vld [vmem:[%s11 + $0x220] sm:$0xf]
  %v4114 = vld [vmem:[%s11 + $0x224] sm:$0xf]
  %v4115 = vld [vmem:[%s11 + $0x228] sm:$0xf]
  %v4116 = vld [vmem:[%s11 + $0x22c] sm:$0xf]
  %v4117 = vld [vmem:[%s11 + $0x230] sm:$0xf]
  %v4118 = vld [vmem:[%s11 + $0x234] sm:$0xf]
  %v4119 = vld [vmem:[%s11 + $0x238] sm:$0xf]
  %v4120 = vld [vmem:[%s11 + $0x23c] sm:$0xf]
  %v4121 = vld [vmem:[%s11 + $0x240] sm:$0xf]
  %v4122 = vld [vmem:[%s11 + $0x244] sm:$0xf]
  %v4123 = vld [vmem:[%s11 + $0x248] sm:$0xf]
  %v4124 = vld [vmem:[%s11 + $0x24c] sm:$0xf]
  %v4125 = vld [vmem:[%s11 + $0x250] sm:$0xf]
  %v4126 = vld [vmem:[%s11 + $0x254] sm:$0xf]
  %v4127 = vld [vmem:[%s11 + $0x258] sm:$0xf]
  %v4128 = vld [vmem:[%s11 + $0x25c] sm:$0xf]
  %v4129 = vld [vmem:[%s11 + $0x260] sm:$0xf]
  %v4130 = vld [vmem:[%s11 + $0x264] sm:$0xf]
  %v4131 = vld [vmem:[%s11 + $0x268] sm:$0xf]
  %v4132 = vld [vmem:[%s11 + $0x26c] sm:$0xf]
  %v4133 = vld [vmem:[%s11 + $0x270] sm:$0xf]
  %v4134 = vld [vmem:[%s11 + $0x274] sm:$0xf]
  %v4135 = vld [vmem:[%s11 + $0x278] sm:$0xf]
  %v4136 = vld [vmem:[%s11 + $0x27c] sm:$0xf]
  %v4137 = vld [vmem:[%s11 + $0x280] sm:$0xf]
  %v4138 = vld [vmem:[%s11 + $0x284] sm:$0xf]
  %v4139 = vld [vmem:[%s11 + $0x288] sm:$0xf]
  %v4140 = vld [vmem:[%s11 + $0x28c] sm:$0xf]
  %v4141 = vld [vmem:[%s11 + $0x290] sm:$0xf]
  %v4142 = vld [vmem:[%s11 + $0x294] sm:$0xf]
  %v4143 = vld [vmem:[%s11 + $0x298] sm:$0xf]
  %v4144 = vld [vmem:[%s11 + $0x29c] sm:$0xf]
  %v4145 = vld [vmem:[%s11 + $0x2a0] sm:$0xf]
  %v4146 = vld [vmem:[%s11 + $0x2a4] sm:$0xf]
  %v4147 = vld [vmem:[%s11 + $0x2a8] sm:$0xf]
  %v4148 = vld [vmem:[%s11 + $0x2ac] sm:$0xf]
  %v4149 = vld [vmem:[%s11 + $0x2b0] sm:$0xf]
  %v4150 = vld [vmem:[%s11 + $0x2b4] sm:$0xf]
  %v4151 = vld [vmem:[%s11 + $0x2b8] sm:$0xf]
  %v4152 = vld [vmem:[%s11 + $0x2bc] sm:$0xf]
  %v4153 = vld [vmem:[%s11 + $0x2c0] sm:$0xf]
  %v4154 = vld [vmem:[%s11 + $0x2c4] sm:$0xf]
  %v4155 = vld [vmem:[%s11 + $0x2c8] sm:$0xf]
  %v4156 = vld [vmem:[%s11 + $0x2cc] sm:$0xf]
  %v4157 = vld [vmem:[%s11 + $0x2d0] sm:$0xf]
  %v4158 = vld [vmem:[%s11 + $0x2d4] sm:$0xf]
  %v4159 = vld [vmem:[%s11 + $0x2d8] sm:$0xf]
  %v4160 = vld [vmem:[%s11 + $0x2dc] sm:$0xf]
  %v4161 = vld [vmem:[%s11 + $0x2e0] sm:$0xf]
  %v4162 = vld [vmem:[%s11 + $0x2e4] sm:$0xf]
  %v4163 = vld [vmem:[%s11 + $0x2e8] sm:$0xf]
  %v4164 = vld [vmem:[%s11 + $0x2ec] sm:$0xf]
  %v4165 = vld [vmem:[%s11 + $0x2f0] sm:$0xf]
  %v4166 = vld [vmem:[%s11 + $0x2f4] sm:$0xf]
  %v4167 = vld [vmem:[%s11 + $0x2f8] sm:$0xf]
  %v4168 = vld [vmem:[%s11 + $0x2fc] sm:$0xf]
  %v4169 = vld [vmem:[%s11 + $0x300] sm:$0xf]
  %v4170 = vld [vmem:[%s11 + $0x304] sm:$0xf]
  %v4171 = vld [vmem:[%s11 + $0x308] sm:$0xf]
  %v4172 = vld [vmem:[%s11 + $0x30c] sm:$0xf]
  %v4173 = vld [vmem:[%s11 + $0x310] sm:$0xf]
  %v4174 = vld [vmem:[%s11 + $0x314] sm:$0xf]
  %v4175 = vld [vmem:[%s11 + $0x318] sm:$0xf]
  %v4176 = vld [vmem:[%s11 + $0x31c] sm:$0xf]
  %v4177 = vld [vmem:[%s11 + $0x320] sm:$0xf]
  %v4178 = vld [vmem:[%s11 + $0x324] sm:$0xf]
  %v4179 = vld [vmem:[%s11 + $0x328] sm:$0xf]
  %v4180 = vld [vmem:[%s11 + $0x32c] sm:$0xf]
  %v4181 = vld [vmem:[%s11 + $0x330] sm:$0xf]
  %v4182 = vld [vmem:[%s11 + $0x334] sm:$0xf]
  %v4183 = vld [vmem:[%s11 + $0x338] sm:$0xf]
  %v4184 = vld [vmem:[%s11 + $0x33c] sm:$0xf]
  %v4185 = vld [vmem:[%s11 + $0x340] sm:$0xf]
  %v4186 = vld [vmem:[%s11 + $0x344] sm:$0xf]
  %v4187 = vld [vmem:[%s11 + $0x348] sm:$0xf]
  %v4188 = vld [vmem:[%s11 + $0x34c] sm:$0xf]
  %v4189 = vld [vmem:[%s11 + $0x350] sm:$0xf]
  %v4190 = vld [vmem:[%s11 + $0x354] sm:$0xf]
  %v4191 = vld [vmem:[%s11 + $0x358] sm:$0xf]
  %v4192 = vld [vmem:[%s11 + $0x35c] sm:$0xf]
  %v4193 = vld [vmem:[%s11 + $0x360] sm:$0xf]
  %v4194 = vld [vmem:[%s11 + $0x364] sm:$0xf]
  %v4195 = vld [vmem:[%s11 + $0x368] sm:$0xf]
  %v4196 = vld [vmem:[%s11 + $0x36c] sm:$0xf]
  %v4197 = vld [vmem:[%s11 + $0x370] sm:$0xf]
  %v4198 = vld [vmem:[%s11 + $0x374] sm:$0xf]
  %v4199 = vld [vmem:[%s11 + $0x378] sm:$0xf]
  %v4200 = vld [vmem:[%s11 + $0x37c] sm:$0xf]
  %v4201 = vld [vmem:[%s11 + $0x380] sm:$0xf]
  %v4202 = vld [vmem:[%s11 + $0x384] sm:$0xf]
  %v4203 = vld [vmem:[%s11 + $0x388] sm:$0xf]
  %v4204 = vld [vmem:[%s11 + $0x38c] sm:$0xf]
  %v4205 = vld [vmem:[%s11 + $0x390] sm:$0xf]
  %v4206 = vld [vmem:[%s11 + $0x394] sm:$0xf]
  %v4207 = vld [vmem:[%s11 + $0x398] sm:$0xf]
  %v4208 = vld [vmem:[%s11 + $0x39c] sm:$0xf]
  %v4209 = vld [vmem:[%s11 + $0x3a0] sm:$0xf]
  %v4210 = vld [vmem:[%s11 + $0x3a4] sm:$0xf]
  %v4211 = vld [vmem:[%s11 + $0x3a8] sm:$0xf]
  %v4212 = vld [vmem:[%s11 + $0x3ac] sm:$0xf]
  %v4213 = vld [vmem:[%s11 + $0x3b0] sm:$0xf]
  %v4214 = vld [vmem:[%s11 + $0x3b4] sm:$0xf]
  %v4215 = vld [vmem:[%s11 + $0x3b8] sm:$0xf]
  %v4216 = vld [vmem:[%s11 + $0x3bc] sm:$0xf]
  %v4217 = vld [vmem:[%s11 + $0x3c0] sm:$0xf]
  %v4218 = vld [vmem:[%s11 + $0x3c4] sm:$0xf]
  %v4219 = vld [vmem:[%s11 + $0x3c8] sm:$0xf]
  %v4220 = vld [vmem:[%s11 + $0x3cc] sm:$0xf]
  %v4221 = vld [vmem:[%s11 + $0x3d0] sm:$0xf]
  %v4222 = vld [vmem:[%s11 + $0x3d4] sm:$0xf]
  %v4223 = vld [vmem:[%s11 + $0x3d8] sm:$0xf]
  %v4224 = vld [vmem:[%s11 + $0x3dc] sm:$0xf]
  %v4225 = vld [vmem:[%s11 + $0x3e0] sm:$0xf]
  %v4226 = vld [vmem:[%s11 + $0x3e4] sm:$0xf]
  %v4227 = vld [vmem:[%s11 + $0x3e8] sm:$0xf]
  %v4228 = vld [vmem:[%s11 + $0x3ec] sm:$0xf]
  %v4229 = vld [vmem:[%s11 + $0x3f0] sm:$0xf]
  %v4230 = vld [vmem:[%s11 + $0x3f4] sm:$0xf]
  %v4231 = vld [vmem:[%s11 + $0x3f8] sm:$0xf]
  %v4232 = vld [vmem:[%s11 + $0x3fc] sm:$0xf]
  %v4233 = vld [vmem:[%s12] sm:$0x1]
  %v4235 = vlaneseq
  %v4236 = vshrl.u32 %v4235, 7
  %v4237 = vsub.s32 0, %v4236
  %v4238 = vrot.slane %v4233, %v4237
  %v4496 = vunpack.c.l.b16 %v3977
  %v4497 = vunpack.c.l.b16 %v3978
  %v4498 = vunpack.c.l.b16 %v3979
  %v4499 = vunpack.c.l.b16 %v3980
  %v4500 = vunpack.c.l.b16 %v3981
  %v4501 = vunpack.c.l.b16 %v3982
  %v4502 = vunpack.c.l.b16 %v3983
  %v4503 = vunpack.c.l.b16 %v3984
  %v4504 = vunpack.c.l.b16 %v3985
  %v4505 = vunpack.c.l.b16 %v3986
  %v4506 = vunpack.c.l.b16 %v3987
  %v4507 = vunpack.c.l.b16 %v3988
  %v4508 = vunpack.c.l.b16 %v3989
  %v4509 = vunpack.c.l.b16 %v3990
  %v4510 = vunpack.c.l.b16 %v3991
  %v4511 = vunpack.c.l.b16 %v3992
  %v4512 = vunpack.c.l.b16 %v3993
  %v4513 = vunpack.c.l.b16 %v3994
  %v4514 = vunpack.c.l.b16 %v3995
  %v4515 = vunpack.c.l.b16 %v3996
  %v4516 = vunpack.c.l.b16 %v3997
  %v4517 = vunpack.c.l.b16 %v3998
  %v4518 = vunpack.c.l.b16 %v3999
  %v4519 = vunpack.c.l.b16 %v4000
  %v4520 = vunpack.c.l.b16 %v4001
  %v4521 = vunpack.c.l.b16 %v4002
  %v4522 = vunpack.c.l.b16 %v4003
  %v4523 = vunpack.c.l.b16 %v4004
  %v4524 = vunpack.c.l.b16 %v4005
  %v4525 = vunpack.c.l.b16 %v4006
  %v4526 = vunpack.c.l.b16 %v4007
  %v4527 = vunpack.c.l.b16 %v4008
  %v4528 = vunpack.c.l.b16 %v4009
  %v4529 = vunpack.c.l.b16 %v4010
  %v4530 = vunpack.c.l.b16 %v4011
  %v4531 = vunpack.c.l.b16 %v4012
  %v4532 = vunpack.c.l.b16 %v4013
  %v4533 = vunpack.c.l.b16 %v4014
  %v4534 = vunpack.c.l.b16 %v4015
  %v4535 = vunpack.c.l.b16 %v4016
  %v4536 = vunpack.c.l.b16 %v4017
  %v4537 = vunpack.c.l.b16 %v4018
  %v4538 = vunpack.c.l.b16 %v4019
  %v4539 = vunpack.c.l.b16 %v4020
  %v4540 = vunpack.c.l.b16 %v4021
  %v4541 = vunpack.c.l.b16 %v4022
  %v4542 = vunpack.c.l.b16 %v4023
  %v4543 = vunpack.c.l.b16 %v4024
  %v4544 = vunpack.c.l.b16 %v4025
  %v4545 = vunpack.c.l.b16 %v4026
  %v4546 = vunpack.c.l.b16 %v4027
  %v4547 = vunpack.c.l.b16 %v4028
  %v4548 = vunpack.c.l.b16 %v4029
  %v4549 = vunpack.c.l.b16 %v4030
  %v4550 = vunpack.c.l.b16 %v4031
  %v4551 = vunpack.c.l.b16 %v4032
  %v4552 = vunpack.c.l.b16 %v4033
  %v4553 = vunpack.c.l.b16 %v4034
  %v4554 = vunpack.c.l.b16 %v4035
  %v4555 = vunpack.c.l.b16 %v4036
  %v4556 = vunpack.c.l.b16 %v4037
  %v4557 = vunpack.c.l.b16 %v4038
  %v4558 = vunpack.c.l.b16 %v4039
  %v4559 = vunpack.c.l.b16 %v4040
  %v4560 = vunpack.c.l.b16 %v4041
  %v4561 = vunpack.c.l.b16 %v4042
  %v4562 = vunpack.c.l.b16 %v4043
  %v4563 = vunpack.c.l.b16 %v4044
  %v4564 = vunpack.c.l.b16 %v4045
  %v4565 = vunpack.c.l.b16 %v4046
  %v4566 = vunpack.c.l.b16 %v4047
  %v4567 = vunpack.c.l.b16 %v4048
  %v4568 = vunpack.c.l.b16 %v4049
  %v4569 = vunpack.c.l.b16 %v4050
  %v4570 = vunpack.c.l.b16 %v4051
  %v4571 = vunpack.c.l.b16 %v4052
  %v4572 = vunpack.c.l.b16 %v4053
  %v4573 = vunpack.c.l.b16 %v4054
  %v4574 = vunpack.c.l.b16 %v4055
  %v4575 = vunpack.c.l.b16 %v4056
  %v4576 = vunpack.c.l.b16 %v4057
  %v4577 = vunpack.c.l.b16 %v4058
  %v4578 = vunpack.c.l.b16 %v4059
  %v4579 = vunpack.c.l.b16 %v4060
  %v4580 = vunpack.c.l.b16 %v4061
  %v4581 = vunpack.c.l.b16 %v4062
  %v4582 = vunpack.c.l.b16 %v4063
  %v4583 = vunpack.c.l.b16 %v4064
  %v4584 = vunpack.c.l.b16 %v4065
  %v4585 = vunpack.c.l.b16 %v4066
  %v4586 = vunpack.c.l.b16 %v4067
  %v4587 = vunpack.c.l.b16 %v4068
  %v4588 = vunpack.c.l.b16 %v4069
  %v4589 = vunpack.c.l.b16 %v4070
  %v4590 = vunpack.c.l.b16 %v4071
  %v4591 = vunpack.c.l.b16 %v4072
  %v4592 = vunpack.c.l.b16 %v4073
  %v4593 = vunpack.c.l.b16 %v4074
  %v4594 = vunpack.c.l.b16 %v4075
  %v4595 = vunpack.c.l.b16 %v4076
  %v4596 = vunpack.c.l.b16 %v4077
  %v4597 = vunpack.c.l.b16 %v4078
  %v4598 = vunpack.c.l.b16 %v4079
  %v4599 = vunpack.c.l.b16 %v4080
  %v4600 = vunpack.c.l.b16 %v4081
  %v4601 = vunpack.c.l.b16 %v4082
  %v4602 = vunpack.c.l.b16 %v4083
  %v4603 = vunpack.c.l.b16 %v4084
  %v4604 = vunpack.c.l.b16 %v4085
  %v4605 = vunpack.c.l.b16 %v4086
  %v4606 = vunpack.c.l.b16 %v4087
  %v4607 = vunpack.c.l.b16 %v4088
  %v4608 = vunpack.c.l.b16 %v4089
  %v4609 = vunpack.c.l.b16 %v4090
  %v4610 = vunpack.c.l.b16 %v4091
  %v4611 = vunpack.c.l.b16 %v4092
  %v4612 = vunpack.c.l.b16 %v4093
  %v4613 = vunpack.c.l.b16 %v4094
  %v4614 = vunpack.c.l.b16 %v4095
  %v4615 = vunpack.c.l.b16 %v4096
  %v4616 = vunpack.c.l.b16 %v4097
  %v4617 = vunpack.c.l.b16 %v4098
  %v4618 = vunpack.c.l.b16 %v4099
  %v4619 = vunpack.c.l.b16 %v4100
  %v4620 = vunpack.c.l.b16 %v4101
  %v4621 = vunpack.c.l.b16 %v4102
  %v4622 = vunpack.c.l.b16 %v4103
  %v4623 = vunpack.c.l.b16 %v4104
  %v4624 = vunpack.c.l.b16 %v4105
  %v4625 = vunpack.c.l.b16 %v4106
  %v4626 = vunpack.c.l.b16 %v4107
  %v4627 = vunpack.c.l.b16 %v4108
  %v4628 = vunpack.c.l.b16 %v4109
  %v4629 = vunpack.c.l.b16 %v4110
  %v4630 = vunpack.c.l.b16 %v4111
  %v4631 = vunpack.c.l.b16 %v4112
  %v4632 = vunpack.c.l.b16 %v4113
  %v4633 = vunpack.c.l.b16 %v4114
  %v4634 = vunpack.c.l.b16 %v4115
  %v4635 = vunpack.c.l.b16 %v4116
  %v4636 = vunpack.c.l.b16 %v4117
  %v4637 = vunpack.c.l.b16 %v4118
  %v4638 = vunpack.c.l.b16 %v4119
  %v4639 = vunpack.c.l.b16 %v4120
  %v4640 = vunpack.c.l.b16 %v4121
  %v4641 = vunpack.c.l.b16 %v4122
  %v4642 = vunpack.c.l.b16 %v4123
  %v4643 = vunpack.c.l.b16 %v4124
  %v4644 = vunpack.c.l.b16 %v4125
  %v4645 = vunpack.c.l.b16 %v4126
  %v4646 = vunpack.c.l.b16 %v4127
  %v4647 = vunpack.c.l.b16 %v4128
  %v4648 = vunpack.c.l.b16 %v4129
  %v4649 = vunpack.c.l.b16 %v4130
  %v4650 = vunpack.c.l.b16 %v4131
  %v4651 = vunpack.c.l.b16 %v4132
  %v4652 = vunpack.c.l.b16 %v4133
  %v4653 = vunpack.c.l.b16 %v4134
  %v4654 = vunpack.c.l.b16 %v4135
  %v4655 = vunpack.c.l.b16 %v4136
  %v4656 = vunpack.c.l.b16 %v4137
  %v4657 = vunpack.c.l.b16 %v4138
  %v4658 = vunpack.c.l.b16 %v4139
  %v4659 = vunpack.c.l.b16 %v4140
  %v4660 = vunpack.c.l.b16 %v4141
  %v4661 = vunpack.c.l.b16 %v4142
  %v4662 = vunpack.c.l.b16 %v4143
  %v4663 = vunpack.c.l.b16 %v4144
  %v4664 = vunpack.c.l.b16 %v4145
  %v4665 = vunpack.c.l.b16 %v4146
  %v4666 = vunpack.c.l.b16 %v4147
  %v4667 = vunpack.c.l.b16 %v4148
  %v4668 = vunpack.c.l.b16 %v4149
  %v4669 = vunpack.c.l.b16 %v4150
  %v4670 = vunpack.c.l.b16 %v4151
  %v4671 = vunpack.c.l.b16 %v4152
  %v4672 = vunpack.c.l.b16 %v4153
  %v4673 = vunpack.c.l.b16 %v4154
  %v4674 = vunpack.c.l.b16 %v4155
  %v4675 = vunpack.c.l.b16 %v4156
  %v4676 = vunpack.c.l.b16 %v4157
  %v4677 = vunpack.c.l.b16 %v4158
  %v4678 = vunpack.c.l.b16 %v4159
  %v4679 = vunpack.c.l.b16 %v4160
  %v4680 = vunpack.c.l.b16 %v4161
  %v4681 = vunpack.c.l.b16 %v4162
  %v4682 = vunpack.c.l.b16 %v4163
  %v4683 = vunpack.c.l.b16 %v4164
  %v4684 = vunpack.c.l.b16 %v4165
  %v4685 = vunpack.c.l.b16 %v4166
  %v4686 = vunpack.c.l.b16 %v4167
  %v4687 = vunpack.c.l.b16 %v4168
  %v4688 = vunpack.c.l.b16 %v4169
  %v4689 = vunpack.c.l.b16 %v4170
  %v4690 = vunpack.c.l.b16 %v4171
  %v4691 = vunpack.c.l.b16 %v4172
  %v4692 = vunpack.c.l.b16 %v4173
  %v4693 = vunpack.c.l.b16 %v4174
  %v4694 = vunpack.c.l.b16 %v4175
  %v4695 = vunpack.c.l.b16 %v4176
  %v4696 = vunpack.c.l.b16 %v4177
  %v4697 = vunpack.c.l.b16 %v4178
  %v4698 = vunpack.c.l.b16 %v4179
  %v4699 = vunpack.c.l.b16 %v4180
  %v4700 = vunpack.c.l.b16 %v4181
  %v4701 = vunpack.c.l.b16 %v4182
  %v4702 = vunpack.c.l.b16 %v4183
  %v4703 = vunpack.c.l.b16 %v4184
  %v4704 = vunpack.c.l.b16 %v4185
  %v4705 = vunpack.c.l.b16 %v4186
  %v4706 = vunpack.c.l.b16 %v4187
  %v4707 = vunpack.c.l.b16 %v4188
  %v4708 = vunpack.c.l.b16 %v4189
  %v4709 = vunpack.c.l.b16 %v4190
  %v4710 = vunpack.c.l.b16 %v4191
  %v4711 = vunpack.c.l.b16 %v4192
  %v4712 = vunpack.c.l.b16 %v4193
  %v4713 = vunpack.c.l.b16 %v4194
  %v4714 = vunpack.c.l.b16 %v4195
  %v4715 = vunpack.c.l.b16 %v4196
  %v4716 = vunpack.c.l.b16 %v4197
  %v4717 = vunpack.c.l.b16 %v4198
  %v4718 = vunpack.c.l.b16 %v4199
  %v4719 = vunpack.c.l.b16 %v4200
  %v4720 = vunpack.c.l.b16 %v4201
  %v4721 = vunpack.c.l.b16 %v4202
  %v4722 = vunpack.c.l.b16 %v4203
  %v4723 = vunpack.c.l.b16 %v4204
  %v4724 = vunpack.c.l.b16 %v4205
  %v4725 = vunpack.c.l.b16 %v4206
  %v4726 = vunpack.c.l.b16 %v4207
  %v4727 = vunpack.c.l.b16 %v4208
  %v4728 = vunpack.c.l.b16 %v4209
  %v4729 = vunpack.c.l.b16 %v4210
  %v4730 = vunpack.c.l.b16 %v4211
  %v4731 = vunpack.c.l.b16 %v4212
  %v4732 = vunpack.c.l.b16 %v4213
  %v4733 = vunpack.c.l.b16 %v4214
  %v4734 = vunpack.c.l.b16 %v4215
  %v4735 = vunpack.c.l.b16 %v4216
  %v4736 = vunpack.c.l.b16 %v4217
  %v4737 = vunpack.c.l.b16 %v4218
  %v4738 = vunpack.c.l.b16 %v4219
  %v4739 = vunpack.c.l.b16 %v4220
  %v4740 = vunpack.c.l.b16 %v4221
  %v4741 = vunpack.c.l.b16 %v4222
  %v4742 = vunpack.c.l.b16 %v4223
  %v4743 = vunpack.c.l.b16 %v4224
  %v4744 = vunpack.c.l.b16 %v4225
  %v4745 = vunpack.c.l.b16 %v4226
  %v4746 = vunpack.c.l.b16 %v4227
  %v4747 = vunpack.c.l.b16 %v4228
  %v4748 = vunpack.c.l.b16 %v4229
  %v4749 = vunpack.c.l.b16 %v4230
  %v4750 = vunpack.c.l.b16 %v4231
  %v4751 = vunpack.c.l.b16 %v4232
  %v4752 = vpack.c.b16 %v4497, %v4496
  %v4753 = vpack.c.b16 %v4499, %v4498
  %v4754 = vpack.c.b16 %v4501, %v4500
  %v4755 = vpack.c.b16 %v4503, %v4502
  %v4756 = vpack.c.b16 %v4505, %v4504
  %v4757 = vpack.c.b16 %v4507, %v4506
  %v4758 = vpack.c.b16 %v4509, %v4508
  %v4759 = vpack.c.b16 %v4511, %v4510
  %v4760 = vpack.c.b16 %v4513, %v4512
  %v4761 = vpack.c.b16 %v4515, %v4514
  %v4762 = vpack.c.b16 %v4517, %v4516
  %v4763 = vpack.c.b16 %v4519, %v4518
  %v4764 = vpack.c.b16 %v4521, %v4520
  %v4765 = vpack.c.b16 %v4523, %v4522
  %v4766 = vpack.c.b16 %v4525, %v4524
  %v4767 = vpack.c.b16 %v4527, %v4526
  %v4768 = vpack.c.b16 %v4529, %v4528
  %v4769 = vpack.c.b16 %v4531, %v4530
  %v4770 = vpack.c.b16 %v4533, %v4532
  %v4771 = vpack.c.b16 %v4535, %v4534
  %v4772 = vpack.c.b16 %v4537, %v4536
  %v4773 = vpack.c.b16 %v4539, %v4538
  %v4774 = vpack.c.b16 %v4541, %v4540
  %v4775 = vpack.c.b16 %v4543, %v4542
  %v4776 = vpack.c.b16 %v4545, %v4544
  %v4777 = vpack.c.b16 %v4547, %v4546
  %v4778 = vpack.c.b16 %v4549, %v4548
  %v4779 = vpack.c.b16 %v4551, %v4550
  %v4780 = vpack.c.b16 %v4553, %v4552
  %v4781 = vpack.c.b16 %v4555, %v4554
  %v4782 = vpack.c.b16 %v4557, %v4556
  %v4783 = vpack.c.b16 %v4559, %v4558
  %v4784 = vpack.c.b16 %v4561, %v4560
  %v4785 = vpack.c.b16 %v4563, %v4562
  %v4786 = vpack.c.b16 %v4565, %v4564
  %v4787 = vpack.c.b16 %v4567, %v4566
  %v4788 = vpack.c.b16 %v4569, %v4568
  %v4789 = vpack.c.b16 %v4571, %v4570
  %v4790 = vpack.c.b16 %v4573, %v4572
  %v4791 = vpack.c.b16 %v4575, %v4574
  %v4792 = vpack.c.b16 %v4577, %v4576
  %v4793 = vpack.c.b16 %v4579, %v4578
  %v4794 = vpack.c.b16 %v4581, %v4580
  %v4795 = vpack.c.b16 %v4583, %v4582
  %v4796 = vpack.c.b16 %v4585, %v4584
  %v4797 = vpack.c.b16 %v4587, %v4586
  %v4798 = vpack.c.b16 %v4589, %v4588
  %v4799 = vpack.c.b16 %v4591, %v4590
  %v4800 = vpack.c.b16 %v4593, %v4592
  %v4801 = vpack.c.b16 %v4595, %v4594
  %v4802 = vpack.c.b16 %v4597, %v4596
  %v4803 = vpack.c.b16 %v4599, %v4598
  %v4804 = vpack.c.b16 %v4601, %v4600
  %v4805 = vpack.c.b16 %v4603, %v4602
  %v4806 = vpack.c.b16 %v4605, %v4604
  %v4807 = vpack.c.b16 %v4607, %v4606
  %v4808 = vpack.c.b16 %v4609, %v4608
  %v4809 = vpack.c.b16 %v4611, %v4610
  %v4810 = vpack.c.b16 %v4613, %v4612
  %v4811 = vpack.c.b16 %v4615, %v4614
  %v4812 = vpack.c.b16 %v4617, %v4616
  %v4813 = vpack.c.b16 %v4619, %v4618
  %v4814 = vpack.c.b16 %v4621, %v4620
  %v4815 = vpack.c.b16 %v4623, %v4622
  %v4816 = vpack.c.b16 %v4625, %v4624
  %v4817 = vpack.c.b16 %v4627, %v4626
  %v4818 = vpack.c.b16 %v4629, %v4628
  %v4819 = vpack.c.b16 %v4631, %v4630
  %v4820 = vpack.c.b16 %v4633, %v4632
  %v4821 = vpack.c.b16 %v4635, %v4634
  %v4822 = vpack.c.b16 %v4637, %v4636
  %v4823 = vpack.c.b16 %v4639, %v4638
  %v4824 = vpack.c.b16 %v4641, %v4640
  %v4825 = vpack.c.b16 %v4643, %v4642
  %v4826 = vpack.c.b16 %v4645, %v4644
  %v4827 = vpack.c.b16 %v4647, %v4646
  %v4828 = vpack.c.b16 %v4649, %v4648
  %v4829 = vpack.c.b16 %v4651, %v4650
  %v4830 = vpack.c.b16 %v4653, %v4652
  %v4831 = vpack.c.b16 %v4655, %v4654
  %v4832 = vpack.c.b16 %v4657, %v4656
  %v4833 = vpack.c.b16 %v4659, %v4658
  %v4834 = vpack.c.b16 %v4661, %v4660
  %v4835 = vpack.c.b16 %v4663, %v4662
  %v4836 = vpack.c.b16 %v4665, %v4664
  %v4837 = vpack.c.b16 %v4667, %v4666
  %v4838 = vpack.c.b16 %v4669, %v4668
  %v4839 = vpack.c.b16 %v4671, %v4670
  %v4840 = vpack.c.b16 %v4673, %v4672
  %v4841 = vpack.c.b16 %v4675, %v4674
  %v4842 = vpack.c.b16 %v4677, %v4676
  %v4843 = vpack.c.b16 %v4679, %v4678
  %v4844 = vpack.c.b16 %v4681, %v4680
  %v4845 = vpack.c.b16 %v4683, %v4682
  %v4846 = vpack.c.b16 %v4685, %v4684
  %v4847 = vpack.c.b16 %v4687, %v4686
  %v4848 = vpack.c.b16 %v4689, %v4688
  %v4849 = vpack.c.b16 %v4691, %v4690
  %v4850 = vpack.c.b16 %v4693, %v4692
  %v4851 = vpack.c.b16 %v4695, %v4694
  %v4852 = vpack.c.b16 %v4697, %v4696
  %v4853 = vpack.c.b16 %v4699, %v4698
  %v4854 = vpack.c.b16 %v4701, %v4700
  %v4855 = vpack.c.b16 %v4703, %v4702
  %v4856 = vpack.c.b16 %v4705, %v4704
  %v4857 = vpack.c.b16 %v4707, %v4706
  %v4858 = vpack.c.b16 %v4709, %v4708
  %v4859 = vpack.c.b16 %v4711, %v4710
  %v4860 = vpack.c.b16 %v4713, %v4712
  %v4861 = vpack.c.b16 %v4715, %v4714
  %v4862 = vpack.c.b16 %v4717, %v4716
  %v4863 = vpack.c.b16 %v4719, %v4718
  %v4864 = vpack.c.b16 %v4721, %v4720
  %v4865 = vpack.c.b16 %v4723, %v4722
  %v4866 = vpack.c.b16 %v4725, %v4724
  %v4867 = vpack.c.b16 %v4727, %v4726
  %v4868 = vpack.c.b16 %v4729, %v4728
  %v4869 = vpack.c.b16 %v4731, %v4730
  %v4870 = vpack.c.b16 %v4733, %v4732
  %v4871 = vpack.c.b16 %v4735, %v4734
  %v4872 = vpack.c.b16 %v4737, %v4736
  %v4873 = vpack.c.b16 %v4739, %v4738
  %v4874 = vpack.c.b16 %v4741, %v4740
  %v4875 = vpack.c.b16 %v4743, %v4742
  %v4876 = vpack.c.b16 %v4745, %v4744
  %v4877 = vpack.c.b16 %v4747, %v4746
  %v4878 = vpack.c.b16 %v4749, %v4748
  %v4879 = vpack.c.b16 %v4751, %v4750
  %5008 = vmatprep.subr.bf16.mxu0 0
  %5009 = vmatpush1.bf16.msra.mxu0 %v4752
  %5010 = vmatprep.subr.bf16.mxu0 0
  %5011 = vmatpush1.bf16.msra.mxu0 %v4753
  %5012 = vmatprep.subr.bf16.mxu0 0
  %5013 = vmatpush1.bf16.msra.mxu0 %v4754
  %5014 = vmatprep.subr.bf16.mxu0 0
  %5015 = vmatpush1.bf16.msra.mxu0 %v4755
  %5016 = vmatprep.subr.bf16.mxu0 0
  %5017 = vmatpush1.bf16.msra.mxu0 %v4756
  %5018 = vmatprep.subr.bf16.mxu0 0
  %5019 = vmatpush1.bf16.msra.mxu0 %v4757
  %5020 = vmatprep.subr.bf16.mxu0 0
  %5021 = vmatpush1.bf16.msra.mxu0 %v4758
  %5022 = vmatprep.subr.bf16.mxu0 0
  %5023 = vmatpush1.bf16.msra.mxu0 %v4759
  %5024 = vmatprep.subr.bf16.mxu0 0
  %5025 = vmatpush1.bf16.msra.mxu0 %v4760
  %5026 = vmatprep.subr.bf16.mxu0 0
  %5027 = vmatpush1.bf16.msra.mxu0 %v4761
  %5028 = vmatprep.subr.bf16.mxu0 0
  %5029 = vmatpush1.bf16.msra.mxu0 %v4762
  %5030 = vmatprep.subr.bf16.mxu0 0
  %5031 = vmatpush1.bf16.msra.mxu0 %v4763
  %5032 = vmatprep.subr.bf16.mxu0 0
  %5033 = vmatpush1.bf16.msra.mxu0 %v4764
  %5034 = vmatprep.subr.bf16.mxu0 0
  %5035 = vmatpush1.bf16.msra.mxu0 %v4765
  %5036 = vmatprep.subr.bf16.mxu0 0
  %5037 = vmatpush1.bf16.msra.mxu0 %v4766
  %5038 = vmatprep.subr.bf16.mxu0 0
  %5039 = vmatpush1.bf16.msra.mxu0 %v4767
  %5040 = vmatprep.mubr.bf16.mxu0 %v3962
  %5041 = vmatmul.mubr.bf16.gmra.mrb[0].mxu0 %v3961
  %v5042 = vpop.f32.mrb[0].mxu0
  %v5043 = vadd.f32 %v4238, %v5042
  %v5044 = vpop.f32.mrb[0].mxu0
  %v5045 = vpop.f32.mrb[0].mxu0
  %v5046 = vadd.f32 %v4238, %v5045
  %v5047 = vpop.f32.mrb[0].mxu0
  %5048 = vdwg.mxu0
  %5049 = vmatprep.subr.bf16.mxu0 0
  %5050 = vmatpush1.bf16.msra.mxu0 %v4768
  %5051 = vmatprep.subr.bf16.mxu0 0
  %5052 = vmatpush1.bf16.msra.mxu0 %v4769
  %5053 = vmatprep.subr.bf16.mxu0 0
  %5054 = vmatpush1.bf16.msra.mxu0 %v4770
  %5055 = vmatprep.subr.bf16.mxu0 0
  %5056 = vmatpush1.bf16.msra.mxu0 %v4771
  %5057 = vmatprep.subr.bf16.mxu0 0
  %5058 = vmatpush1.bf16.msra.mxu0 %v4772
  %5059 = vmatprep.subr.bf16.mxu0 0
  %5060 = vmatpush1.bf16.msra.mxu0 %v4773
  %5061 = vmatprep.subr.bf16.mxu0 0
  %5062 = vmatpush1.bf16.msra.mxu0 %v4774
  %5063 = vmatprep.subr.bf16.mxu0 0
  %5064 = vmatpush1.bf16.msra.mxu0 %v4775
  %5065 = vmatprep.subr.bf16.mxu0 0
  %5066 = vmatpush1.bf16.msra.mxu0 %v4776
  %5067 = vmatprep.subr.bf16.mxu0 0
  %5068 = vmatpush1.bf16.msra.mxu0 %v4777
  %5069 = vmatprep.subr.bf16.mxu0 0
  %5070 = vmatpush1.bf16.msra.mxu0 %v4778
  %5071 = vmatprep.subr.bf16.mxu0 0
  %5072 = vmatpush1.bf16.msra.mxu0 %v4779
  %5073 = vmatprep.subr.bf16.mxu0 0
  %5074 = vmatpush1.bf16.msra.mxu0 %v4780
  %5075 = vmatprep.subr.bf16.mxu0 0
  %5076 = vmatpush1.bf16.msra.mxu0 %v4781
  %5077 = vmatprep.subr.bf16.mxu0 0
  %5078 = vmatpush1.bf16.msra.mxu0 %v4782
  %5079 = vmatprep.subr.bf16.mxu0 0
  %5080 = vmatpush1.bf16.msra.mxu0 %v4783
  %5081 = vmatprep.mubr.bf16.mxu0 %v3964
  %5082 = vmatmul.mubr.bf16.gmra.mrb[0].mxu0 %v3963
  %v5083 = vpop.f32.mrb[0].mxu0
  %v5084 = vadd.f32 %v5043, %v5083
  %v5085 = vpop.f32.mrb[0].mxu0
  %v5086 = vpop.f32.mrb[0].mxu0
  %v5087 = vadd.f32 %v5046, %v5086
  %v5088 = vpop.f32.mrb[0].mxu0
  %5089 = vdwg.mxu0
  %5090 = vmatprep.subr.bf16.mxu0 0
  %5091 = vmatpush1.bf16.msra.mxu0 %v4784
  %5092 = vmatprep.subr.bf16.mxu0 0
  %5093 = vmatpush1.bf16.msra.mxu0 %v4785
  %5094 = vmatprep.subr.bf16.mxu0 0
  %5095 = vmatpush1.bf16.msra.mxu0 %v4786
  %5096 = vmatprep.subr.bf16.mxu0 0
  %5097 = vmatpush1.bf16.msra.mxu0 %v4787
  %5098 = vmatprep.subr.bf16.mxu0 0
  %5099 = vmatpush1.bf16.msra.mxu0 %v4788
  %5100 = vmatprep.subr.bf16.mxu0 0
  %5101 = vmatpush1.bf16.msra.mxu0 %v4789
  %5102 = vmatprep.subr.bf16.mxu0 0
  %5103 = vmatpush1.bf16.msra.mxu0 %v4790
  %5104 = vmatprep.subr.bf16.mxu0 0
  %5105 = vmatpush1.bf16.msra.mxu0 %v4791
  %5106 = vmatprep.subr.bf16.mxu0 0
  %5107 = vmatpush1.bf16.msra.mxu0 %v4792
  %5108 = vmatprep.subr.bf16.mxu0 0
  %5109 = vmatpush1.bf16.msra.mxu0 %v4793
  %5110 = vmatprep.subr.bf16.mxu0 0
  %5111 = vmatpush1.bf16.msra.mxu0 %v4794
  %5112 = vmatprep.subr.bf16.mxu0 0
  %5113 = vmatpush1.bf16.msra.mxu0 %v4795
  %5114 = vmatprep.subr.bf16.mxu0 0
  %5115 = vmatpush1.bf16.msra.mxu0 %v4796
  %5116 = vmatprep.subr.bf16.mxu0 0
  %5117 = vmatpush1.bf16.msra.mxu0 %v4797
  %5118 = vmatprep.subr.bf16.mxu0 0
  %5119 = vmatpush1.bf16.msra.mxu0 %v4798
  %5120 = vmatprep.subr.bf16.mxu0 0
  %5121 = vmatpush1.bf16.msra.mxu0 %v4799
  %5122 = vmatprep.mubr.bf16.mxu0 %v3966
  %5123 = vmatmul.mubr.bf16.gmra.mrb[0].mxu0 %v3965
  %v5124 = vpop.f32.mrb[0].mxu0
  %v5125 = vadd.f32 %v5084, %v5124
  %v5126 = vpop.f32.mrb[0].mxu0
  %v5127 = vpop.f32.mrb[0].mxu0
  %v5128 = vadd.f32 %v5087, %v5127
  %v5129 = vpop.f32.mrb[0].mxu0
  %5130 = vdwg.mxu0
  %5131 = vmatprep.subr.bf16.mxu0 0
  %5132 = vmatpush1.bf16.msra.mxu0 %v4800
  %5133 = vmatprep.subr.bf16.mxu0 0
  %5134 = vmatpush1.bf16.msra.mxu0 %v4801
  %5135 = vmatprep.subr.bf16.mxu0 0
  %5136 = vmatpush1.bf16.msra.mxu0 %v4802
  %5137 = vmatprep.subr.bf16.mxu0 0
  %5138 = vmatpush1.bf16.msra.mxu0 %v4803
  %5139 = vmatprep.subr.bf16.mxu0 0
  %5140 = vmatpush1.bf16.msra.mxu0 %v4804
  %5141 = vmatprep.subr.bf16.mxu0 0
  %5142 = vmatpush1.bf16.msra.mxu0 %v4805
  %5143 = vmatprep.subr.bf16.mxu0 0
  %5144 = vmatpush1.bf16.msra.mxu0 %v4806
  %5145 = vmatprep.subr.bf16.mxu0 0
  %5146 = vmatpush1.bf16.msra.mxu0 %v4807
  %5147 = vmatprep.subr.bf16.mxu0 0
  %5148 = vmatpush1.bf16.msra.mxu0 %v4808
  %5149 = vmatprep.subr.bf16.mxu0 0
  %5150 = vmatpush1.bf16.msra.mxu0 %v4809
  %5151 = vmatprep.subr.bf16.mxu0 0
  %5152 = vmatpush1.bf16.msra.mxu0 %v4810
  %5153 = vmatprep.subr.bf16.mxu0 0
  %5154 = vmatpush1.bf16.msra.mxu0 %v4811
  %5155 = vmatprep.subr.bf16.mxu0 0
  %5156 = vmatpush1.bf16.msra.mxu0 %v4812
  %5157 = vmatprep.subr.bf16.mxu0 0
  %5158 = vmatpush1.bf16.msra.mxu0 %v4813
  %5159 = vmatprep.subr.bf16.mxu0 0
  %5160 = vmatpush1.bf16.msra.mxu0 %v4814
  %5161 = vmatprep.subr.bf16.mxu0 0
  %5162 = vmatpush1.bf16.msra.mxu0 %v4815
  %5163 = vmatprep.mubr.bf16.mxu0 %v3968
  %5164 = vmatmul.mubr.bf16.gmra.mrb[0].mxu0 %v3967
  %v5165 = vpop.f32.mrb[0].mxu0
  %v5166 = vadd.f32 %v5125, %v5165
  %v5167 = vpop.f32.mrb[0].mxu0
  %v5168 = vpop.f32.mrb[0].mxu0
  %v5169 = vadd.f32 %v5128, %v5168
  %v5170 = vpop.f32.mrb[0].mxu0
  %5171 = vdwg.mxu0
  %5172 = vmatprep.subr.bf16.mxu0 0
  %5173 = vmatpush1.bf16.msra.mxu0 %v4816
  %5174 = vmatprep.subr.bf16.mxu0 0
  %5175 = vmatpush1.bf16.msra.mxu0 %v4817
  %5176 = vmatprep.subr.bf16.mxu0 0
  %5177 = vmatpush1.bf16.msra.mxu0 %v4818
  %5178 = vmatprep.subr.bf16.mxu0 0
  %5179 = vmatpush1.bf16.msra.mxu0 %v4819
  %5180 = vmatprep.subr.bf16.mxu0 0
  %5181 = vmatpush1.bf16.msra.mxu0 %v4820
  %5182 = vmatprep.subr.bf16.mxu0 0
  %5183 = vmatpush1.bf16.msra.mxu0 %v4821
  %5184 = vmatprep.subr.bf16.mxu0 0
  %5185 = vmatpush1.bf16.msra.mxu0 %v4822
  %5186 = vmatprep.subr.bf16.mxu0 0
  %5187 = vmatpush1.bf16.msra.mxu0 %v4823
  %5188 = vmatprep.subr.bf16.mxu0 0
  %5189 = vmatpush1.bf16.msra.mxu0 %v4824
  %5190 = vmatprep.subr.bf16.mxu0 0
  %5191 = vmatpush1.bf16.msra.mxu0 %v4825
  %5192 = vmatprep.subr.bf16.mxu0 0
  %5193 = vmatpush1.bf16.msra.mxu0 %v4826
  %5194 = vmatprep.subr.bf16.mxu0 0
  %5195 = vmatpush1.bf16.msra.mxu0 %v4827
  %5196 = vmatprep.subr.bf16.mxu0 0
  %5197 = vmatpush1.bf16.msra.mxu0 %v4828
  %5198 = vmatprep.subr.bf16.mxu0 0
  %5199 = vmatpush1.bf16.msra.mxu0 %v4829
  %5200 = vmatprep.subr.bf16.mxu0 0
  %5201 = vmatpush1.bf16.msra.mxu0 %v4830
  %5202 = vmatprep.subr.bf16.mxu0 0
  %5203 = vmatpush1.bf16.msra.mxu0 %v4831
  %5204 = vmatprep.mubr.bf16.mxu0 %v3970
  %5205 = vmatmul.mubr.bf16.gmra.mrb[0].mxu0 %v3969
  %v5206 = vpop.f32.mrb[0].mxu0
  %v5207 = vadd.f32 %v5166, %v5206
  %v5208 = vpop.f32.mrb[0].mxu0
  %v5209 = vpop.f32.mrb[0].mxu0
  %v5210 = vadd.f32 %v5169, %v5209
  %v5211 = vpop.f32.mrb[0].mxu0
  %5212 = vdwg.mxu0
  %5213 = vmatprep.subr.bf16.mxu0 0
  %5214 = vmatpush1.bf16.msra.mxu0 %v4832
  %5215 = vmatprep.subr.bf16.mxu0 0
  %5216 = vmatpush1.bf16.msra.mxu0 %v4833
  %5217 = vmatprep.subr.bf16.mxu0 0
  %5218 = vmatpush1.bf16.msra.mxu0 %v4834
  %5219 = vmatprep.subr.bf16.mxu0 0
  %5220 = vmatpush1.bf16.msra.mxu0 %v4835
  %5221 = vmatprep.subr.bf16.mxu0 0
  %5222 = vmatpush1.bf16.msra.mxu0 %v4836
  %5223 = vmatprep.subr.bf16.mxu0 0
  %5224 = vmatpush1.bf16.msra.mxu0 %v4837
  %5225 = vmatprep.subr.bf16.mxu0 0
  %5226 = vmatpush1.bf16.msra.mxu0 %v4838
  %5227 = vmatprep.subr.bf16.mxu0 0
  %5228 = vmatpush1.bf16.msra.mxu0 %v4839
  %5229 = vmatprep.subr.bf16.mxu0 0
  %5230 = vmatpush1.bf16.msra.mxu0 %v4840
  %5231 = vmatprep.subr.bf16.mxu0 0
  %5232 = vmatpush1.bf16.msra.mxu0 %v4841
  %5233 = vmatprep.subr.bf16.mxu0 0
  %5234 = vmatpush1.bf16.msra.mxu0 %v4842
  %5235 = vmatprep.subr.bf16.mxu0 0
  %5236 = vmatpush1.bf16.msra.mxu0 %v4843
  %5237 = vmatprep.subr.bf16.mxu0 0
  %5238 = vmatpush1.bf16.msra.mxu0 %v4844
  %5239 = vmatprep.subr.bf16.mxu0 0
  %5240 = vmatpush1.bf16.msra.mxu0 %v4845
  %5241 = vmatprep.subr.bf16.mxu0 0
  %5242 = vmatpush1.bf16.msra.mxu0 %v4846
  %5243 = vmatprep.subr.bf16.mxu0 0
  %5244 = vmatpush1.bf16.msra.mxu0 %v4847
  %5245 = vmatprep.mubr.bf16.mxu0 %v3972
  %5246 = vmatmul.mubr.bf16.gmra.mrb[0].mxu0 %v3971
  %v5247 = vpop.f32.mrb[0].mxu0
  %v5248 = vadd.f32 %v5207, %v5247
  %v5249 = vpop.f32.mrb[0].mxu0
  %v5250 = vpop.f32.mrb[0].mxu0
  %v5251 = vadd.f32 %v5210, %v5250
  %v5252 = vpop.f32.mrb[0].mxu0
  %5253 = vdwg.mxu0
  %5254 = vmatprep.subr.bf16.mxu0 0
  %5255 = vmatpush1.bf16.msra.mxu0 %v4848
  %5256 = vmatprep.subr.bf16.mxu0 0
  %5257 = vmatpush1.bf16.msra.mxu0 %v4849
  %5258 = vmatprep.subr.bf16.mxu0 0
  %5259 = vmatpush1.bf16.msra.mxu0 %v4850
  %5260 = vmatprep.subr.bf16.mxu0 0
  %5261 = vmatpush1.bf16.msra.mxu0 %v4851
  %5262 = vmatprep.subr.bf16.mxu0 0
  %5263 = vmatpush1.bf16.msra.mxu0 %v4852
  %5264 = vmatprep.subr.bf16.mxu0 0
  %5265 = vmatpush1.bf16.msra.mxu0 %v4853
  %5266 = vmatprep.subr.bf16.mxu0 0
  %5267 = vmatpush1.bf16.msra.mxu0 %v4854
  %5268 = vmatprep.subr.bf16.mxu0 0
  %5269 = vmatpush1.bf16.msra.mxu0 %v4855
  %5270 = vmatprep.subr.bf16.mxu0 0
  %5271 = vmatpush1.bf16.msra.mxu0 %v4856
  %5272 = vmatprep.subr.bf16.mxu0 0
  %5273 = vmatpush1.bf16.msra.mxu0 %v4857
  %5274 = vmatprep.subr.bf16.mxu0 0
  %5275 = vmatpush1.bf16.msra.mxu0 %v4858
  %5276 = vmatprep.subr.bf16.mxu0 0
  %5277 = vmatpush1.bf16.msra.mxu0 %v4859
  %5278 = vmatprep.subr.bf16.mxu0 0
  %5279 = vmatpush1.bf16.msra.mxu0 %v4860
  %5280 = vmatprep.subr.bf16.mxu0 0
  %5281 = vmatpush1.bf16.msra.mxu0 %v4861
  %5282 = vmatprep.subr.bf16.mxu0 0
  %5283 = vmatpush1.bf16.msra.mxu0 %v4862
  %5284 = vmatprep.subr.bf16.mxu0 0
  %5285 = vmatpush1.bf16.msra.mxu0 %v4863
  %5286 = vmatprep.mubr.bf16.mxu0 %v3974
  %5287 = vmatmul.mubr.bf16.gmra.mrb[0].mxu0 %v3973
  %v5288 = vpop.f32.mrb[0].mxu0
  %v5289 = vadd.f32 %v5248, %v5288
  %v5290 = vpop.f32.mrb[0].mxu0
  %v5291 = vpop.f32.mrb[0].mxu0
  %v5292 = vadd.f32 %v5251, %v5291
  %v5293 = vpop.f32.mrb[0].mxu0
  %5294 = vdwg.mxu0
  %5295 = vmatprep.subr.bf16.mxu0 0
  %5296 = vmatpush1.bf16.msra.mxu0 %v4864
  %5297 = vmatprep.subr.bf16.mxu0 0
  %5298 = vmatpush1.bf16.msra.mxu0 %v4865
  %5299 = vmatprep.subr.bf16.mxu0 0
  %5300 = vmatpush1.bf16.msra.mxu0 %v4866
  %5301 = vmatprep.subr.bf16.mxu0 0
  %5302 = vmatpush1.bf16.msra.mxu0 %v4867
  %5303 = vmatprep.subr.bf16.mxu0 0
  %5304 = vmatpush1.bf16.msra.mxu0 %v4868
  %5305 = vmatprep.subr.bf16.mxu0 0
  %5306 = vmatpush1.bf16.msra.mxu0 %v4869
  %5307 = vmatprep.subr.bf16.mxu0 0
  %5308 = vmatpush1.bf16.msra.mxu0 %v4870
  %5309 = vmatprep.subr.bf16.mxu0 0
  %5310 = vmatpush1.bf16.msra.mxu0 %v4871
  %5311 = vmatprep.subr.bf16.mxu0 0
  %5312 = vmatpush1.bf16.msra.mxu0 %v4872
  %5313 = vmatprep.subr.bf16.mxu0 0
  %5314 = vmatpush1.bf16.msra.mxu0 %v4873
  %5315 = vmatprep.subr.bf16.mxu0 0
  %5316 = vmatpush1.bf16.msra.mxu0 %v4874
  %5317 = vmatprep.subr.bf16.mxu0 0
  %5318 = vmatpush1.bf16.msra.mxu0 %v4875
  %5319 = vmatprep.subr.bf16.mxu0 0
  %5320 = vmatpush1.bf16.msra.mxu0 %v4876
  %5321 = vmatprep.subr.bf16.mxu0 0
  %5322 = vmatpush1.bf16.msra.mxu0 %v4877
  %5323 = vmatprep.subr.bf16.mxu0 0
  %5324 = vmatpush1.bf16.msra.mxu0 %v4878
  %5325 = vmatprep.subr.bf16.mxu0 0
  %5326 = vmatpush1.bf16.msra.mxu0 %v4879
  %5327 = vmatprep.mubr.bf16.mxu0 %v3976
  %5328 = vmatmul.mubr.bf16.gmra.mrb[0].mxu0 %v3975
  %v5329 = vpop.f32.mrb[0].mxu0
  %v5330 = vadd.f32 %v5289, %v5329
  %v5331 = vpop.f32.mrb[0].mxu0
  %v5332 = vpop.f32.mrb[0].mxu0
  %v5333 = vadd.f32 %v5292, %v5332
  %v5334 = vpop.f32.mrb[0].mxu0
  %5335 = vdwg.mxu0
  %v5338 = vcombine.high %v5330, %v5330
  %v5340 = vunpack.c.l.s4 1983009808
  %v5341 = vunpack.c.0.s8 %v5340
  %v5342 = vlaneseq
  %v5343 = vshrl.u32 %v5342, 7
  %v5344 = vsub.s32 %v5341, %v5343
  %v5345 = vrot.slane %v5330, %v5344
  %v5347 = vunpack.c.l.s4 1983009808
  %v5348 = vunpack.c.0.s8 %v5347
  %v5349 = vlaneseq
  %v5350 = vshrl.u32 %v5349, 7
  %v5351 = vsub.s32 %v5348, %v5350
  %v5352 = vrot.slane %v5338, %v5351
  %v5353 = vcombine.high %v5345, %v5345
  %v5354 = vcombine.high %v5352, %v5352
  %v5355 = vcombine.high %v5333, %v5333
  %v5357 = vunpack.c.l.s4 1983009808
  %v5358 = vunpack.c.0.s8 %v5357
  %v5359 = vlaneseq
  %v5360 = vshrl.u32 %v5359, 7
  %v5361 = vsub.s32 %v5358, %v5360
  %v5362 = vrot.slane %v5333, %v5361
  %v5364 = vunpack.c.l.s4 1983009808
  %v5365 = vunpack.c.0.s8 %v5364
  %v5366 = vlaneseq
  %v5367 = vshrl.u32 %v5366, 7
  %v5368 = vsub.s32 %v5365, %v5367
  %v5369 = vrot.slane %v5355, %v5368
  %v5370 = vcombine.high %v5362, %v5362
  %v5371 = vcombine.high %v5369, %v5369
  %v5380 = vadd.f32 %v3253, %v5345
  %v5381 = vadd.f32 %v3254, %v5353
  %v5382 = vadd.f32 %v3255, %v5352
  %v5383 = vadd.f32 %v3256, %v5354
  %v5384 = vadd.f32 %v3257, %v5362
  %v5385 = vadd.f32 %v3258, %v5370
  %v5386 = vadd.f32 %v3259, %v5369
  %v5387 = vadd.f32 %v3260, %v5371
  %v5388 = vld [vmem:[%s13] sm:$0x1]
  %v5389 = vld [vmem:[%s14] sm:$0x1]
  %v5398 = vcombine.low %v5380, %v5381
  %v5399 = vcombine.low %v5382, %v5383
  %v5401 = vunpack.c.l.s4 1983009808
  %v5402 = vunpack.c.0.s8 %v5401
  %v5403 = vlaneseq
  %v5404 = vshrl.u32 %v5403, 7
  %v5405 = vsub.s32 %v5402, %v5404
  %v5406 = vrot.slane %v5398, %v5405
  %v5408 = vunpack.c.l.s4 1983009808
  %v5409 = vunpack.c.0.s8 %v5408
  %v5410 = vlaneseq
  %v5411 = vshrl.u32 %v5410, 7
  %v5412 = vsub.s32 %v5409, %v5411
  %v5413 = vrot.slane %v5399, %v5412
  %v5414 = vcombine.low %v5406, %v5413
  %v5415 = vcombine.low %v5384, %v5385
  %v5416 = vcombine.low %v5386, %v5387
  %v5418 = vunpack.c.l.s4 1983009808
  %v5419 = vunpack.c.0.s8 %v5418
  %v5420 = vlaneseq
  %v5421 = vshrl.u32 %v5420, 7
  %v5422 = vsub.s32 %v5419, %v5421
  %v5423 = vrot.slane %v5415, %v5422
  %v5425 = vunpack.c.l.s4 1983009808
  %v5426 = vunpack.c.0.s8 %v5425
  %v5427 = vlaneseq
  %v5428 = vshrl.u32 %v5427, 7
  %v5429 = vsub.s32 %v5426, %v5428
  %v5430 = vrot.slane %v5416, %v5429
  %v5431 = vcombine.low %v5423, %v5430
  %v5434 = vsel %vm135, %v5414, 0.0
  %5435 = vadd.xlane.f32.xlu0 %v5434
  %v5436 = vpop.xlane.xlu0 %5435
  %v5437 = vsel %vm135, %v5431, 0.0
  %5438 = vadd.xlane.f32.xlu0 %v5437
  %v5439 = vpop.xlane.xlu0 %5438
  %v5440 = vmul.f32 %v5436, %v2978
  %v5441 = vmul.f32 %v5439, %v2978
  %v5445 = vunpack.c.l.s4 269488144
  %v5446 = vunpack.c.0.s8 %v5445
  %v5447 = vlaneseq
  %v5448 = vshrl.u32 %v5447, 7
  %v5449 = vsub.s32 %v5446, %v5448
  %v5450 = vrot.slane %v5440, %v5449
  %v5452 = vunpack.c.l.s4 842150450
  %v5453 = vunpack.c.0.s8 %v5452
  %v5454 = vlaneseq
  %v5455 = vshrl.u32 %v5454, 7
  %v5456 = vsub.s32 %v5453, %v5455
  %v5457 = vrot.slane %v5440, %v5456
  %v5459 = vunpack.c.l.s4 1414812756
  %v5460 = vunpack.c.0.s8 %v5459
  %v5461 = vlaneseq
  %v5462 = vshrl.u32 %v5461, 7
  %v5463 = vsub.s32 %v5460, %v5462
  %v5464 = vrot.slane %v5440, %v5463
  %v5466 = vunpack.c.l.s4 1987475062
  %v5467 = vunpack.c.0.s8 %v5466
  %v5468 = vlaneseq
  %v5469 = vshrl.u32 %v5468, 7
  %v5470 = vsub.s32 %v5467, %v5469
  %v5471 = vrot.slane %v5440, %v5470
  %v5473 = vunpack.c.l.s4 269488144
  %v5474 = vunpack.c.0.s8 %v5473
  %v5475 = vlaneseq
  %v5476 = vshrl.u32 %v5475, 7
  %v5477 = vsub.s32 %v5474, %v5476
  %v5478 = vrot.slane %v5441, %v5477
  %v5480 = vunpack.c.l.s4 842150450
  %v5481 = vunpack.c.0.s8 %v5480
  %v5482 = vlaneseq
  %v5483 = vshrl.u32 %v5482, 7
  %v5484 = vsub.s32 %v5481, %v5483
  %v5485 = vrot.slane %v5441, %v5484
  %v5487 = vunpack.c.l.s4 1414812756
  %v5488 = vunpack.c.0.s8 %v5487
  %v5489 = vlaneseq
  %v5490 = vshrl.u32 %v5489, 7
  %v5491 = vsub.s32 %v5488, %v5490
  %v5492 = vrot.slane %v5441, %v5491
  %v5494 = vunpack.c.l.s4 1987475062
  %v5495 = vunpack.c.0.s8 %v5494
  %v5496 = vlaneseq
  %v5497 = vshrl.u32 %v5496, 7
  %v5498 = vsub.s32 %v5495, %v5497
  %v5499 = vrot.slane %v5441, %v5498
  %v5508 = vsub.f32 %v5380, %v5450
  %v5509 = vsub.f32 %v5381, %v5457
  %v5510 = vsub.f32 %v5382, %v5464
  %v5511 = vsub.f32 %v5383, %v5471
  %v5512 = vsub.f32 %v5384, %v5478
  %v5513 = vsub.f32 %v5385, %v5485
  %v5514 = vsub.f32 %v5386, %v5492
  %v5515 = vsub.f32 %v5387, %v5499
  %v5516 = vmul.f32 %v5508, %v5508
  %v5517 = vmul.f32 %v5509, %v5509
  %v5518 = vmul.f32 %v5510, %v5510
  %v5519 = vmul.f32 %v5511, %v5511
  %v5520 = vmul.f32 %v5512, %v5512
  %v5521 = vmul.f32 %v5513, %v5513
  %v5522 = vmul.f32 %v5514, %v5514
  %v5523 = vmul.f32 %v5515, %v5515
  %v5532 = vcombine.low %v5516, %v5517
  %v5533 = vcombine.low %v5518, %v5519
  %v5535 = vunpack.c.l.s4 1983009808
  %v5536 = vunpack.c.0.s8 %v5535
  %v5537 = vlaneseq
  %v5538 = vshrl.u32 %v5537, 7
  %v5539 = vsub.s32 %v5536, %v5538
  %v5540 = vrot.slane %v5532, %v5539
  %v5542 = vunpack.c.l.s4 1983009808
  %v5543 = vunpack.c.0.s8 %v5542
  %v5544 = vlaneseq
  %v5545 = vshrl.u32 %v5544, 7
  %v5546 = vsub.s32 %v5543, %v5545
  %v5547 = vrot.slane %v5533, %v5546
  %v5548 = vcombine.low %v5540, %v5547
  %v5549 = vcombine.low %v5520, %v5521
  %v5550 = vcombine.low %v5522, %v5523
  %v5552 = vunpack.c.l.s4 1983009808
  %v5553 = vunpack.c.0.s8 %v5552
  %v5554 = vlaneseq
  %v5555 = vshrl.u32 %v5554, 7
  %v5556 = vsub.s32 %v5553, %v5555
  %v5557 = vrot.slane %v5549, %v5556
  %v5559 = vunpack.c.l.s4 1983009808
  %v5560 = vunpack.c.0.s8 %v5559
  %v5561 = vlaneseq
  %v5562 = vshrl.u32 %v5561, 7
  %v5563 = vsub.s32 %v5560, %v5562
  %v5564 = vrot.slane %v5550, %v5563
  %v5565 = vcombine.low %v5557, %v5564
  %v5568 = vsel %vm135, %v5548, 0.0
  %5569 = vadd.xlane.f32.xlu0 %v5568
  %v5570 = vpop.xlane.xlu0 %5569
  %v5571 = vsel %vm135, %v5565, 0.0
  %5572 = vadd.xlane.f32.xlu0 %v5571
  %v5573 = vpop.xlane.xlu0 %5572
  %v5574 = vmul.f32 %v5570, %v2978
  %v5575 = vmul.f32 %v5573, %v2978
  %v5576 = vadd.f32 %v5574, 1e-05
  %v5577 = vadd.f32 %v5575, 1e-05
  %v5578 = vrsqrt.pop %v5576
  %v5579 = vrsqrt.pop %v5577
  %v5583 = vunpack.c.l.s4 269488144
  %v5584 = vunpack.c.0.s8 %v5583
  %v5585 = vlaneseq
  %v5586 = vshrl.u32 %v5585, 7
  %v5587 = vsub.s32 %v5584, %v5586
  %v5588 = vrot.slane %v5578, %v5587
  %v5590 = vunpack.c.l.s4 842150450
  %v5591 = vunpack.c.0.s8 %v5590
  %v5592 = vlaneseq
  %v5593 = vshrl.u32 %v5592, 7
  %v5594 = vsub.s32 %v5591, %v5593
  %v5595 = vrot.slane %v5578, %v5594
  %v5597 = vunpack.c.l.s4 1414812756
  %v5598 = vunpack.c.0.s8 %v5597
  %v5599 = vlaneseq
  %v5600 = vshrl.u32 %v5599, 7
  %v5601 = vsub.s32 %v5598, %v5600
  %v5602 = vrot.slane %v5578, %v5601
  %v5604 = vunpack.c.l.s4 1987475062
  %v5605 = vunpack.c.0.s8 %v5604
  %v5606 = vlaneseq
  %v5607 = vshrl.u32 %v5606, 7
  %v5608 = vsub.s32 %v5605, %v5607
  %v5609 = vrot.slane %v5578, %v5608
  %v5611 = vunpack.c.l.s4 269488144
  %v5612 = vunpack.c.0.s8 %v5611
  %v5613 = vlaneseq
  %v5614 = vshrl.u32 %v5613, 7
  %v5615 = vsub.s32 %v5612, %v5614
  %v5616 = vrot.slane %v5579, %v5615
  %v5618 = vunpack.c.l.s4 842150450
  %v5619 = vunpack.c.0.s8 %v5618
  %v5620 = vlaneseq
  %v5621 = vshrl.u32 %v5620, 7
  %v5622 = vsub.s32 %v5619, %v5621
  %v5623 = vrot.slane %v5579, %v5622
  %v5625 = vunpack.c.l.s4 1414812756
  %v5626 = vunpack.c.0.s8 %v5625
  %v5627 = vlaneseq
  %v5628 = vshrl.u32 %v5627, 7
  %v5629 = vsub.s32 %v5626, %v5628
  %v5630 = vrot.slane %v5579, %v5629
  %v5632 = vunpack.c.l.s4 1987475062
  %v5633 = vunpack.c.0.s8 %v5632
  %v5634 = vlaneseq
  %v5635 = vshrl.u32 %v5634, 7
  %v5636 = vsub.s32 %v5633, %v5635
  %v5637 = vrot.slane %v5579, %v5636
  %v5646 = vmul.f32 %v5508, %v5588
  %v5647 = vmul.f32 %v5509, %v5595
  %v5648 = vmul.f32 %v5510, %v5602
  %v5649 = vmul.f32 %v5511, %v5609
  %v5650 = vmul.f32 %v5512, %v5616
  %v5651 = vmul.f32 %v5513, %v5623
  %v5652 = vmul.f32 %v5514, %v5630
  %v5653 = vmul.f32 %v5515, %v5637
  %v5655 = vlaneseq
  %v5656 = vshrl.u32 %v5655, 7
  %v5657 = vsub.s32 0, %v5656
  %v5658 = vrot.slane %v5388, %v5657
  %v5659 = vcombine.high %v5658, %v5658
  %v5661 = vunpack.c.l.s4 1983009808
  %v5662 = vunpack.c.0.s8 %v5661
  %v5663 = vlaneseq
  %v5664 = vshrl.u32 %v5663, 7
  %v5665 = vsub.s32 %v5662, %v5664
  %v5666 = vrot.slane %v5658, %v5665
  %v5668 = vunpack.c.l.s4 1983009808
  %v5669 = vunpack.c.0.s8 %v5668
  %v5670 = vlaneseq
  %v5671 = vshrl.u32 %v5670, 7
  %v5672 = vsub.s32 %v5669, %v5671
  %v5673 = vrot.slane %v5659, %v5672
  %v5674 = vcombine.high %v5666, %v5666
  %v5675 = vcombine.high %v5673, %v5673
  %v5680 = vmul.f32 %v5646, %v5666
  %v5681 = vmul.f32 %v5647, %v5674
  %v5682 = vmul.f32 %v5648, %v5673
  %v5683 = vmul.f32 %v5649, %v5675
  %v5684 = vmul.f32 %v5650, %v5666
  %v5685 = vmul.f32 %v5651, %v5674
  %v5686 = vmul.f32 %v5652, %v5673
  %v5687 = vmul.f32 %v5653, %v5675
  %v5689 = vlaneseq
  %v5690 = vshrl.u32 %v5689, 7
  %v5691 = vsub.s32 0, %v5690
  %v5692 = vrot.slane %v5389, %v5691
  %v5693 = vcombine.high %v5692, %v5692
  %v5695 = vunpack.c.l.s4 1983009808
  %v5696 = vunpack.c.0.s8 %v5695
  %v5697 = vlaneseq
  %v5698 = vshrl.u32 %v5697, 7
  %v5699 = vsub.s32 %v5696, %v5698
  %v5700 = vrot.slane %v5692, %v5699
  %v5702 = vunpack.c.l.s4 1983009808
  %v5703 = vunpack.c.0.s8 %v5702
  %v5704 = vlaneseq
  %v5705 = vshrl.u32 %v5704, 7
  %v5706 = vsub.s32 %v5703, %v5705
  %v5707 = vrot.slane %v5693, %v5706
  %v5708 = vcombine.high %v5700, %v5700
  %v5709 = vcombine.high %v5707, %v5707
  %v5714 = vadd.f32 %v5680, %v5700
  %v5715 = vadd.f32 %v5681, %v5708
  %v5716 = vadd.f32 %v5682, %v5707
  %v5717 = vadd.f32 %v5683, %v5709
  %v5718 = vadd.f32 %v5684, %v5700
  %v5719 = vadd.f32 %v5685, %v5708
  %v5720 = vadd.f32 %v5686, %v5707
  %v5721 = vadd.f32 %v5687, %v5709
  %v5722 = vld [vmem:[%s15] sm:$0x1]
  %v5724 = vlaneseq
  %v5725 = vshrl.u32 %v5724, 7
  %v5726 = vsub.s32 0, %v5725
  %v5727 = vrot.slane %v5722, %v5726
  %v5729 = vmul.f32 %v5714, %v5727
  %v5730 = vmul.f32 %v5715, %v5727
  %v5731 = vmul.f32 %v5716, %v5727
  %v5732 = vmul.f32 %v5717, %v5727
  %v5733 = vmul.f32 %v5718, %v5727
  %v5734 = vmul.f32 %v5719, %v5727
  %v5735 = vmul.f32 %v5720, %v5727
  %v5736 = vmul.f32 %v5721, %v5727
  %v5737 = vsel %vm2641, %v5729, 0.0
  %5738 = vadd.xlane.f32.xlu0 %v5737
  %v5739 = vpop.xlane.xlu0 %5738
  %v5740 = vsel %vm2641, %v5730, 0.0
  %5741 = vadd.xlane.f32.xlu0 %v5740
  %v5742 = vpop.xlane.xlu0 %5741
  %v5743 = vsel %vm2641, %v5731, 0.0
  %5744 = vadd.xlane.f32.xlu0 %v5743
  %v5745 = vpop.xlane.xlu0 %5744
  %v5746 = vsel %vm2641, %v5732, 0.0
  %5747 = vadd.xlane.f32.xlu0 %v5746
  %v5748 = vpop.xlane.xlu0 %5747
  %v5749 = vsel %vm2641, %v5733, 0.0
  %5750 = vadd.xlane.f32.xlu0 %v5749
  %v5751 = vpop.xlane.xlu0 %5750
  %v5752 = vsel %vm2641, %v5734, 0.0
  %5753 = vadd.xlane.f32.xlu0 %v5752
  %v5754 = vpop.xlane.xlu0 %5753
  %v5755 = vsel %vm2641, %v5735, 0.0
  %5756 = vadd.xlane.f32.xlu0 %v5755
  %v5757 = vpop.xlane.xlu0 %5756
  %v5758 = vsel %vm2641, %v5736, 0.0
  %5759 = vadd.xlane.f32.xlu0 %v5758
  %v5760 = vpop.xlane.xlu0 %5759
  %v5761 = vld [vmem:[#allocation2] sm:$0x1]
  %v5763 = vlaneseq
  %v5764 = vshrl.u32 %v5763, 7
  %v5765 = vsub.s32 0, %v5764
  %v5766 = vrot.slane %v5761, %v5765
  %5767 = vset.pattern.permute.xlu0 0
  %5768 = vperm.xlu0 %5767, %v5766
  %v5769 = vpop.permute.xlu0 %5768
  %v5771 = vadd.f32 %v5739, %v5769
  %v5772 = vadd.f32 %v5742, %v5769
  %v5773 = vadd.f32 %v5745, %v5769
  %v5774 = vadd.f32 %v5748, %v5769
  %v5775 = vadd.f32 %v5751, %v5769
  %v5776 = vadd.f32 %v5754, %v5769
  %v5777 = vadd.f32 %v5757, %v5769
  %v5778 = vadd.f32 %v5760, %v5769
  %v5787 = vlaneseq
  %v5788 = vand.u32 %v5787, 127
  %v5789 = vlaneseq
  %v5790 = vshrl.u32 %v5789, 7
  %v5791 = vsub.s32 %v5788, %v5790
  %v5792 = vrot.slane %v5771, %v5791
  %v5793 = vlaneseq
  %v5794 = vshrl.u32 %v5793, 7
  %v5795 = vsub.s32 %v5788, %v5794
  %v5796 = vrot.slane %v5772, %v5795
  %v5797 = vlaneseq
  %v5798 = vshrl.u32 %v5797, 7
  %v5799 = vsub.s32 %v5788, %v5798
  %v5800 = vrot.slane %v5773, %v5799
  %v5801 = vlaneseq
  %v5802 = vshrl.u32 %v5801, 7
  %v5803 = vsub.s32 %v5788, %v5802
  %v5804 = vrot.slane %v5774, %v5803
  %v5805 = vlaneseq
  %v5806 = vshrl.u32 %v5805, 7
  %v5807 = vsub.s32 %v5788, %v5806
  %v5808 = vrot.slane %v5775, %v5807
  %v5809 = vlaneseq
  %v5810 = vshrl.u32 %v5809, 7
  %v5811 = vsub.s32 %v5788, %v5810
  %v5812 = vrot.slane %v5776, %v5811
  %v5813 = vlaneseq
  %v5814 = vshrl.u32 %v5813, 7
  %v5815 = vsub.s32 %v5788, %v5814
  %v5816 = vrot.slane %v5777, %v5815
  %v5817 = vlaneseq
  %v5818 = vshrl.u32 %v5817, 7
  %v5819 = vsub.s32 %v5788, %v5818
  %v5820 = vrot.slane %v5778, %v5819
  %vm5821 = vcmask 1041409
  %v5822 = vsel %vm5821, %v5796, %v5792
  %vm5823 = vcmask 1042434
  %v5824 = vsel %vm5823, %v5800, %v5822
  %vm5825 = vcmask 1043459
  %v5826 = vsel %vm5825, %v5804, %v5824
  %vm5827 = vcmask 1044484
  %v5828 = vsel %vm5827, %v5808, %v5826
  %vm5829 = vcmask 1045509
  %v5830 = vsel %vm5829, %v5812, %v5828
  %vm5831 = vcmask 1046534
  %v5832 = vsel %vm5831, %v5816, %v5830
  %vm5833 = vcmask 1047559
  %v5834 = vsel %vm5833, %v5820, %v5832
  %vm5836 = vcmask 15360
  %5837 = vst.msk [vmem:[%s17] sm:$0xff] %vm5836, %v5834
  // Predicated region
  $region70: #{transformer_head.1} parent=0 // pred_check
    _
  $region71: #{transformer_head.1} parent=0 // pred_check_branch
    %5839 = sbr.rel (0) target = $region73
  $region72: #{transformer_head.1} parent=0 // pred_region
    _
  $region73: #{transformer_head.1} parent=0 // pred_fallthru
    _
  // Predicated region
  $region74: #{transformer_head.1} parent=0 // pred_check
    _
  $region75: #{transformer_head.1} parent=0 // pred_check_branch
    %5841 = sbr.rel (0) target = $region77
  $region76: #{transformer_head.1} parent=0 // pred_region
    _
  $region77: #{transformer_head.1} parent=0 // pred_fallthru
    _

</llo_original>
